<compile_context>
chip_gen: v6e
topology: v6e:2x2x1
jax: 0.10.0
libtpu: 0.0.40
codegen_flags: <defaults>
</compile_context>

<pallas_src>
import jax
import jax.numpy as jnp
from jax.experimental import pallas as pl
from jax.experimental.pallas import tpu as pltpu

# Model dims implied by the PyTorch module.
EMBED_SIZE = 100
EMBED_PAD = 128          # E zero-padded to the 128-lane boundary
HIDDEN_SIZE = 128
OUTPUT_SIZE = 2
FC1_SIZE = 64
FC1_PAD = 128            # fc1 width zero-padded to 128 lanes
OUT_PAD = 128            # head output zero-padded to 128 lanes (wrapper slices [:, :2])
BATCH_BLOCK = 8          # rows per grid step (keeps (8,128) tile alignment)


# ----------------------------------------------------------------------------
# Fused Pallas kernel: bidirectional LSTM + MLP head (one batch block per step)
# ----------------------------------------------------------------------------
def _fused_bilstm_head_kernel(
        x_ref,                       # (T, Bb, EP) time-major embedded inputs
        wih_ref, bih_ref,            # packed [fwd|bwd] input proj: (EP, 8H), (1, 8H)
        whh_f_ref, whh_r_ref,        # recurrent weights: (H, 4H) each
        w1f_ref, w1r_ref, b1_ref,    # fc1 split: (H, FC1_PAD) x2, (1, FC1_PAD)
        w2_ref, b2_ref,              # fc2: (FC1_PAD, OUT_PAD), (1, OUT_PAD)
        out_ref,                     # (Bb, OUT_PAD)
        gx_ref):                     # VMEM scratch (T*Bb, 8H) hoisted input projection
    T, Bb, EP = x_ref.shape
    H = whh_f_ref.shape[0]

    # ---- Hoisted input projection: ONE big MXU matmul for both directions ----
    # (T*Bb, EP) x (EP, 8H); bias folded in here so the recurrent loop never
    # re-broadcasts it. Fwd gates live in cols [0, 4H), bwd gates in [4H, 8H).
    x_flat = x_ref[...].reshape(T * Bb, EP)
    gx_ref[...] = (jnp.dot(x_flat, wih_ref[...],
                           preferred_element_type=jnp.float32) + bih_ref[...])

    def sigmoid(v):
        # 1/(1+e^-v) == 0.5*(1+tanh(v/2)): single EUP op per gate.
        return 0.5 * (1.0 + jnp.tanh(0.5 * v))

    def lstm_cell(gates, c_prev):
        # PyTorch gate order: i, f, g, o
        i_g = sigmoid(gates[:, 0 * H:1 * H])
        f_g = sigmoid(gates[:, 1 * H:2 * H])
        g_g = jnp.tanh(gates[:, 2 * H:3 * H])
        o_g = sigmoid(gates[:, 3 * H:4 * H])
        c_new = f_g * c_prev + i_g * g_g
        h_new = o_g * jnp.tanh(c_new)
        return h_new, c_new

    # ---- Recurrence: fwd and bwd chains interleaved, fully unrolled ---------
    # States carried as SSA values (no per-step VMEM round-trip); the two
    # independent direction chains give the scheduler ILP to hide MXU/EUP latency.
    zeros = jnp.zeros((Bb, H), jnp.float32)
    h_f, c_f, h_r, c_r = zeros, zeros, zeros, zeros

    for t in range(T):                      # T is small & static -> full unroll
        tr = T - 1 - t
        gx_t = gx_ref[t * Bb:(t + 1) * Bb, :]          # (Bb, 8H), tile-aligned slice
        gx_tr = gx_ref[tr * Bb:(tr + 1) * Bb, :]
        gates_f = gx_t[:, :4 * H] + jnp.dot(
            h_f, whh_f_ref[...], preferred_element_type=jnp.float32)
        gates_r = gx_tr[:, 4 * H:] + jnp.dot(
            h_r, whh_r_ref[...], preferred_element_type=jnp.float32)
        h_f, c_f = lstm_cell(gates_f, c_f)
        h_r, c_r = lstm_cell(gates_r, c_r)

    # ---- Head: fc1 (split, no concat) -> ReLU -> fc2 (dropout = identity) ----
    z = (jnp.dot(h_f, w1f_ref[...], preferred_element_type=jnp.float32)
         + jnp.dot(h_r, w1r_ref[...], preferred_element_type=jnp.float32)
         + b1_ref[...])
    z = jnp.maximum(z, 0.0)
    out_ref[...] = (jnp.dot(z, w2_ref[...],
                            preferred_element_type=jnp.float32) + b2_ref[...])


# ----------------------------------------------------------------------------
# pallas_call wrapper
# ----------------------------------------------------------------------------
def _resident_spec(shape):
    # Constant index_map -> block stays VMEM-resident across grid steps.
    n = len(shape)
    return pl.BlockSpec(shape, lambda i, _n=n: (0,) * _n)


def fused_bilstm_head(x_tbe, params):
    T, B, EP = x_tbe.shape
    H = HIDDEN_SIZE
    Bb = BATCH_BLOCK
    assert B % Bb == 0, "batch must be a multiple of 8 for clean (8,128) tiles"

    out_pad = pl.pallas_call(
        _fused_bilstm_head_kernel,
        grid=(B // Bb,),
        out_shape=jax.ShapeDtypeStruct((B, OUT_PAD), jnp.float32),
        in_specs=[
            pl.BlockSpec((T, Bb, EP), lambda i: (0, i, 0)),        # x (batch-blocked)
            _resident_spec((EP, 8 * H)), _resident_spec((1, 8 * H)),
            _resident_spec((H, 4 * H)), _resident_spec((H, 4 * H)),
            _resident_spec((H, FC1_PAD)), _resident_spec((H, FC1_PAD)),
            _resident_spec((1, FC1_PAD)),
            _resident_spec((FC1_PAD, OUT_PAD)), _resident_spec((1, OUT_PAD)),
        ],
        out_specs=pl.BlockSpec((Bb, OUT_PAD), lambda i: (i, 0)),
        scratch_shapes=[
            pltpu.VMEM((T * Bb, 8 * H), jnp.float32),   # gx (both directions packed)
        ],
        compiler_params=pltpu.CompilerParams(
            dimension_semantics=("parallel",)),
    )(x_tbe,
      params["w_ih"], params["b_ih"],
      params["w_hh_f"], params["w_hh_r"],
      params["w1_f"], params["w1_r"], params["b1"],
      params["w2"], params["b2"])
    return out_pad[:, :OUTPUT_SIZE]


# ----------------------------------------------------------------------------
# Forward pass
# ----------------------------------------------------------------------------
def fake_review_classifier_forward(tokens, params):
    # Time-major gather directly: transpose the tiny int32 id matrix (not the
    # f32 embeddings) and gather straight into (T, B, EP); no (B,T,E)->(T,B,E)
    # transpose copy and no reversed copy of x are materialized.
    tok_tb = jnp.transpose(tokens, (1, 0))                        # (T, B) int32
    x_tbe = jnp.take(params["embedding"], tok_tb, axis=0)         # (T, B, EP) f32
    # nn.Dropout(0.5) is identity in eval/inference mode (no RNG applied).
    return fused_bilstm_head(x_tbe.astype(jnp.float32), params)   # (B, 2)


# ----------------------------------------------------------------------------
# Deterministic parameter init (synthetic, mirrors PyTorch shapes; zero-padded
# / re-packed to lane-friendly layouts -- padding is all zeros so results are
# bit-identical to the unpadded math)
# ----------------------------------------------------------------------------
def init_params(key, vocab_size):
    H, E, EP = HIDDEN_SIZE, EMBED_SIZE, EMBED_PAD
    ks = jax.random.split(key, 13)
    scale_lstm = 1.0 / jnp.sqrt(H)

    def u(k, shape, s):
        return jax.random.uniform(k, shape, jnp.float32, -s, s)

    emb = u(ks[0], (vocab_size, E), 0.5)
    emb = emb.at[0].set(0.0)                                  # padding_idx=0 row
    embedding = jnp.zeros((vocab_size, EP), jnp.float32).at[:, :E].set(emb)

    def pad_in_rows(w):                                       # (E,4H) -> (EP,4H)
        return jnp.zeros((EP, w.shape[1]), jnp.float32).at[:E, :].set(w)

    # LSTM weights stored pre-transposed: (in, 4H) instead of (4H, in); input
    # projections of both directions packed side-by-side -> (EP, 8H).
    w_ih_f = pad_in_rows(u(ks[1], (E, 4 * H), scale_lstm))
    w_ih_r = pad_in_rows(u(ks[5], (E, 4 * H), scale_lstm))
    b_f = u(ks[3], (1, 4 * H), scale_lstm) + u(ks[4], (1, 4 * H), scale_lstm)
    b_r = u(ks[7], (1, 4 * H), scale_lstm) + u(ks[8], (1, 4 * H), scale_lstm)

    # fc1: Linear(2H, 64) split into the h_fwd / h_bwd halves and padded to 128
    # cols; fc2: Linear(64, 2) padded to (128, 128). Zero padding keeps the math
    # identical.
    w1 = u(ks[9], (2 * H, FC1_SIZE), 1.0 / jnp.sqrt(2 * H))
    b1 = u(ks[10], (1, FC1_SIZE), 1.0 / jnp.sqrt(2 * H))
    w2 = u(ks[11], (FC1_SIZE, OUTPUT_SIZE), 1.0 / jnp.sqrt(FC1_SIZE))
    b2 = u(ks[12], (1, OUTPUT_SIZE), 1.0 / jnp.sqrt(FC1_SIZE))

    def pad_cols(w, cols):
        return jnp.zeros((w.shape[0], cols), jnp.float32).at[:, :w.shape[1]].set(w)

    params = {
        "embedding": embedding,
        "w_ih": jnp.concatenate([w_ih_f, w_ih_r], axis=1),       # (EP, 8H)
        "b_ih": jnp.concatenate([b_f, b_r], axis=1),             # (1, 8H)
        "w_hh_f": u(ks[2], (H, 4 * H), scale_lstm),
        "w_hh_r": u(ks[6], (H, 4 * H), scale_lstm),
        "w1_f": pad_cols(w1[:H, :], FC1_PAD),                    # (H, FC1_PAD)
        "w1_r": pad_cols(w1[H:, :], FC1_PAD),                    # (H, FC1_PAD)
        "b1": pad_cols(b1, FC1_PAD),                             # (1, FC1_PAD)
        "w2": jnp.zeros((FC1_PAD, OUT_PAD), jnp.float32)
                 .at[:FC1_SIZE, :OUTPUT_SIZE].set(w2),
        "b2": pad_cols(b2, OUT_PAD),                             # (1, OUT_PAD)
    }
    return params


if __name__ == "__main__":
    key = jax.random.PRNGKey(0)
    k_tok, k_par = jax.random.split(key)

    VOCAB = 50
    B, T = 16, 8  # small batch / sequence length; B multiple of 8 (two grid blocks)

    tokens = jax.random.randint(k_tok, (B, T), 0, VOCAB, dtype=jnp.int32)
    params = init_params(k_par, VOCAB)

    out = fake_review_classifier_forward(tokens, params)
    out = jax.block_until_ready(out)

    assert out.shape == (B, OUTPUT_SIZE) and out.dtype == jnp.float32
    print("KERNEL_OK")
</pallas_src>

<mosaic_0001>
module attributes {stable_mosaic.version = 11 : i64} {
  func.func @_fused_bilstm_head_kernel(%arg0: i32, %arg1: memref<8x8x128xf32, #tpu.memory_space<vmem>>, %arg2: memref<128x1024xf32, #tpu.memory_space<vmem>>, %arg3: memref<1x1024xf32, #tpu.memory_space<vmem>>, %arg4: memref<128x512xf32, #tpu.memory_space<vmem>>, %arg5: memref<128x512xf32, #tpu.memory_space<vmem>>, %arg6: memref<128x128xf32, #tpu.memory_space<vmem>>, %arg7: memref<128x128xf32, #tpu.memory_space<vmem>>, %arg8: memref<1x128xf32, #tpu.memory_space<vmem>>, %arg9: memref<128x128xf32, #tpu.memory_space<vmem>>, %arg10: memref<1x128xf32, #tpu.memory_space<vmem>>, %arg11: memref<8x128xf32, #tpu.memory_space<vmem>>, %arg12: memref<64x1024xf32, #tpu.memory_space<vmem>>) attributes {dimension_semantics = [#tpu.dimension_semantics<parallel>], iteration_bounds = array<i64: 2>, scalar_prefetch = 0 : i64, scratch_operands = 1 : i64, tpu.core_type = #tpu.core_type<tc>, window_params = [{transform_indices = @transform_0, window_bounds = array<i64: 8, 8, 128>}, {pipeline_mode = #tpu.pipeline_mode<synchronous>, transform_indices = @transform_1, window_bounds = array<i64: 128, 1024>}, {pipeline_mode = #tpu.pipeline_mode<synchronous>, transform_indices = @transform_2, window_bounds = array<i64: 1, 1024>}, {pipeline_mode = #tpu.pipeline_mode<synchronous>, transform_indices = @transform_3, window_bounds = array<i64: 128, 512>}, {pipeline_mode = #tpu.pipeline_mode<synchronous>, transform_indices = @transform_4, window_bounds = array<i64: 128, 512>}, {pipeline_mode = #tpu.pipeline_mode<synchronous>, transform_indices = @transform_5, window_bounds = array<i64: 128, 128>}, {pipeline_mode = #tpu.pipeline_mode<synchronous>, transform_indices = @transform_6, window_bounds = array<i64: 128, 128>}, {pipeline_mode = #tpu.pipeline_mode<synchronous>, transform_indices = @transform_7, window_bounds = array<i64: 1, 128>}, {pipeline_mode = #tpu.pipeline_mode<synchronous>, transform_indices = @transform_8, window_bounds = array<i64: 128, 128>}, {pipeline_mode = #tpu.pipeline_mode<synchronous>, transform_indices = @transform_9, window_bounds = array<i64: 1, 128>}, {transform_indices = @transform_10, window_bounds = array<i64: 8, 128>}]} {
    %c0 = arith.constant 0 : index
    %c0_0 = arith.constant 0 : index
    %c0_1 = arith.constant 0 : index
    %0 = vector.load %arg1[%c0, %c0_0, %c0_1] : memref<8x8x128xf32, #tpu.memory_space<vmem>>, vector<8x8x128xf32>
    %1 = vector.shape_cast %0 : vector<8x8x128xf32> to vector<64x128xf32>
    %c0_2 = arith.constant 0 : index
    %c0_3 = arith.constant 0 : index
    %2 = vector.load %arg2[%c0_2, %c0_3] : memref<128x1024xf32, #tpu.memory_space<vmem>>, vector<128x1024xf32>
    %cst = arith.constant dense<0.000000e+00> : vector<64x1024xf32>
    %3 = tpu.matmul %1, %2, %cst {dimension_numbers = #tpu.dot_dimension_numbers<[1], [0], [0], [1], [0, 0, 1, 1], [], []>} : vector<64x128xf32>, vector<128x1024xf32>, vector<64x1024xf32> -> vector<64x1024xf32>
    %c0_4 = arith.constant 0 : index
    %c0_5 = arith.constant 0 : index
    %4 = vector.load %arg3[%c0_4, %c0_5] : memref<1x1024xf32, #tpu.memory_space<vmem>>, vector<1x1024xf32>
    %5 = vector.broadcast %4 : vector<1x1024xf32> to vector<64x1024xf32>
    %6 = arith.addf %3, %5 : vector<64x1024xf32>
    %c0_6 = arith.constant 0 : index
    %c0_7 = arith.constant 0 : index
    %7 = vector.load %arg12[%c0_6, %c0_7] : memref<64x1024xf32, #tpu.memory_space<vmem>>, vector<64x1024xf32>
    tpu.vector_store %arg12[%c0_6, %c0_7], %6 {strides = array<i32>} : memref<64x1024xf32, #tpu.memory_space<vmem>>, vector<64x1024xf32>,
    %cst_8 = arith.constant 0.000000e+00 : f32
    %8 = vector.broadcast %cst_8 : f32 to vector<8x128xf32>
    %c0_9 = arith.constant 0 : index
    %c0_10 = arith.constant 0 : index
    %9 = vector.load %arg12[%c0_9, %c0_10] : memref<64x1024xf32, #tpu.memory_space<vmem>>, vector<8x1024xf32>
    %c56 = arith.constant 56 : index
    %c0_11 = arith.constant 0 : index
    %10 = vector.load %arg12[%c56, %c0_11] : memref<64x1024xf32, #tpu.memory_space<vmem>>, vector<8x1024xf32>
    %11 = vector.extract_strided_slice %9 {offsets = [0, 0], sizes = [8, 512], strides = [1, 1]} : vector<8x1024xf32> to vector<8x512xf32>
    %c0_12 = arith.constant 0 : index
    %c0_13 = arith.constant 0 : index
    %12 = vector.load %arg4[%c0_12, %c0_13] : memref<128x512xf32, #tpu.memory_space<vmem>>, vector<128x512xf32>
    %cst_14 = arith.constant dense<0.000000e+00> : vector<8x512xf32>
    %13 = tpu.matmul %8, %12, %cst_14 {dimension_numbers = #tpu.dot_dimension_numbers<[1], [0], [0], [1], [0, 0, 1, 1], [], []>} : vector<8x128xf32>, vector<128x512xf32>, vector<8x512xf32> -> vector<8x512xf32>
    %14 = arith.addf %11, %13 : vector<8x512xf32>
    %15 = vector.extract_strided_slice %10 {offsets = [0, 512], sizes = [8, 512], strides = [1, 1]} : vector<8x1024xf32> to vector<8x512xf32>
    %c0_15 = arith.constant 0 : index
    %c0_16 = arith.constant 0 : index
    %16 = vector.load %arg5[%c0_15, %c0_16] : memref<128x512xf32, #tpu.memory_space<vmem>>, vector<128x512xf32>
    %cst_17 = arith.constant dense<0.000000e+00> : vector<8x512xf32>
    %17 = tpu.matmul %8, %16, %cst_17 {dimension_numbers = #tpu.dot_dimension_numbers<[1], [0], [0], [1], [0, 0, 1, 1], [], []>} : vector<8x128xf32>, vector<128x512xf32>, vector<8x512xf32> -> vector<8x512xf32>
    %18 = arith.addf %15, %17 : vector<8x512xf32>
    %19 = vector.extract_strided_slice %14 {offsets = [0, 0], sizes = [8, 128], strides = [1, 1]} : vector<8x512xf32> to vector<8x128xf32>
    %cst_18 = arith.constant 5.000000e-01 : f32
    %20 = vector.broadcast %cst_18 : f32 to vector<8x128xf32>
    %21 = arith.mulf %20, %19 : vector<8x128xf32>
    %22 = math.tanh %21 : vector<8x128xf32>
    %cst_19 = arith.constant 1.000000e+00 : f32
    %23 = vector.broadcast %cst_19 : f32 to vector<8x128xf32>
    %24 = arith.addf %23, %22 : vector<8x128xf32>
    %cst_20 = arith.constant 5.000000e-01 : f32
    %25 = vector.broadcast %cst_20 : f32 to vector<8x128xf32>
    %26 = arith.mulf %25, %24 : vector<8x128xf32>
    %27 = vector.extract_strided_slice %14 {offsets = [0, 128], sizes = [8, 128], strides = [1, 1]} : vector<8x512xf32> to vector<8x128xf32>
    %cst_21 = arith.constant 5.000000e-01 : f32
    %28 = vector.broadcast %cst_21 : f32 to vector<8x128xf32>
    %29 = arith.mulf %28, %27 : vector<8x128xf32>
    %30 = math.tanh %29 : vector<8x128xf32>
    %cst_22 = arith.constant 1.000000e+00 : f32
    %31 = vector.broadcast %cst_22 : f32 to vector<8x128xf32>
    %32 = arith.addf %31, %30 : vector<8x128xf32>
    %cst_23 = arith.constant 5.000000e-01 : f32
    %33 = vector.broadcast %cst_23 : f32 to vector<8x128xf32>
    %34 = arith.mulf %33, %32 : vector<8x128xf32>
    %35 = vector.extract_strided_slice %14 {offsets = [0, 256], sizes = [8, 128], strides = [1, 1]} : vector<8x512xf32> to vector<8x128xf32>
    %36 = math.tanh %35 : vector<8x128xf32>
    %37 = vector.extract_strided_slice %14 {offsets = [0, 384], sizes = [8, 128], strides = [1, 1]} : vector<8x512xf32> to vector<8x128xf32>
    %cst_24 = arith.constant 5.000000e-01 : f32
    %38 = vector.broadcast %cst_24 : f32 to vector<8x128xf32>
    %39 = arith.mulf %38, %37 : vector<8x128xf32>
    %40 = math.tanh %39 : vector<8x128xf32>
    %cst_25 = arith.constant 1.000000e+00 : f32
    %41 = vector.broadcast %cst_25 : f32 to vector<8x128xf32>
    %42 = arith.addf %41, %40 : vector<8x128xf32>
    %cst_26 = arith.constant 5.000000e-01 : f32
    %43 = vector.broadcast %cst_26 : f32 to vector<8x128xf32>
    %44 = arith.mulf %43, %42 : vector<8x128xf32>
    %45 = arith.mulf %34, %8 : vector<8x128xf32>
    %46 = arith.mulf %26, %36 : vector<8x128xf32>
    %47 = arith.addf %45, %46 : vector<8x128xf32>
    %48 = math.tanh %47 : vector<8x128xf32>
    %49 = arith.mulf %44, %48 : vector<8x128xf32>
    %50 = vector.extract_strided_slice %18 {offsets = [0, 0], sizes = [8, 128], strides = [1, 1]} : vector<8x512xf32> to vector<8x128xf32>
    %cst_27 = arith.constant 5.000000e-01 : f32
    %51 = vector.broadcast %cst_27 : f32 to vector<8x128xf32>
    %52 = arith.mulf %51, %50 : vector<8x128xf32>
    %53 = math.tanh %52 : vector<8x128xf32>
    %cst_28 = arith.constant 1.000000e+00 : f32
    %54 = vector.broadcast %cst_28 : f32 to vector<8x128xf32>
    %55 = arith.addf %54, %53 : vector<8x128xf32>
    %cst_29 = arith.constant 5.000000e-01 : f32
    %56 = vector.broadcast %cst_29 : f32 to vector<8x128xf32>
    %57 = arith.mulf %56, %55 : vector<8x128xf32>
    %58 = vector.extract_strided_slice %18 {offsets = [0, 128], sizes = [8, 128], strides = [1, 1]} : vector<8x512xf32> to vector<8x128xf32>
    %cst_30 = arith.constant 5.000000e-01 : f32
    %59 = vector.broadcast %cst_30 : f32 to vector<8x128xf32>
    %60 = arith.mulf %59, %58 : vector<8x128xf32>
    %61 = math.tanh %60 : vector<8x128xf32>
    %cst_31 = arith.constant 1.000000e+00 : f32
    %62 = vector.broadcast %cst_31 : f32 to vector<8x128xf32>
    %63 = arith.addf %62, %61 : vector<8x128xf32>
    %cst_32 = arith.constant 5.000000e-01 : f32
    %64 = vector.broadcast %cst_32 : f32 to vector<8x128xf32>
    %65 = arith.mulf %64, %63 : vector<8x128xf32>
    %66 = vector.extract_strided_slice %18 {offsets = [0, 256], sizes = [8, 128], strides = [1, 1]} : vector<8x512xf32> to vector<8x128xf32>
    %67 = math.tanh %66 : vector<8x128xf32>
    %68 = vector.extract_strided_slice %18 {offsets = [0, 384], sizes = [8, 128], strides = [1, 1]} : vector<8x512xf32> to vector<8x128xf32>
    %cst_33 = arith.constant 5.000000e-01 : f32
    %69 = vector.broadcast %cst_33 : f32 to vector<8x128xf32>
    %70 = arith.mulf %69, %68 : vector<8x128xf32>
    %71 = math.tanh %70 : vector<8x128xf32>
    %cst_34 = arith.constant 1.000000e+00 : f32
    %72 = vector.broadcast %cst_34 : f32 to vector<8x128xf32>
    %73 = arith.addf %72, %71 : vector<8x128xf32>
    %cst_35 = arith.constant 5.000000e-01 : f32
    %74 = vector.broadcast %cst_35 : f32 to vector<8x128xf32>
    %75 = arith.mulf %74, %73 : vector<8x128xf32>
    %76 = arith.mulf %65, %8 : vector<8x128xf32>
    %77 = arith.mulf %57, %67 : vector<8x128xf32>
    %78 = arith.addf %76, %77 : vector<8x128xf32>
    %79 = math.tanh %78 : vector<8x128xf32>
    %80 = arith.mulf %75, %79 : vector<8x128xf32>
    %c8 = arith.constant 8 : index
    %c0_36 = arith.constant 0 : index
    %81 = vector.load %arg12[%c8, %c0_36] : memref<64x1024xf32, #tpu.memory_space<vmem>>, vector<8x1024xf32>
    %c48 = arith.constant 48 : index
    %c0_37 = arith.constant 0 : index
    %82 = vector.load %arg12[%c48, %c0_37] : memref<64x1024xf32, #tpu.memory_space<vmem>>, vector<8x1024xf32>
    %83 = vector.extract_strided_slice %81 {offsets = [0, 0], sizes = [8, 512], strides = [1, 1]} : vector<8x1024xf32> to vector<8x512xf32>
    %c0_38 = arith.constant 0 : index
    %c0_39 = arith.constant 0 : index
    %84 = vector.load %arg4[%c0_38, %c0_39] : memref<128x512xf32, #tpu.memory_space<vmem>>, vector<128x512xf32>
    %cst_40 = arith.constant dense<0.000000e+00> : vector<8x512xf32>
    %85 = tpu.matmul %49, %84, %cst_40 {dimension_numbers = #tpu.dot_dimension_numbers<[1], [0], [0], [1], [0, 0, 1, 1], [], []>} : vector<8x128xf32>, vector<128x512xf32>, vector<8x512xf32> -> vector<8x512xf32>
    %86 = arith.addf %83, %85 : vector<8x512xf32>
    %87 = vector.extract_strided_slice %82 {offsets = [0, 512], sizes = [8, 512], strides = [1, 1]} : vector<8x1024xf32> to vector<8x512xf32>
    %c0_41 = arith.constant 0 : index
    %c0_42 = arith.constant 0 : index
    %88 = vector.load %arg5[%c0_41, %c0_42] : memref<128x512xf32, #tpu.memory_space<vmem>>, vector<128x512xf32>
    %cst_43 = arith.constant dense<0.000000e+00> : vector<8x512xf32>
    %89 = tpu.matmul %80, %88, %cst_43 {dimension_numbers = #tpu.dot_dimension_numbers<[1], [0], [0], [1], [0, 0, 1, 1], [], []>} : vector<8x128xf32>, vector<128x512xf32>, vector<8x512xf32> -> vector<8x512xf32>
    %90 = arith.addf %87, %89 : vector<8x512xf32>
    %91 = vector.extract_strided_slice %86 {offsets = [0, 0], sizes = [8, 128], strides = [1, 1]} : vector<8x512xf32> to vector<8x128xf32>
    %cst_44 = arith.constant 5.000000e-01 : f32
    %92 = vector.broadcast %cst_44 : f32 to vector<8x128xf32>
    %93 = arith.mulf %92, %91 : vector<8x128xf32>
    %94 = math.tanh %93 : vector<8x128xf32>
    %cst_45 = arith.constant 1.000000e+00 : f32
    %95 = vector.broadcast %cst_45 : f32 to vector<8x128xf32>
    %96 = arith.addf %95, %94 : vector<8x128xf32>
    %cst_46 = arith.constant 5.000000e-01 : f32
    %97 = vector.broadcast %cst_46 : f32 to vector<8x128xf32>
    %98 = arith.mulf %97, %96 : vector<8x128xf32>
    %99 = vector.extract_strided_slice %86 {offsets = [0, 128], sizes = [8, 128], strides = [1, 1]} : vector<8x512xf32> to vector<8x128xf32>
    %cst_47 = arith.constant 5.000000e-01 : f32
    %100 = vector.broadcast %cst_47 : f32 to vector<8x128xf32>
    %101 = arith.mulf %100, %99 : vector<8x128xf32>
    %102 = math.tanh %101 : vector<8x128xf32>
    %cst_48 = arith.constant 1.000000e+00 : f32
    %103 = vector.broadcast %cst_48 : f32 to vector<8x128xf32>
    %104 = arith.addf %103, %102 : vector<8x128xf32>
    %cst_49 = arith.constant 5.000000e-01 : f32
    %105 = vector.broadcast %cst_49 : f32 to vector<8x128xf32>
    %106 = arith.mulf %105, %104 : vector<8x128xf32>
    %107 = vector.extract_strided_slice %86 {offsets = [0, 256], sizes = [8, 128], strides = [1, 1]} : vector<8x512xf32> to vector<8x128xf32>
    %108 = math.tanh %107 : vector<8x128xf32>
    %109 = vector.extract_strided_slice %86 {offsets = [0, 384], sizes = [8, 128], strides = [1, 1]} : vector<8x512xf32> to vector<8x128xf32>
    %cst_50 = arith.constant 5.000000e-01 : f32
    %110 = vector.broadcast %cst_50 : f32 to vector<8x128xf32>
    %111 = arith.mulf %110, %109 : vector<8x128xf32>
    %112 = math.tanh %111 : vector<8x128xf32>
    %cst_51 = arith.constant 1.000000e+00 : f32
    %113 = vector.broadcast %cst_51 : f32 to vector<8x128xf32>
    %114 = arith.addf %113, %112 : vector<8x128xf32>
    %cst_52 = arith.constant 5.000000e-01 : f32
    %115 = vector.broadcast %cst_52 : f32 to vector<8x128xf32>
    %116 = arith.mulf %115, %114 : vector<8x128xf32>
    %117 = arith.mulf %106, %47 : vector<8x128xf32>
    %118 = arith.mulf %98, %108 : vector<8x128xf32>
    %119 = arith.addf %117, %118 : vector<8x128xf32>
    %120 = math.tanh %119 : vector<8x128xf32>
    %121 = arith.mulf %116, %120 : vector<8x128xf32>
    %122 = vector.extract_strided_slice %90 {offsets = [0, 0], sizes = [8, 128], strides = [1, 1]} : vector<8x512xf32> to vector<8x128xf32>
    %cst_53 = arith.constant 5.000000e-01 : f32
    %123 = vector.broadcast %cst_53 : f32 to vector<8x128xf32>
    %124 = arith.mulf %123, %122 : vector<8x128xf32>
    %125 = math.tanh %124 : vector<8x128xf32>
    %cst_54 = arith.constant 1.000000e+00 : f32
    %126 = vector.broadcast %cst_54 : f32 to vector<8x128xf32>
    %127 = arith.addf %126, %125 : vector<8x128xf32>
    %cst_55 = arith.constant 5.000000e-01 : f32
    %128 = vector.broadcast %cst_55 : f32 to vector<8x128xf32>
    %129 = arith.mulf %128, %127 : vector<8x128xf32>
    %130 = vector.extract_strided_slice %90 {offsets = [0, 128], sizes = [8, 128], strides = [1, 1]} : vector<8x512xf32> to vector<8x128xf32>
    %cst_56 = arith.constant 5.000000e-01 : f32
    %131 = vector.broadcast %cst_56 : f32 to vector<8x128xf32>
    %132 = arith.mulf %131, %130 : vector<8x128xf32>
    %133 = math.tanh %132 : vector<8x128xf32>
    %cst_57 = arith.constant 1.000000e+00 : f32
    %134 = vector.broadcast %cst_57 : f32 to vector<8x128xf32>
    %135 = arith.addf %134, %133 : vector<8x128xf32>
    %cst_58 = arith.constant 5.000000e-01 : f32
    %136 = vector.broadcast %cst_58 : f32 to vector<8x128xf32>
    %137 = arith.mulf %136, %135 : vector<8x128xf32>
    %138 = vector.extract_strided_slice %90 {offsets = [0, 256], sizes = [8, 128], strides = [1, 1]} : vector<8x512xf32> to vector<8x128xf32>
    %139 = math.tanh %138 : vector<8x128xf32>
    %140 = vector.extract_strided_slice %90 {offsets = [0, 384], sizes = [8, 128], strides = [1, 1]} : vector<8x512xf32> to vector<8x128xf32>
    %cst_59 = arith.constant 5.000000e-01 : f32
    %141 = vector.broadcast %cst_59 : f32 to vector<8x128xf32>
    %142 = arith.mulf %141, %140 : vector<8x128xf32>
    %143 = math.tanh %142 : vector<8x128xf32>
    %cst_60 = arith.constant 1.000000e+00 : f32
    %144 = vector.broadcast %cst_60 : f32 to vector<8x128xf32>
    %145 = arith.addf %144, %143 : vector<8x128xf32>
    %cst_61 = arith.constant 5.000000e-01 : f32
    %146 = vector.broadcast %cst_61 : f32 to vector<8x128xf32>
    %147 = arith.mulf %146, %145 : vector<8x128xf32>
    %148 = arith.mulf %137, %78 : vector<8x128xf32>
    %149 = arith.mulf %129, %139 : vector<8x128xf32>
    %150 = arith.addf %148, %149 : vector<8x128xf32>
    %151 = math.tanh %150 : vector<8x128xf32>
    %152 = arith.mulf %147, %151 : vector<8x128xf32>
    %c16 = arith.constant 16 : index
    %c0_62 = arith.constant 0 : index
    %153 = vector.load %arg12[%c16, %c0_62] : memref<64x1024xf32, #tpu.memory_space<vmem>>, vector<8x1024xf32>
    %c40 = arith.constant 40 : index
    %c0_63 = arith.constant 0 : index
    %154 = vector.load %arg12[%c40, %c0_63] : memref<64x1024xf32, #tpu.memory_space<vmem>>, vector<8x1024xf32>
    %155 = vector.extract_strided_slice %153 {offsets = [0, 0], sizes = [8, 512], strides = [1, 1]} : vector<8x1024xf32> to vector<8x512xf32>
    %c0_64 = arith.constant 0 : index
    %c0_65 = arith.constant 0 : index
    %156 = vector.load %arg4[%c0_64, %c0_65] : memref<128x512xf32, #tpu.memory_space<vmem>>, vector<128x512xf32>
    %cst_66 = arith.constant dense<0.000000e+00> : vector<8x512xf32>
    %157 = tpu.matmul %121, %156, %cst_66 {dimension_numbers = #tpu.dot_dimension_numbers<[1], [0], [0], [1], [0, 0, 1, 1], [], []>} : vector<8x128xf32>, vector<128x512xf32>, vector<8x512xf32> -> vector<8x512xf32>
    %158 = arith.addf %155, %157 : vector<8x512xf32>
    %159 = vector.extract_strided_slice %154 {offsets = [0, 512], sizes = [8, 512], strides = [1, 1]} : vector<8x1024xf32> to vector<8x512xf32>
    %c0_67 = arith.constant 0 : index
    %c0_68 = arith.constant 0 : index
    %160 = vector.load %arg5[%c0_67, %c0_68] : memref<128x512xf32, #tpu.memory_space<vmem>>, vector<128x512xf32>
    %cst_69 = arith.constant dense<0.000000e+00> : vector<8x512xf32>
    %161 = tpu.matmul %152, %160, %cst_69 {dimension_numbers = #tpu.dot_dimension_numbers<[1], [0], [0], [1], [0, 0, 1, 1], [], []>} : vector<8x128xf32>, vector<128x512xf32>, vector<8x512xf32> -> vector<8x512xf32>
    %162 = arith.addf %159, %161 : vector<8x512xf32>
    %163 = vector.extract_strided_slice %158 {offsets = [0, 0], sizes = [8, 128], strides = [1, 1]} : vector<8x512xf32> to vector<8x128xf32>
    %cst_70 = arith.constant 5.000000e-01 : f32
    %164 = vector.broadcast %cst_70 : f32 to vector<8x128xf32>
    %165 = arith.mulf %164, %163 : vector<8x128xf32>
    %166 = math.tanh %165 : vector<8x128xf32>
    %cst_71 = arith.constant 1.000000e+00 : f32
    %167 = vector.broadcast %cst_71 : f32 to vector<8x128xf32>
    %168 = arith.addf %167, %166 : vector<8x128xf32>
    %cst_72 = arith.constant 5.000000e-01 : f32
    %169 = vector.broadcast %cst_72 : f32 to vector<8x128xf32>
    %170 = arith.mulf %169, %168 : vector<8x128xf32>
    %171 = vector.extract_strided_slice %158 {offsets = [0, 128], sizes = [8, 128], strides = [1, 1]} : vector<8x512xf32> to vector<8x128xf32>
    %cst_73 = arith.constant 5.000000e-01 : f32
    %172 = vector.broadcast %cst_73 : f32 to vector<8x128xf32>
    %173 = arith.mulf %172, %171 : vector<8x128xf32>
    %174 = math.tanh %173 : vector<8x128xf32>
    %cst_74 = arith.constant 1.000000e+00 : f32
    %175 = vector.broadcast %cst_74 : f32 to vector<8x128xf32>
    %176 = arith.addf %175, %174 : vector<8x128xf32>
    %cst_75 = arith.constant 5.000000e-01 : f32
    %177 = vector.broadcast %cst_75 : f32 to vector<8x128xf32>
    %178 = arith.mulf %177, %176 : vector<8x128xf32>
    %179 = vector.extract_strided_slice %158 {offsets = [0, 256], sizes = [8, 128], strides = [1, 1]} : vector<8x512xf32> to vector<8x128xf32>
    %180 = math.tanh %179 : vector<8x128xf32>
    %181 = vector.extract_strided_slice %158 {offsets = [0, 384], sizes = [8, 128], strides = [1, 1]} : vector<8x512xf32> to vector<8x128xf32>
    %cst_76 = arith.constant 5.000000e-01 : f32
    %182 = vector.broadcast %cst_76 : f32 to vector<8x128xf32>
    %183 = arith.mulf %182, %181 : vector<8x128xf32>
    %184 = math.tanh %183 : vector<8x128xf32>
    %cst_77 = arith.constant 1.000000e+00 : f32
    %185 = vector.broadcast %cst_77 : f32 to vector<8x128xf32>
    %186 = arith.addf %185, %184 : vector<8x128xf32>
    %cst_78 = arith.constant 5.000000e-01 : f32
    %187 = vector.broadcast %cst_78 : f32 to vector<8x128xf32>
    %188 = arith.mulf %187, %186 : vector<8x128xf32>
    %189 = arith.mulf %178, %119 : vector<8x128xf32>
    %190 = arith.mulf %170, %180 : vector<8x128xf32>
    %191 = arith.addf %189, %190 : vector<8x128xf32>
    %192 = math.tanh %191 : vector<8x128xf32>
    %193 = arith.mulf %188, %192 : vector<8x128xf32>
    %194 = vector.extract_strided_slice %162 {offsets = [0, 0], sizes = [8, 128], strides = [1, 1]} : vector<8x512xf32> to vector<8x128xf32>
    %cst_79 = arith.constant 5.000000e-01 : f32
    %195 = vector.broadcast %cst_79 : f32 to vector<8x128xf32>
    %196 = arith.mulf %195, %194 : vector<8x128xf32>
    %197 = math.tanh %196 : vector<8x128xf32>
    %cst_80 = arith.constant 1.000000e+00 : f32
    %198 = vector.broadcast %cst_80 : f32 to vector<8x128xf32>
    %199 = arith.addf %198, %197 : vector<8x128xf32>
    %cst_81 = arith.constant 5.000000e-01 : f32
    %200 = vector.broadcast %cst_81 : f32 to vector<8x128xf32>
    %201 = arith.mulf %200, %199 : vector<8x128xf32>
    %202 = vector.extract_strided_slice %162 {offsets = [0, 128], sizes = [8, 128], strides = [1, 1]} : vector<8x512xf32> to vector<8x128xf32>
    %cst_82 = arith.constant 5.000000e-01 : f32
    %203 = vector.broadcast %cst_82 : f32 to vector<8x128xf32>
    %204 = arith.mulf %203, %202 : vector<8x128xf32>
    %205 = math.tanh %204 : vector<8x128xf32>
    %cst_83 = arith.constant 1.000000e+00 : f32
    %206 = vector.broadcast %cst_83 : f32 to vector<8x128xf32>
    %207 = arith.addf %206, %205 : vector<8x128xf32>
    %cst_84 = arith.constant 5.000000e-01 : f32
    %208 = vector.broadcast %cst_84 : f32 to vector<8x128xf32>
    %209 = arith.mulf %208, %207 : vector<8x128xf32>
    %210 = vector.extract_strided_slice %162 {offsets = [0, 256], sizes = [8, 128], strides = [1, 1]} : vector<8x512xf32> to vector<8x128xf32>
    %211 = math.tanh %210 : vector<8x128xf32>
    %212 = vector.extract_strided_slice %162 {offsets = [0, 384], sizes = [8, 128], strides = [1, 1]} : vector<8x512xf32> to vector<8x128xf32>
    %cst_85 = arith.constant 5.000000e-01 : f32
    %213 = vector.broadcast %cst_85 : f32 to vector<8x128xf32>
    %214 = arith.mulf %213, %212 : vector<8x128xf32>
    %215 = math.tanh %214 : vector<8x128xf32>
    %cst_86 = arith.constant 1.000000e+00 : f32
    %216 = vector.broadcast %cst_86 : f32 to vector<8x128xf32>
    %217 = arith.addf %216, %215 : vector<8x128xf32>
    %cst_87 = arith.constant 5.000000e-01 : f32
    %218 = vector.broadcast %cst_87 : f32 to vector<8x128xf32>
    %219 = arith.mulf %218, %217 : vector<8x128xf32>
    %220 = arith.mulf %209, %150 : vector<8x128xf32>
    %221 = arith.mulf %201, %211 : vector<8x128xf32>
    %222 = arith.addf %220, %221 : vector<8x128xf32>
    %223 = math.tanh %222 : vector<8x128xf32>
    %224 = arith.mulf %219, %223 : vector<8x128xf32>
    %c24 = arith.constant 24 : index
    %c0_88 = arith.constant 0 : index
    %225 = vector.load %arg12[%c24, %c0_88] : memref<64x1024xf32, #tpu.memory_space<vmem>>, vector<8x1024xf32>
    %c32 = arith.constant 32 : index
    %c0_89 = arith.constant 0 : index
    %226 = vector.load %arg12[%c32, %c0_89] : memref<64x1024xf32, #tpu.memory_space<vmem>>, vector<8x1024xf32>
    %227 = vector.extract_strided_slice %225 {offsets = [0, 0], sizes = [8, 512], strides = [1, 1]} : vector<8x1024xf32> to vector<8x512xf32>
    %c0_90 = arith.constant 0 : index
    %c0_91 = arith.constant 0 : index
    %228 = vector.load %arg4[%c0_90, %c0_91] : memref<128x512xf32, #tpu.memory_space<vmem>>, vector<128x512xf32>
    %cst_92 = arith.constant dense<0.000000e+00> : vector<8x512xf32>
    %229 = tpu.matmul %193, %228, %cst_92 {dimension_numbers = #tpu.dot_dimension_numbers<[1], [0], [0], [1], [0, 0, 1, 1], [], []>} : vector<8x128xf32>, vector<128x512xf32>, vector<8x512xf32> -> vector<8x512xf32>
    %230 = arith.addf %227, %229 : vector<8x512xf32>
    %231 = vector.extract_strided_slice %226 {offsets = [0, 512], sizes = [8, 512], strides = [1, 1]} : vector<8x1024xf32> to vector<8x512xf32>
    %c0_93 = arith.constant 0 : index
    %c0_94 = arith.constant 0 : index
    %232 = vector.load %arg5[%c0_93, %c0_94] : memref<128x512xf32, #tpu.memory_space<vmem>>, vector<128x512xf32>
    %cst_95 = arith.constant dense<0.000000e+00> : vector<8x512xf32>
    %233 = tpu.matmul %224, %232, %cst_95 {dimension_numbers = #tpu.dot_dimension_numbers<[1], [0], [0], [1], [0, 0, 1, 1], [], []>} : vector<8x128xf32>, vector<128x512xf32>, vector<8x512xf32> -> vector<8x512xf32>
    %234 = arith.addf %231, %233 : vector<8x512xf32>
    %235 = vector.extract_strided_slice %230 {offsets = [0, 0], sizes = [8, 128], strides = [1, 1]} : vector<8x512xf32> to vector<8x128xf32>
    %cst_96 = arith.constant 5.000000e-01 : f32
    %236 = vector.broadcast %cst_96 : f32 to vector<8x128xf32>
    %237 = arith.mulf %236, %235 : vector<8x128xf32>
    %238 = math.tanh %237 : vector<8x128xf32>
    %cst_97 = arith.constant 1.000000e+00 : f32
    %239 = vector.broadcast %cst_97 : f32 to vector<8x128xf32>
    %240 = arith.addf %239, %238 : vector<8x128xf32>
    %cst_98 = arith.constant 5.000000e-01 : f32
    %241 = vector.broadcast %cst_98 : f32 to vector<8x128xf32>
    %242 = arith.mulf %241, %240 : vector<8x128xf32>
    %243 = vector.extract_strided_slice %230 {offsets = [0, 128], sizes = [8, 128], strides = [1, 1]} : vector<8x512xf32> to vector<8x128xf32>
    %cst_99 = arith.constant 5.000000e-01 : f32
    %244 = vector.broadcast %cst_99 : f32 to vector<8x128xf32>
    %245 = arith.mulf %244, %243 : vector<8x128xf32>
    %246 = math.tanh %245 : vector<8x128xf32>
    %cst_100 = arith.constant 1.000000e+00 : f32
    %247 = vector.broadcast %cst_100 : f32 to vector<8x128xf32>
    %248 = arith.addf %247, %246 : vector<8x128xf32>
    %cst_101 = arith.constant 5.000000e-01 : f32
    %249 = vector.broadcast %cst_101 : f32 to vector<8x128xf32>
    %250 = arith.mulf %249, %248 : vector<8x128xf32>
    %251 = vector.extract_strided_slice %230 {offsets = [0, 256], sizes = [8, 128], strides = [1, 1]} : vector<8x512xf32> to vector<8x128xf32>
    %252 = math.tanh %251 : vector<8x128xf32>
    %253 = vector.extract_strided_slice %230 {offsets = [0, 384], sizes = [8, 128], strides = [1, 1]} : vector<8x512xf32> to vector<8x128xf32>
    %cst_102 = arith.constant 5.000000e-01 : f32
    %254 = vector.broadcast %cst_102 : f32 to vector<8x128xf32>
    %255 = arith.mulf %254, %253 : vector<8x128xf32>
    %256 = math.tanh %255 : vector<8x128xf32>
    %cst_103 = arith.constant 1.000000e+00 : f32
    %257 = vector.broadcast %cst_103 : f32 to vector<8x128xf32>
    %258 = arith.addf %257, %256 : vector<8x128xf32>
    %cst_104 = arith.constant 5.000000e-01 : f32
    %259 = vector.broadcast %cst_104 : f32 to vector<8x128xf32>
    %260 = arith.mulf %259, %258 : vector<8x128xf32>
    %261 = arith.mulf %250, %191 : vector<8x128xf32>
    %262 = arith.mulf %242, %252 : vector<8x128xf32>
    %263 = arith.addf %261, %262 : vector<8x128xf32>
    %264 = math.tanh %263 : vector<8x128xf32>
    %265 = arith.mulf %260, %264 : vector<8x128xf32>
    %266 = vector.extract_strided_slice %234 {offsets = [0, 0], sizes = [8, 128], strides = [1, 1]} : vector<8x512xf32> to vector<8x128xf32>
    %cst_105 = arith.constant 5.000000e-01 : f32
    %267 = vector.broadcast %cst_105 : f32 to vector<8x128xf32>
    %268 = arith.mulf %267, %266 : vector<8x128xf32>
    %269 = math.tanh %268 : vector<8x128xf32>
    %cst_106 = arith.constant 1.000000e+00 : f32
    %270 = vector.broadcast %cst_106 : f32 to vector<8x128xf32>
    %271 = arith.addf %270, %269 : vector<8x128xf32>
    %cst_107 = arith.constant 5.000000e-01 : f32
    %272 = vector.broadcast %cst_107 : f32 to vector<8x128xf32>
    %273 = arith.mulf %272, %271 : vector<8x128xf32>
    %274 = vector.extract_strided_slice %234 {offsets = [0, 128], sizes = [8, 128], strides = [1, 1]} : vector<8x512xf32> to vector<8x128xf32>
    %cst_108 = arith.constant 5.000000e-01 : f32
    %275 = vector.broadcast %cst_108 : f32 to vector<8x128xf32>
    %276 = arith.mulf %275, %274 : vector<8x128xf32>
    %277 = math.tanh %276 : vector<8x128xf32>
    %cst_109 = arith.constant 1.000000e+00 : f32
    %278 = vector.broadcast %cst_109 : f32 to vector<8x128xf32>
    %279 = arith.addf %278, %277 : vector<8x128xf32>
    %cst_110 = arith.constant 5.000000e-01 : f32
    %280 = vector.broadcast %cst_110 : f32 to vector<8x128xf32>
    %281 = arith.mulf %280, %279 : vector<8x128xf32>
    %282 = vector.extract_strided_slice %234 {offsets = [0, 256], sizes = [8, 128], strides = [1, 1]} : vector<8x512xf32> to vector<8x128xf32>
    %283 = math.tanh %282 : vector<8x128xf32>
    %284 = vector.extract_strided_slice %234 {offsets = [0, 384], sizes = [8, 128], strides = [1, 1]} : vector<8x512xf32> to vector<8x128xf32>
    %cst_111 = arith.constant 5.000000e-01 : f32
    %285 = vector.broadcast %cst_111 : f32 to vector<8x128xf32>
    %286 = arith.mulf %285, %284 : vector<8x128xf32>
    %287 = math.tanh %286 : vector<8x128xf32>
    %cst_112 = arith.constant 1.000000e+00 : f32
    %288 = vector.broadcast %cst_112 : f32 to vector<8x128xf32>
    %289 = arith.addf %288, %287 : vector<8x128xf32>
    %cst_113 = arith.constant 5.000000e-01 : f32
    %290 = vector.broadcast %cst_113 : f32 to vector<8x128xf32>
    %291 = arith.mulf %290, %289 : vector<8x128xf32>
    %292 = arith.mulf %281, %222 : vector<8x128xf32>
    %293 = arith.mulf %273, %283 : vector<8x128xf32>
    %294 = arith.addf %292, %293 : vector<8x128xf32>
    %295 = math.tanh %294 : vector<8x128xf32>
    %296 = arith.mulf %291, %295 : vector<8x128xf32>
    %c32_114 = arith.constant 32 : index
    %c0_115 = arith.constant 0 : index
    %297 = vector.load %arg12[%c32_114, %c0_115] : memref<64x1024xf32, #tpu.memory_space<vmem>>, vector<8x1024xf32>
    %c24_116 = arith.constant 24 : index
    %c0_117 = arith.constant 0 : index
    %298 = vector.load %arg12[%c24_116, %c0_117] : memref<64x1024xf32, #tpu.memory_space<vmem>>, vector<8x1024xf32>
    %299 = vector.extract_strided_slice %297 {offsets = [0, 0], sizes = [8, 512], strides = [1, 1]} : vector<8x1024xf32> to vector<8x512xf32>
    %c0_118 = arith.constant 0 : index
    %c0_119 = arith.constant 0 : index
    %300 = vector.load %arg4[%c0_118, %c0_119] : memref<128x512xf32, #tpu.memory_space<vmem>>, vector<128x512xf32>
    %cst_120 = arith.constant dense<0.000000e+00> : vector<8x512xf32>
    %301 = tpu.matmul %265, %300, %cst_120 {dimension_numbers = #tpu.dot_dimension_numbers<[1], [0], [0], [1], [0, 0, 1, 1], [], []>} : vector<8x128xf32>, vector<128x512xf32>, vector<8x512xf32> -> vector<8x512xf32>
    %302 = arith.addf %299, %301 : vector<8x512xf32>
    %303 = vector.extract_strided_slice %298 {offsets = [0, 512], sizes = [8, 512], strides = [1, 1]} : vector<8x1024xf32> to vector<8x512xf32>
    %c0_121 = arith.constant 0 : index
    %c0_122 = arith.constant 0 : index
    %304 = vector.load %arg5[%c0_121, %c0_122] : memref<128x512xf32, #tpu.memory_space<vmem>>, vector<128x512xf32>
    %cst_123 = arith.constant dense<0.000000e+00> : vector<8x512xf32>
    %305 = tpu.matmul %296, %304, %cst_123 {dimension_numbers = #tpu.dot_dimension_numbers<[1], [0], [0], [1], [0, 0, 1, 1], [], []>} : vector<8x128xf32>, vector<128x512xf32>, vector<8x512xf32> -> vector<8x512xf32>
    %306 = arith.addf %303, %305 : vector<8x512xf32>
    %307 = vector.extract_strided_slice %302 {offsets = [0, 0], sizes = [8, 128], strides = [1, 1]} : vector<8x512xf32> to vector<8x128xf32>
    %cst_124 = arith.constant 5.000000e-01 : f32
    %308 = vector.broadcast %cst_124 : f32 to vector<8x128xf32>
    %309 = arith.mulf %308, %307 : vector<8x128xf32>
    %310 = math.tanh %309 : vector<8x128xf32>
    %cst_125 = arith.constant 1.000000e+00 : f32
    %311 = vector.broadcast %cst_125 : f32 to vector<8x128xf32>
    %312 = arith.addf %311, %310 : vector<8x128xf32>
    %cst_126 = arith.constant 5.000000e-01 : f32
    %313 = vector.broadcast %cst_126 : f32 to vector<8x128xf32>
    %314 = arith.mulf %313, %312 : vector<8x128xf32>
    %315 = vector.extract_strided_slice %302 {offsets = [0, 128], sizes = [8, 128], strides = [1, 1]} : vector<8x512xf32> to vector<8x128xf32>
    %cst_127 = arith.constant 5.000000e-01 : f32
    %316 = vector.broadcast %cst_127 : f32 to vector<8x128xf32>
    %317 = arith.mulf %316, %315 : vector<8x128xf32>
    %318 = math.tanh %317 : vector<8x128xf32>
    %cst_128 = arith.constant 1.000000e+00 : f32
    %319 = vector.broadcast %cst_128 : f32 to vector<8x128xf32>
    %320 = arith.addf %319, %318 : vector<8x128xf32>
    %cst_129 = arith.constant 5.000000e-01 : f32
    %321 = vector.broadcast %cst_129 : f32 to vector<8x128xf32>
    %322 = arith.mulf %321, %320 : vector<8x128xf32>
    %323 = vector.extract_strided_slice %302 {offsets = [0, 256], sizes = [8, 128], strides = [1, 1]} : vector<8x512xf32> to vector<8x128xf32>
    %324 = math.tanh %323 : vector<8x128xf32>
    %325 = vector.extract_strided_slice %302 {offsets = [0, 384], sizes = [8, 128], strides = [1, 1]} : vector<8x512xf32> to vector<8x128xf32>
    %cst_130 = arith.constant 5.000000e-01 : f32
    %326 = vector.broadcast %cst_130 : f32 to vector<8x128xf32>
    %327 = arith.mulf %326, %325 : vector<8x128xf32>
    %328 = math.tanh %327 : vector<8x128xf32>
    %cst_131 = arith.constant 1.000000e+00 : f32
    %329 = vector.broadcast %cst_131 : f32 to vector<8x128xf32>
    %330 = arith.addf %329, %328 : vector<8x128xf32>
    %cst_132 = arith.constant 5.000000e-01 : f32
    %331 = vector.broadcast %cst_132 : f32 to vector<8x128xf32>
    %332 = arith.mulf %331, %330 : vector<8x128xf32>
    %333 = arith.mulf %322, %263 : vector<8x128xf32>
    %334 = arith.mulf %314, %324 : vector<8x128xf32>
    %335 = arith.addf %333, %334 : vector<8x128xf32>
    %336 = math.tanh %335 : vector<8x128xf32>
    %337 = arith.mulf %332, %336 : vector<8x128xf32>
    %338 = vector.extract_strided_slice %306 {offsets = [0, 0], sizes = [8, 128], strides = [1, 1]} : vector<8x512xf32> to vector<8x128xf32>
    %cst_133 = arith.constant 5.000000e-01 : f32
    %339 = vector.broadcast %cst_133 : f32 to vector<8x128xf32>
    %340 = arith.mulf %339, %338 : vector<8x128xf32>
    %341 = math.tanh %340 : vector<8x128xf32>
    %cst_134 = arith.constant 1.000000e+00 : f32
    %342 = vector.broadcast %cst_134 : f32 to vector<8x128xf32>
    %343 = arith.addf %342, %341 : vector<8x128xf32>
    %cst_135 = arith.constant 5.000000e-01 : f32
    %344 = vector.broadcast %cst_135 : f32 to vector<8x128xf32>
    %345 = arith.mulf %344, %343 : vector<8x128xf32>
    %346 = vector.extract_strided_slice %306 {offsets = [0, 128], sizes = [8, 128], strides = [1, 1]} : vector<8x512xf32> to vector<8x128xf32>
    %cst_136 = arith.constant 5.000000e-01 : f32
    %347 = vector.broadcast %cst_136 : f32 to vector<8x128xf32>
    %348 = arith.mulf %347, %346 : vector<8x128xf32>
    %349 = math.tanh %348 : vector<8x128xf32>
    %cst_137 = arith.constant 1.000000e+00 : f32
    %350 = vector.broadcast %cst_137 : f32 to vector<8x128xf32>
    %351 = arith.addf %350, %349 : vector<8x128xf32>
    %cst_138 = arith.constant 5.000000e-01 : f32
    %352 = vector.broadcast %cst_138 : f32 to vector<8x128xf32>
    %353 = arith.mulf %352, %351 : vector<8x128xf32>
    %354 = vector.extract_strided_slice %306 {offsets = [0, 256], sizes = [8, 128], strides = [1, 1]} : vector<8x512xf32> to vector<8x128xf32>
    %355 = math.tanh %354 : vector<8x128xf32>
    %356 = vector.extract_strided_slice %306 {offsets = [0, 384], sizes = [8, 128], strides = [1, 1]} : vector<8x512xf32> to vector<8x128xf32>
    %cst_139 = arith.constant 5.000000e-01 : f32
    %357 = vector.broadcast %cst_139 : f32 to vector<8x128xf32>
    %358 = arith.mulf %357, %356 : vector<8x128xf32>
    %359 = math.tanh %358 : vector<8x128xf32>
    %cst_140 = arith.constant 1.000000e+00 : f32
    %360 = vector.broadcast %cst_140 : f32 to vector<8x128xf32>
    %361 = arith.addf %360, %359 : vector<8x128xf32>
    %cst_141 = arith.constant 5.000000e-01 : f32
    %362 = vector.broadcast %cst_141 : f32 to vector<8x128xf32>
    %363 = arith.mulf %362, %361 : vector<8x128xf32>
    %364 = arith.mulf %353, %294 : vector<8x128xf32>
    %365 = arith.mulf %345, %355 : vector<8x128xf32>
    %366 = arith.addf %364, %365 : vector<8x128xf32>
    %367 = math.tanh %366 : vector<8x128xf32>
    %368 = arith.mulf %363, %367 : vector<8x128xf32>
    %c40_142 = arith.constant 40 : index
    %c0_143 = arith.constant 0 : index
    %369 = vector.load %arg12[%c40_142, %c0_143] : memref<64x1024xf32, #tpu.memory_space<vmem>>, vector<8x1024xf32>
    %c16_144 = arith.constant 16 : index
    %c0_145 = arith.constant 0 : index
    %370 = vector.load %arg12[%c16_144, %c0_145] : memref<64x1024xf32, #tpu.memory_space<vmem>>, vector<8x1024xf32>
    %371 = vector.extract_strided_slice %369 {offsets = [0, 0], sizes = [8, 512], strides = [1, 1]} : vector<8x1024xf32> to vector<8x512xf32>
    %c0_146 = arith.constant 0 : index
    %c0_147 = arith.constant 0 : index
    %372 = vector.load %arg4[%c0_146, %c0_147] : memref<128x512xf32, #tpu.memory_space<vmem>>, vector<128x512xf32>
    %cst_148 = arith.constant dense<0.000000e+00> : vector<8x512xf32>
    %373 = tpu.matmul %337, %372, %cst_148 {dimension_numbers = #tpu.dot_dimension_numbers<[1], [0], [0], [1], [0, 0, 1, 1], [], []>} : vector<8x128xf32>, vector<128x512xf32>, vector<8x512xf32> -> vector<8x512xf32>
    %374 = arith.addf %371, %373 : vector<8x512xf32>
    %375 = vector.extract_strided_slice %370 {offsets = [0, 512], sizes = [8, 512], strides = [1, 1]} : vector<8x1024xf32> to vector<8x512xf32>
    %c0_149 = arith.constant 0 : index
    %c0_150 = arith.constant 0 : index
    %376 = vector.load %arg5[%c0_149, %c0_150] : memref<128x512xf32, #tpu.memory_space<vmem>>, vector<128x512xf32>
    %cst_151 = arith.constant dense<0.000000e+00> : vector<8x512xf32>
    %377 = tpu.matmul %368, %376, %cst_151 {dimension_numbers = #tpu.dot_dimension_numbers<[1], [0], [0], [1], [0, 0, 1, 1], [], []>} : vector<8x128xf32>, vector<128x512xf32>, vector<8x512xf32> -> vector<8x512xf32>
    %378 = arith.addf %375, %377 : vector<8x512xf32>
    %379 = vector.extract_strided_slice %374 {offsets = [0, 0], sizes = [8, 128], strides = [1, 1]} : vector<8x512xf32> to vector<8x128xf32>
    %cst_152 = arith.constant 5.000000e-01 : f32
    %380 = vector.broadcast %cst_152 : f32 to vector<8x128xf32>
    %381 = arith.mulf %380, %379 : vector<8x128xf32>
    %382 = math.tanh %381 : vector<8x128xf32>
    %cst_153 = arith.constant 1.000000e+00 : f32
    %383 = vector.broadcast %cst_153 : f32 to vector<8x128xf32>
    %384 = arith.addf %383, %382 : vector<8x128xf32>
    %cst_154 = arith.constant 5.000000e-01 : f32
    %385 = vector.broadcast %cst_154 : f32 to vector<8x128xf32>
    %386 = arith.mulf %385, %384 : vector<8x128xf32>
    %387 = vector.extract_strided_slice %374 {offsets = [0, 128], sizes = [8, 128], strides = [1, 1]} : vector<8x512xf32> to vector<8x128xf32>
    %cst_155 = arith.constant 5.000000e-01 : f32
    %388 = vector.broadcast %cst_155 : f32 to vector<8x128xf32>
    %389 = arith.mulf %388, %387 : vector<8x128xf32>
    %390 = math.tanh %389 : vector<8x128xf32>
    %cst_156 = arith.constant 1.000000e+00 : f32
    %391 = vector.broadcast %cst_156 : f32 to vector<8x128xf32>
    %392 = arith.addf %391, %390 : vector<8x128xf32>
    %cst_157 = arith.constant 5.000000e-01 : f32
    %393 = vector.broadcast %cst_157 : f32 to vector<8x128xf32>
    %394 = arith.mulf %393, %392 : vector<8x128xf32>
    %395 = vector.extract_strided_slice %374 {offsets = [0, 256], sizes = [8, 128], strides = [1, 1]} : vector<8x512xf32> to vector<8x128xf32>
    %396 = math.tanh %395 : vector<8x128xf32>
    %397 = vector.extract_strided_slice %374 {offsets = [0, 384], sizes = [8, 128], strides = [1, 1]} : vector<8x512xf32> to vector<8x128xf32>
    %cst_158 = arith.constant 5.000000e-01 : f32
    %398 = vector.broadcast %cst_158 : f32 to vector<8x128xf32>
    %399 = arith.mulf %398, %397 : vector<8x128xf32>
    %400 = math.tanh %399 : vector<8x128xf32>
    %cst_159 = arith.constant 1.000000e+00 : f32
    %401 = vector.broadcast %cst_159 : f32 to vector<8x128xf32>
    %402 = arith.addf %401, %400 : vector<8x128xf32>
    %cst_160 = arith.constant 5.000000e-01 : f32
    %403 = vector.broadcast %cst_160 : f32 to vector<8x128xf32>
    %404 = arith.mulf %403, %402 : vector<8x128xf32>
    %405 = arith.mulf %394, %335 : vector<8x128xf32>
    %406 = arith.mulf %386, %396 : vector<8x128xf32>
    %407 = arith.addf %405, %406 : vector<8x128xf32>
    %408 = math.tanh %407 : vector<8x128xf32>
    %409 = arith.mulf %404, %408 : vector<8x128xf32>
    %410 = vector.extract_strided_slice %378 {offsets = [0, 0], sizes = [8, 128], strides = [1, 1]} : vector<8x512xf32> to vector<8x128xf32>
    %cst_161 = arith.constant 5.000000e-01 : f32
    %411 = vector.broadcast %cst_161 : f32 to vector<8x128xf32>
    %412 = arith.mulf %411, %410 : vector<8x128xf32>
    %413 = math.tanh %412 : vector<8x128xf32>
    %cst_162 = arith.constant 1.000000e+00 : f32
    %414 = vector.broadcast %cst_162 : f32 to vector<8x128xf32>
    %415 = arith.addf %414, %413 : vector<8x128xf32>
    %cst_163 = arith.constant 5.000000e-01 : f32
    %416 = vector.broadcast %cst_163 : f32 to vector<8x128xf32>
    %417 = arith.mulf %416, %415 : vector<8x128xf32>
    %418 = vector.extract_strided_slice %378 {offsets = [0, 128], sizes = [8, 128], strides = [1, 1]} : vector<8x512xf32> to vector<8x128xf32>
    %cst_164 = arith.constant 5.000000e-01 : f32
    %419 = vector.broadcast %cst_164 : f32 to vector<8x128xf32>
    %420 = arith.mulf %419, %418 : vector<8x128xf32>
    %421 = math.tanh %420 : vector<8x128xf32>
    %cst_165 = arith.constant 1.000000e+00 : f32
    %422 = vector.broadcast %cst_165 : f32 to vector<8x128xf32>
    %423 = arith.addf %422, %421 : vector<8x128xf32>
    %cst_166 = arith.constant 5.000000e-01 : f32
    %424 = vector.broadcast %cst_166 : f32 to vector<8x128xf32>
    %425 = arith.mulf %424, %423 : vector<8x128xf32>
    %426 = vector.extract_strided_slice %378 {offsets = [0, 256], sizes = [8, 128], strides = [1, 1]} : vector<8x512xf32> to vector<8x128xf32>
    %427 = math.tanh %426 : vector<8x128xf32>
    %428 = vector.extract_strided_slice %378 {offsets = [0, 384], sizes = [8, 128], strides = [1, 1]} : vector<8x512xf32> to vector<8x128xf32>
    %cst_167 = arith.constant 5.000000e-01 : f32
    %429 = vector.broadcast %cst_167 : f32 to vector<8x128xf32>
    %430 = arith.mulf %429, %428 : vector<8x128xf32>
    %431 = math.tanh %430 : vector<8x128xf32>
    %cst_168 = arith.constant 1.000000e+00 : f32
    %432 = vector.broadcast %cst_168 : f32 to vector<8x128xf32>
    %433 = arith.addf %432, %431 : vector<8x128xf32>
    %cst_169 = arith.constant 5.000000e-01 : f32
    %434 = vector.broadcast %cst_169 : f32 to vector<8x128xf32>
    %435 = arith.mulf %434, %433 : vector<8x128xf32>
    %436 = arith.mulf %425, %366 : vector<8x128xf32>
    %437 = arith.mulf %417, %427 : vector<8x128xf32>
    %438 = arith.addf %436, %437 : vector<8x128xf32>
    %439 = math.tanh %438 : vector<8x128xf32>
    %440 = arith.mulf %435, %439 : vector<8x128xf32>
    %c48_170 = arith.constant 48 : index
    %c0_171 = arith.constant 0 : index
    %441 = vector.load %arg12[%c48_170, %c0_171] : memref<64x1024xf32, #tpu.memory_space<vmem>>, vector<8x1024xf32>
    %c8_172 = arith.constant 8 : index
    %c0_173 = arith.constant 0 : index
    %442 = vector.load %arg12[%c8_172, %c0_173] : memref<64x1024xf32, #tpu.memory_space<vmem>>, vector<8x1024xf32>
    %443 = vector.extract_strided_slice %441 {offsets = [0, 0], sizes = [8, 512], strides = [1, 1]} : vector<8x1024xf32> to vector<8x512xf32>
    %c0_174 = arith.constant 0 : index
    %c0_175 = arith.constant 0 : index
    %444 = vector.load %arg4[%c0_174, %c0_175] : memref<128x512xf32, #tpu.memory_space<vmem>>, vector<128x512xf32>
    %cst_176 = arith.constant dense<0.000000e+00> : vector<8x512xf32>
    %445 = tpu.matmul %409, %444, %cst_176 {dimension_numbers = #tpu.dot_dimension_numbers<[1], [0], [0], [1], [0, 0, 1, 1], [], []>} : vector<8x128xf32>, vector<128x512xf32>, vector<8x512xf32> -> vector<8x512xf32>
    %446 = arith.addf %443, %445 : vector<8x512xf32>
    %447 = vector.extract_strided_slice %442 {offsets = [0, 512], sizes = [8, 512], strides = [1, 1]} : vector<8x1024xf32> to vector<8x512xf32>
    %c0_177 = arith.constant 0 : index
    %c0_178 = arith.constant 0 : index
    %448 = vector.load %arg5[%c0_177, %c0_178] : memref<128x512xf32, #tpu.memory_space<vmem>>, vector<128x512xf32>
    %cst_179 = arith.constant dense<0.000000e+00> : vector<8x512xf32>
    %449 = tpu.matmul %440, %448, %cst_179 {dimension_numbers = #tpu.dot_dimension_numbers<[1], [0], [0], [1], [0, 0, 1, 1], [], []>} : vector<8x128xf32>, vector<128x512xf32>, vector<8x512xf32> -> vector<8x512xf32>
    %450 = arith.addf %447, %449 : vector<8x512xf32>
    %451 = vector.extract_strided_slice %446 {offsets = [0, 0], sizes = [8, 128], strides = [1, 1]} : vector<8x512xf32> to vector<8x128xf32>
    %cst_180 = arith.constant 5.000000e-01 : f32
    %452 = vector.broadcast %cst_180 : f32 to vector<8x128xf32>
    %453 = arith.mulf %452, %451 : vector<8x128xf32>
    %454 = math.tanh %453 : vector<8x128xf32>
    %cst_181 = arith.constant 1.000000e+00 : f32
    %455 = vector.broadcast %cst_181 : f32 to vector<8x128xf32>
    %456 = arith.addf %455, %454 : vector<8x128xf32>
    %cst_182 = arith.constant 5.000000e-01 : f32
    %457 = vector.broadcast %cst_182 : f32 to vector<8x128xf32>
    %458 = arith.mulf %457, %456 : vector<8x128xf32>
    %459 = vector.extract_strided_slice %446 {offsets = [0, 128], sizes = [8, 128], strides = [1, 1]} : vector<8x512xf32> to vector<8x128xf32>
    %cst_183 = arith.constant 5.000000e-01 : f32
    %460 = vector.broadcast %cst_183 : f32 to vector<8x128xf32>
    %461 = arith.mulf %460, %459 : vector<8x128xf32>
    %462 = math.tanh %461 : vector<8x128xf32>
    %cst_184 = arith.constant 1.000000e+00 : f32
    %463 = vector.broadcast %cst_184 : f32 to vector<8x128xf32>
    %464 = arith.addf %463, %462 : vector<8x128xf32>
    %cst_185 = arith.constant 5.000000e-01 : f32
    %465 = vector.broadcast %cst_185 : f32 to vector<8x128xf32>
    %466 = arith.mulf %465, %464 : vector<8x128xf32>
    %467 = vector.extract_strided_slice %446 {offsets = [0, 256], sizes = [8, 128], strides = [1, 1]} : vector<8x512xf32> to vector<8x128xf32>
    %468 = math.tanh %467 : vector<8x128xf32>
    %469 = vector.extract_strided_slice %446 {offsets = [0, 384], sizes = [8, 128], strides = [1, 1]} : vector<8x512xf32> to vector<8x128xf32>
    %cst_186 = arith.constant 5.000000e-01 : f32
    %470 = vector.broadcast %cst_186 : f32 to vector<8x128xf32>
    %471 = arith.mulf %470, %469 : vector<8x128xf32>
    %472 = math.tanh %471 : vector<8x128xf32>
    %cst_187 = arith.constant 1.000000e+00 : f32
    %473 = vector.broadcast %cst_187 : f32 to vector<8x128xf32>
    %474 = arith.addf %473, %472 : vector<8x128xf32>
    %cst_188 = arith.constant 5.000000e-01 : f32
    %475 = vector.broadcast %cst_188 : f32 to vector<8x128xf32>
    %476 = arith.mulf %475, %474 : vector<8x128xf32>
    %477 = arith.mulf %466, %407 : vector<8x128xf32>
    %478 = arith.mulf %458, %468 : vector<8x128xf32>
    %479 = arith.addf %477, %478 : vector<8x128xf32>
    %480 = math.tanh %479 : vector<8x128xf32>
    %481 = arith.mulf %476, %480 : vector<8x128xf32>
    %482 = vector.extract_strided_slice %450 {offsets = [0, 0], sizes = [8, 128], strides = [1, 1]} : vector<8x512xf32> to vector<8x128xf32>
    %cst_189 = arith.constant 5.000000e-01 : f32
    %483 = vector.broadcast %cst_189 : f32 to vector<8x128xf32>
    %484 = arith.mulf %483, %482 : vector<8x128xf32>
    %485 = math.tanh %484 : vector<8x128xf32>
    %cst_190 = arith.constant 1.000000e+00 : f32
    %486 = vector.broadcast %cst_190 : f32 to vector<8x128xf32>
    %487 = arith.addf %486, %485 : vector<8x128xf32>
    %cst_191 = arith.constant 5.000000e-01 : f32
    %488 = vector.broadcast %cst_191 : f32 to vector<8x128xf32>
    %489 = arith.mulf %488, %487 : vector<8x128xf32>
    %490 = vector.extract_strided_slice %450 {offsets = [0, 128], sizes = [8, 128], strides = [1, 1]} : vector<8x512xf32> to vector<8x128xf32>
    %cst_192 = arith.constant 5.000000e-01 : f32
    %491 = vector.broadcast %cst_192 : f32 to vector<8x128xf32>
    %492 = arith.mulf %491, %490 : vector<8x128xf32>
    %493 = math.tanh %492 : vector<8x128xf32>
    %cst_193 = arith.constant 1.000000e+00 : f32
    %494 = vector.broadcast %cst_193 : f32 to vector<8x128xf32>
    %495 = arith.addf %494, %493 : vector<8x128xf32>
    %cst_194 = arith.constant 5.000000e-01 : f32
    %496 = vector.broadcast %cst_194 : f32 to vector<8x128xf32>
    %497 = arith.mulf %496, %495 : vector<8x128xf32>
    %498 = vector.extract_strided_slice %450 {offsets = [0, 256], sizes = [8, 128], strides = [1, 1]} : vector<8x512xf32> to vector<8x128xf32>
    %499 = math.tanh %498 : vector<8x128xf32>
    %500 = vector.extract_strided_slice %450 {offsets = [0, 384], sizes = [8, 128], strides = [1, 1]} : vector<8x512xf32> to vector<8x128xf32>
    %cst_195 = arith.constant 5.000000e-01 : f32
    %501 = vector.broadcast %cst_195 : f32 to vector<8x128xf32>
    %502 = arith.mulf %501, %500 : vector<8x128xf32>
    %503 = math.tanh %502 : vector<8x128xf32>
    %cst_196 = arith.constant 1.000000e+00 : f32
    %504 = vector.broadcast %cst_196 : f32 to vector<8x128xf32>
    %505 = arith.addf %504, %503 : vector<8x128xf32>
    %cst_197 = arith.constant 5.000000e-01 : f32
    %506 = vector.broadcast %cst_197 : f32 to vector<8x128xf32>
    %507 = arith.mulf %506, %505 : vector<8x128xf32>
    %508 = arith.mulf %497, %438 : vector<8x128xf32>
    %509 = arith.mulf %489, %499 : vector<8x128xf32>
    %510 = arith.addf %508, %509 : vector<8x128xf32>
    %511 = math.tanh %510 : vector<8x128xf32>
    %512 = arith.mulf %507, %511 : vector<8x128xf32>
    %c56_198 = arith.constant 56 : index
    %c0_199 = arith.constant 0 : index
    %513 = vector.load %arg12[%c56_198, %c0_199] : memref<64x1024xf32, #tpu.memory_space<vmem>>, vector<8x1024xf32>
    %c0_200 = arith.constant 0 : index
    %c0_201 = arith.constant 0 : index
    %514 = vector.load %arg12[%c0_200, %c0_201] : memref<64x1024xf32, #tpu.memory_space<vmem>>, vector<8x1024xf32>
    %515 = vector.extract_strided_slice %513 {offsets = [0, 0], sizes = [8, 512], strides = [1, 1]} : vector<8x1024xf32> to vector<8x512xf32>
    %c0_202 = arith.constant 0 : index
    %c0_203 = arith.constant 0 : index
    %516 = vector.load %arg4[%c0_202, %c0_203] : memref<128x512xf32, #tpu.memory_space<vmem>>, vector<128x512xf32>
    %cst_204 = arith.constant dense<0.000000e+00> : vector<8x512xf32>
    %517 = tpu.matmul %481, %516, %cst_204 {dimension_numbers = #tpu.dot_dimension_numbers<[1], [0], [0], [1], [0, 0, 1, 1], [], []>} : vector<8x128xf32>, vector<128x512xf32>, vector<8x512xf32> -> vector<8x512xf32>
    %518 = arith.addf %515, %517 : vector<8x512xf32>
    %519 = vector.extract_strided_slice %514 {offsets = [0, 512], sizes = [8, 512], strides = [1, 1]} : vector<8x1024xf32> to vector<8x512xf32>
    %c0_205 = arith.constant 0 : index
    %c0_206 = arith.constant 0 : index
    %520 = vector.load %arg5[%c0_205, %c0_206] : memref<128x512xf32, #tpu.memory_space<vmem>>, vector<128x512xf32>
    %cst_207 = arith.constant dense<0.000000e+00> : vector<8x512xf32>
    %521 = tpu.matmul %512, %520, %cst_207 {dimension_numbers = #tpu.dot_dimension_numbers<[1], [0], [0], [1], [0, 0, 1, 1], [], []>} : vector<8x128xf32>, vector<128x512xf32>, vector<8x512xf32> -> vector<8x512xf32>
    %522 = arith.addf %519, %521 : vector<8x512xf32>
    %523 = vector.extract_strided_slice %518 {offsets = [0, 0], sizes = [8, 128], strides = [1, 1]} : vector<8x512xf32> to vector<8x128xf32>
    %cst_208 = arith.constant 5.000000e-01 : f32
    %524 = vector.broadcast %cst_208 : f32 to vector<8x128xf32>
    %525 = arith.mulf %524, %523 : vector<8x128xf32>
    %526 = math.tanh %525 : vector<8x128xf32>
    %cst_209 = arith.constant 1.000000e+00 : f32
    %527 = vector.broadcast %cst_209 : f32 to vector<8x128xf32>
    %528 = arith.addf %527, %526 : vector<8x128xf32>
    %cst_210 = arith.constant 5.000000e-01 : f32
    %529 = vector.broadcast %cst_210 : f32 to vector<8x128xf32>
    %530 = arith.mulf %529, %528 : vector<8x128xf32>
    %531 = vector.extract_strided_slice %518 {offsets = [0, 128], sizes = [8, 128], strides = [1, 1]} : vector<8x512xf32> to vector<8x128xf32>
    %cst_211 = arith.constant 5.000000e-01 : f32
    %532 = vector.broadcast %cst_211 : f32 to vector<8x128xf32>
    %533 = arith.mulf %532, %531 : vector<8x128xf32>
    %534 = math.tanh %533 : vector<8x128xf32>
    %cst_212 = arith.constant 1.000000e+00 : f32
    %535 = vector.broadcast %cst_212 : f32 to vector<8x128xf32>
    %536 = arith.addf %535, %534 : vector<8x128xf32>
    %cst_213 = arith.constant 5.000000e-01 : f32
    %537 = vector.broadcast %cst_213 : f32 to vector<8x128xf32>
    %538 = arith.mulf %537, %536 : vector<8x128xf32>
    %539 = vector.extract_strided_slice %518 {offsets = [0, 256], sizes = [8, 128], strides = [1, 1]} : vector<8x512xf32> to vector<8x128xf32>
    %540 = math.tanh %539 : vector<8x128xf32>
    %541 = vector.extract_strided_slice %518 {offsets = [0, 384], sizes = [8, 128], strides = [1, 1]} : vector<8x512xf32> to vector<8x128xf32>
    %cst_214 = arith.constant 5.000000e-01 : f32
    %542 = vector.broadcast %cst_214 : f32 to vector<8x128xf32>
    %543 = arith.mulf %542, %541 : vector<8x128xf32>
    %544 = math.tanh %543 : vector<8x128xf32>
    %cst_215 = arith.constant 1.000000e+00 : f32
    %545 = vector.broadcast %cst_215 : f32 to vector<8x128xf32>
    %546 = arith.addf %545, %544 : vector<8x128xf32>
    %cst_216 = arith.constant 5.000000e-01 : f32
    %547 = vector.broadcast %cst_216 : f32 to vector<8x128xf32>
    %548 = arith.mulf %547, %546 : vector<8x128xf32>
    %549 = arith.mulf %538, %479 : vector<8x128xf32>
    %550 = arith.mulf %530, %540 : vector<8x128xf32>
    %551 = arith.addf %549, %550 : vector<8x128xf32>
    %552 = math.tanh %551 : vector<8x128xf32>
    %553 = arith.mulf %548, %552 : vector<8x128xf32>
    %554 = vector.extract_strided_slice %522 {offsets = [0, 0], sizes = [8, 128], strides = [1, 1]} : vector<8x512xf32> to vector<8x128xf32>
    %cst_217 = arith.constant 5.000000e-01 : f32
    %555 = vector.broadcast %cst_217 : f32 to vector<8x128xf32>
    %556 = arith.mulf %555, %554 : vector<8x128xf32>
    %557 = math.tanh %556 : vector<8x128xf32>
    %cst_218 = arith.constant 1.000000e+00 : f32
    %558 = vector.broadcast %cst_218 : f32 to vector<8x128xf32>
    %559 = arith.addf %558, %557 : vector<8x128xf32>
    %cst_219 = arith.constant 5.000000e-01 : f32
    %560 = vector.broadcast %cst_219 : f32 to vector<8x128xf32>
    %561 = arith.mulf %560, %559 : vector<8x128xf32>
    %562 = vector.extract_strided_slice %522 {offsets = [0, 128], sizes = [8, 128], strides = [1, 1]} : vector<8x512xf32> to vector<8x128xf32>
    %cst_220 = arith.constant 5.000000e-01 : f32
    %563 = vector.broadcast %cst_220 : f32 to vector<8x128xf32>
    %564 = arith.mulf %563, %562 : vector<8x128xf32>
    %565 = math.tanh %564 : vector<8x128xf32>
    %cst_221 = arith.constant 1.000000e+00 : f32
    %566 = vector.broadcast %cst_221 : f32 to vector<8x128xf32>
    %567 = arith.addf %566, %565 : vector<8x128xf32>
    %cst_222 = arith.constant 5.000000e-01 : f32
    %568 = vector.broadcast %cst_222 : f32 to vector<8x128xf32>
    %569 = arith.mulf %568, %567 : vector<8x128xf32>
    %570 = vector.extract_strided_slice %522 {offsets = [0, 256], sizes = [8, 128], strides = [1, 1]} : vector<8x512xf32> to vector<8x128xf32>
    %571 = math.tanh %570 : vector<8x128xf32>
    %572 = vector.extract_strided_slice %522 {offsets = [0, 384], sizes = [8, 128], strides = [1, 1]} : vector<8x512xf32> to vector<8x128xf32>
    %cst_223 = arith.constant 5.000000e-01 : f32
    %573 = vector.broadcast %cst_223 : f32 to vector<8x128xf32>
    %574 = arith.mulf %573, %572 : vector<8x128xf32>
    %575 = math.tanh %574 : vector<8x128xf32>
    %cst_224 = arith.constant 1.000000e+00 : f32
    %576 = vector.broadcast %cst_224 : f32 to vector<8x128xf32>
    %577 = arith.addf %576, %575 : vector<8x128xf32>
    %cst_225 = arith.constant 5.000000e-01 : f32
    %578 = vector.broadcast %cst_225 : f32 to vector<8x128xf32>
    %579 = arith.mulf %578, %577 : vector<8x128xf32>
    %580 = arith.mulf %569, %510 : vector<8x128xf32>
    %581 = arith.mulf %561, %571 : vector<8x128xf32>
    %582 = arith.addf %580, %581 : vector<8x128xf32>
    %583 = math.tanh %582 : vector<8x128xf32>
    %584 = arith.mulf %579, %583 : vector<8x128xf32>
    %c0_226 = arith.constant 0 : index
    %c0_227 = arith.constant 0 : index
    %585 = vector.load %arg6[%c0_226, %c0_227] : memref<128x128xf32, #tpu.memory_space<vmem>>, vector<128x128xf32>
    %cst_228 = arith.constant dense<0.000000e+00> : vector<8x128xf32>
    %586 = tpu.matmul %553, %585, %cst_228 {dimension_numbers = #tpu.dot_dimension_numbers<[1], [0], [0], [1], [0, 0, 1, 1], [], []>} : vector<8x128xf32>, vector<128x128xf32>, vector<8x128xf32> -> vector<8x128xf32>
    %c0_229 = arith.constant 0 : index
    %c0_230 = arith.constant 0 : index
    %587 = vector.load %arg7[%c0_229, %c0_230] : memref<128x128xf32, #tpu.memory_space<vmem>>, vector<128x128xf32>
    %cst_231 = arith.constant dense<0.000000e+00> : vector<8x128xf32>
    %588 = tpu.matmul %584, %587, %cst_231 {dimension_numbers = #tpu.dot_dimension_numbers<[1], [0], [0], [1], [0, 0, 1, 1], [], []>} : vector<8x128xf32>, vector<128x128xf32>, vector<8x128xf32> -> vector<8x128xf32>
    %589 = arith.addf %586, %588 : vector<8x128xf32>
    %c0_232 = arith.constant 0 : index
    %c0_233 = arith.constant 0 : index
    %590 = vector.load %arg8[%c0_232, %c0_233] : memref<1x128xf32, #tpu.memory_space<vmem>>, vector<1x128xf32>
    %591 = vector.broadcast %590 : vector<1x128xf32> to vector<8x128xf32>
    %592 = arith.addf %589, %591 : vector<8x128xf32>
    %cst_234 = arith.constant 0.000000e+00 : f32
    %593 = vector.broadcast %cst_234 : f32 to vector<8x128xf32>
    %594 = arith.maximumf %592, %593 : vector<8x128xf32>
    %c0_235 = arith.constant 0 : index
    %c0_236 = arith.constant 0 : index
    %595 = vector.load %arg9[%c0_235, %c0_236] : memref<128x128xf32, #tpu.memory_space<vmem>>, vector<128x128xf32>
    %cst_237 = arith.constant dense<0.000000e+00> : vector<8x128xf32>
    %596 = tpu.matmul %594, %595, %cst_237 {dimension_numbers = #tpu.dot_dimension_numbers<[1], [0], [0], [1], [0, 0, 1, 1], [], []>} : vector<8x128xf32>, vector<128x128xf32>, vector<8x128xf32> -> vector<8x128xf32>
    %c0_238 = arith.constant 0 : index
    %c0_239 = arith.constant 0 : index
    %597 = vector.load %arg10[%c0_238, %c0_239] : memref<1x128xf32, #tpu.memory_space<vmem>>, vector<1x128xf32>
    %598 = vector.broadcast %597 : vector<1x128xf32> to vector<8x128xf32>
    %599 = arith.addf %596, %598 : vector<8x128xf32>
    %c0_240 = arith.constant 0 : index
    %c0_241 = arith.constant 0 : index
    %600 = vector.load %arg11[%c0_240, %c0_241] : memref<8x128xf32, #tpu.memory_space<vmem>>, vector<8x128xf32>
    tpu.vector_store %arg11[%c0_240, %c0_241], %599 {strides = array<i32>} : memref<8x128xf32, #tpu.memory_space<vmem>>, vector<8x128xf32>,
    return
  }
  func.func @transform_0(%arg0: i32) -> (i32, i32, i32) {
    %c0_i32 = arith.constant 0 : i32
    %c0_i32_0 = arith.constant 0 : i32
    %c0_i32_1 = arith.constant 0 : i32
    return %c0_i32, %arg0, %c0_i32_0 : i32, i32, i32
  }
  func.func @transform_1(%arg0: i32) -> (i32, i32) {
    %c0_i32 = arith.constant 0 : i32
    %c0_i32_0 = arith.constant 0 : i32
    %c0_i32_1 = arith.constant 0 : i32
    return %c0_i32, %c0_i32_0 : i32, i32
  }
  func.func @transform_2(%arg0: i32) -> (i32, i32) {
    %c0_i32 = arith.constant 0 : i32
    %c0_i32_0 = arith.constant 0 : i32
    %c0_i32_1 = arith.constant 0 : i32
    return %c0_i32, %c0_i32_0 : i32, i32
  }
  func.func @transform_3(%arg0: i32) -> (i32, i32) {
    %c0_i32 = arith.constant 0 : i32
    %c0_i32_0 = arith.constant 0 : i32
    %c0_i32_1 = arith.constant 0 : i32
    return %c0_i32, %c0_i32_0 : i32, i32
  }
  func.func @transform_4(%arg0: i32) -> (i32, i32) {
    %c0_i32 = arith.constant 0 : i32
    %c0_i32_0 = arith.constant 0 : i32
    %c0_i32_1 = arith.constant 0 : i32
    return %c0_i32, %c0_i32_0 : i32, i32
  }
  func.func @transform_5(%arg0: i32) -> (i32, i32) {
    %c0_i32 = arith.constant 0 : i32
    %c0_i32_0 = arith.constant 0 : i32
    %c0_i32_1 = arith.constant 0 : i32
    return %c0_i32, %c0_i32_0 : i32, i32
  }
  func.func @transform_6(%arg0: i32) -> (i32, i32) {
    %c0_i32 = arith.constant 0 : i32
    %c0_i32_0 = arith.constant 0 : i32
    %c0_i32_1 = arith.constant 0 : i32
    return %c0_i32, %c0_i32_0 : i32, i32
  }
  func.func @transform_7(%arg0: i32) -> (i32, i32) {
    %c0_i32 = arith.constant 0 : i32
    %c0_i32_0 = arith.constant 0 : i32
    %c0_i32_1 = arith.constant 0 : i32
    return %c0_i32, %c0_i32_0 : i32, i32
  }
  func.func @transform_8(%arg0: i32) -> (i32, i32) {
    %c0_i32 = arith.constant 0 : i32
    %c0_i32_0 = arith.constant 0 : i32
    %c0_i32_1 = arith.constant 0 : i32
    return %c0_i32, %c0_i32_0 : i32, i32
  }
  func.func @transform_9(%arg0: i32) -> (i32, i32) {
    %c0_i32 = arith.constant 0 : i32
    %c0_i32_0 = arith.constant 0 : i32
    %c0_i32_1 = arith.constant 0 : i32
    return %c0_i32, %c0_i32_0 : i32, i32
  }
  func.func @transform_10(%arg0: i32) -> (i32, i32) {
    %c0_i32 = arith.constant 0 : i32
    %c0_i32_0 = arith.constant 0 : i32
    return %arg0, %c0_i32 : i32, i32
  }
}

</mosaic_0001>

<llo_original>
// kernel: tpu_custom_call.1
$region0: #{tpu_custom_call.1}
  #allocation0 [shape = 'u32[]', space=smem, size = 0x4, offset = 0x4, fixed_abs, tag = 'smem constant byte address 0x4 - core index']
  #allocation1 [shape = 'u32[144,128]{1,0:T(1,128)}', space=vmem, size = 0x12000, scoped, tag = 'internal scratch']
  #allocation2 [shape = 'f32[64,1024]{1,0:T(8,128)}', space=vmem, size = 0x40000, scoped, tag = 'scratch operand']
  %s0 = inlined_call_operand.hbm [shape: f32[8,16,128], index: 0, kind: input, shape index: {}]
  %s1 = inlined_call_operand.hbm [shape: f32[128,1024], index: 1, kind: input, shape index: {}]
  %s2 = inlined_call_operand.hbm [shape: f32[1,1024], index: 2, kind: input, shape index: {}]
  %s3 = inlined_call_operand.hbm [shape: f32[128,512], index: 3, kind: input, shape index: {}]
  %s4 = inlined_call_operand.hbm [shape: f32[128,512], index: 4, kind: input, shape index: {}]
  %s5 = inlined_call_operand.hbm [shape: f32[128,128], index: 5, kind: input, shape index: {}]
  %s6 = inlined_call_operand.hbm [shape: f32[128,128], index: 6, kind: input, shape index: {}]
  %s7 = inlined_call_operand.vmem [shape: f32[1,128], index: 7, kind: input, shape index: {}]
  %s8 = inlined_call_operand.hbm [shape: f32[128,128], index: 8, kind: input, shape index: {}]
  %s9 = inlined_call_operand.vmem [shape: f32[1,128], index: 9, kind: input, shape index: {}]
  %s10 = inlined_call_operand.hbm [shape: f32[16,128], index: 10, kind: output, shape index: {}]
  %s11 = sld [smem:[#allocation0]]
  $region105: #{tpu_custom_call.1} parent=0
    _
  %s13 = ssub.s32 1, %s11
  %s14 = scalar_select 0, %s13, %s11
  $region1: #{tpu_custom_call.1} parent=0
    #allocation3 [shape = 'u8[65536]{0}', space=vmem, size = 0x10000, scoped, tag = 'input window, operand 0']
    #allocation4 [shape = 's32[2]{0}', space=sflag, size = 0x8, scoped, tag = 'scoped memory for tpu_custom_call.1']
    #allocation5 [shape = 's32[2]{0}', space=sflag, size = 0x8, scoped, tag = 'scoped memory for tpu_custom_call.1']
    #allocation6 [shape = 'u8[524288]{0}', space=vmem, size = 0x80000, scoped, tag = 'input window, operand 1, single buffered']
    #allocation7 [shape = 's32[1]{0}', space=sflag, size = 0x4, scoped, tag = 'scoped memory for tpu_custom_call.1']
    #allocation8 [shape = 'u8[4096]{0}', space=vmem, size = 0x1000, scoped, tag = 'input window, operand 2, single buffered']
    #allocation9 [shape = 'u8[262144]{0}', space=vmem, size = 0x40000, scoped, tag = 'input window, operand 3, single buffered']
    #allocation10 [shape = 's32[1]{0}', space=sflag, size = 0x4, scoped, tag = 'scoped memory for tpu_custom_call.1']
    #allocation11 [shape = 'u8[262144]{0}', space=vmem, size = 0x40000, scoped, tag = 'input window, operand 4, single buffered']
    #allocation12 [shape = 'u8[65536]{0}', space=vmem, size = 0x10000, scoped, tag = 'input window, operand 5, single buffered']
    #allocation13 [shape = 's32[1]{0}', space=sflag, size = 0x4, scoped, tag = 'scoped memory for tpu_custom_call.1']
    #allocation14 [shape = 'u8[65536]{0}', space=vmem, size = 0x10000, scoped, tag = 'input window, operand 6, single buffered']
    #allocation15 [shape = 'u8[65536]{0}', space=vmem, size = 0x10000, scoped, tag = 'input window, operand 8, single buffered']
    #allocation16 [shape = 's32[1]{0}', space=sflag, size = 0x4, scoped, tag = 'scoped memory for tpu_custom_call.1']
    #allocation17 [shape = 'u8[8192]{0}', space=vmem, size = 0x2000, scoped, tag = 'output window, operand 0']
    %15 = vsyncpa [#allocation4], 0
    %s16 = scalar_lea.sflag [#allocation4], 1
    %17 = vsyncpa %s16, 0
    %18 = vsyncpa [#allocation7], 0
    %19 = vsyncpa [#allocation10], 0
    %20 = vsyncpa [#allocation13], 0
    %21 = vsyncpa [#allocation16], 0
    %22 = vsyncpa [#allocation5], 0
    %s23 = scalar_lea.sflag [#allocation5], 1
    %24 = vsyncpa %s23, 0
    loop: start=0, step=1, limit=4
    $region2: #{tpu_custom_call.1} parent=1 // loop_pre_header
      _
    $region3: #{tpu_custom_call.1} parent=1 // loop_header
      %s26 = sphi 0, %s30
      %p27 = scmp.ge.s32.totalorder %s26, 4
      %s36 = sphi 0, %s38
      %s39 = sphi 0, %s36
      %s40 = sphi 0, %s39
      %s56 = sphi 0, %s40
      %s60 = sphi 0, %s60
      %s62 = sphi 0, %s60
      %s63 = sphi 0, %s62
      %s77 = sphi 0, %s63
      %s81 = sphi 0, %s81
      %s83 = sphi 0, %s81
      %s84 = sphi 0, %s83
      %s98 = sphi 0, %s84
      %s102 = sphi 0, %s102
      %s104 = sphi 0, %s102
      %s105 = sphi 0, %s104
      %s119 = sphi 0, %s105
      %s123 = sphi 0, %s123
      %s125 = sphi 0, %s123
      %s126 = sphi 0, %s125
      %s140 = sphi 0, %s126
      %s144 = sphi 0, %s144
      %s146 = sphi 0, %s144
      %s147 = sphi 0, %s146
      %s161 = sphi 0, %s147
      %s165 = sphi 0, %s165
      %s167 = sphi 0, %s165
      %s168 = sphi 0, %s167
      %s182 = sphi 0, %s168
      %s186 = sphi 0, %s186
      %s188 = sphi 0, %s186
      %s189 = sphi 0, %s188
      %s203 = sphi 0, %s189
      %s207 = sphi 0, %s207
      %s209 = sphi 0, %s207
      %s210 = sphi 0, %s209
      %s224 = sphi 0, %s210
      %s228 = sphi 0, %s228
      %s230 = sphi 0, %s228
      %s231 = sphi 0, %s230
      %s245 = sphi 0, %s231
      %s251 = sphi 0, %s253
      %s254 = sphi 0, %s251
      %s255 = sphi 0, %s254
      %s271 = sphi 0, %s255
    $region4: #{tpu_custom_call.1} parent=1 // loop_header_branch
      %29 = sbr.rel (%p27) target = $region8
    $region5: #{tpu_custom_call.1} parent=1 // loop_body
      %s31 = ssub.s32 %s26, 1
      %s32 = ssub.s32 %s26, 2
      %s33 = sadd.s32 %s26, 1
      %s34 = ssub.s32 %s26, %s33
      %p35 = scmp.eq.s32.totalorder %s34, 0
      %s37 = sadd.s32 %s36, 1
      %s38 = scalar_select %p35, %s36, %s37
      %p41 = pneg %p35
      %p42 = scmp.eq.s32.totalorder %s26, 1
      %p43 = por %p41, %p42
      %p44 = scmp.ne.s32.totalorder %s36, %s39
      %p45 = scmp.eq.s32.totalorder %s26, 0
      %p46 = por %p44, %p45
      %p47 = scmp.ne.s32.totalorder %s36, %s39
      %p48 = scmp.eq.s32.totalorder %s31, 1
      %p49 = por %p47, %p48
      %p50 = scmp.ne.s32.totalorder %s39, %s40
      %p51 = scmp.eq.s32.totalorder %s31, 0
      %p52 = por %p50, %p51
      %p53 = scmp.ne.s32.totalorder %s39, %s40
      %p54 = scmp.eq.s32.totalorder %s32, 1
      %p55 = por %p53, %p54
      %p57 = scmp.ne.s32.totalorder %s40, %s56
      %p58 = scmp.eq.s32.totalorder %s32, 0
      %p59 = por %p57, %p58
      %s61 = sadd.s32 %s60, 1
      %p64 = scmp.eq.s32.totalorder %s26, 1
      %p65 = scmp.ne.s32.totalorder %s60, %s62
      %p66 = scmp.eq.s32.totalorder %s26, 0
      %p67 = por %p65, %p66
      %p68 = scmp.ne.s32.totalorder %s60, %s62
      %p69 = scmp.eq.s32.totalorder %s31, 1
      %p70 = por %p68, %p69
      %p71 = scmp.ne.s32.totalorder %s62, %s63
      %p72 = scmp.eq.s32.totalorder %s31, 0
      %p73 = por %p71, %p72
      %p74 = scmp.ne.s32.totalorder %s62, %s63
      %p75 = scmp.eq.s32.totalorder %s32, 1
      %p76 = por %p74, %p75
      %p78 = scmp.ne.s32.totalorder %s63, %s77
      %p79 = scmp.eq.s32.totalorder %s32, 0
      %p80 = por %p78, %p79
      %s82 = sadd.s32 %s81, 1
      %p85 = scmp.eq.s32.totalorder %s26, 1
      %p86 = scmp.ne.s32.totalorder %s81, %s83
      %p87 = scmp.eq.s32.totalorder %s26, 0
      %p88 = por %p86, %p87
      %p89 = scmp.ne.s32.totalorder %s81, %s83
      %p90 = scmp.eq.s32.totalorder %s31, 1
      %p91 = por %p89, %p90
      %p92 = scmp.ne.s32.totalorder %s83, %s84
      %p93 = scmp.eq.s32.totalorder %s31, 0
      %p94 = por %p92, %p93
      %p95 = scmp.ne.s32.totalorder %s83, %s84
      %p96 = scmp.eq.s32.totalorder %s32, 1
      %p97 = por %p95, %p96
      %p99 = scmp.ne.s32.totalorder %s84, %s98
      %p100 = scmp.eq.s32.totalorder %s32, 0
      %p101 = por %p99, %p100
      %s103 = sadd.s32 %s102, 1
      %p106 = scmp.eq.s32.totalorder %s26, 1
      %p107 = scmp.ne.s32.totalorder %s102, %s104
      %p108 = scmp.eq.s32.totalorder %s26, 0
      %p109 = por %p107, %p108
      %p110 = scmp.ne.s32.totalorder %s102, %s104
      %p111 = scmp.eq.s32.totalorder %s31, 1
      %p112 = por %p110, %p111
      %p113 = scmp.ne.s32.totalorder %s104, %s105
      %p114 = scmp.eq.s32.totalorder %s31, 0
      %p115 = por %p113, %p114
      %p116 = scmp.ne.s32.totalorder %s104, %s105
      %p117 = scmp.eq.s32.totalorder %s32, 1
      %p118 = por %p116, %p117
      %p120 = scmp.ne.s32.totalorder %s105, %s119
      %p121 = scmp.eq.s32.totalorder %s32, 0
      %p122 = por %p120, %p121
      %s124 = sadd.s32 %s123, 1
      %p127 = scmp.eq.s32.totalorder %s26, 1
      %p128 = scmp.ne.s32.totalorder %s123, %s125
      %p129 = scmp.eq.s32.totalorder %s26, 0
      %p130 = por %p128, %p129
      %p131 = scmp.ne.s32.totalorder %s123, %s125
      %p132 = scmp.eq.s32.totalorder %s31, 1
      %p133 = por %p131, %p132
      %p134 = scmp.ne.s32.totalorder %s125, %s126
      %p135 = scmp.eq.s32.totalorder %s31, 0
      %p136 = por %p134, %p135
      %p137 = scmp.ne.s32.totalorder %s125, %s126
      %p138 = scmp.eq.s32.totalorder %s32, 1
      %p139 = por %p137, %p138
      %p141 = scmp.ne.s32.totalorder %s126, %s140
      %p142 = scmp.eq.s32.totalorder %s32, 0
      %p143 = por %p141, %p142
      %s145 = sadd.s32 %s144, 1
      %p148 = scmp.eq.s32.totalorder %s26, 1
      %p149 = scmp.ne.s32.totalorder %s144, %s146
      %p150 = scmp.eq.s32.totalorder %s26, 0
      %p151 = por %p149, %p150
      %p152 = scmp.ne.s32.totalorder %s144, %s146
      %p153 = scmp.eq.s32.totalorder %s31, 1
      %p154 = por %p152, %p153
      %p155 = scmp.ne.s32.totalorder %s146, %s147
      %p156 = scmp.eq.s32.totalorder %s31, 0
      %p157 = por %p155, %p156
      %p158 = scmp.ne.s32.totalorder %s146, %s147
      %p159 = scmp.eq.s32.totalorder %s32, 1
      %p160 = por %p158, %p159
      %p162 = scmp.ne.s32.totalorder %s147, %s161
      %p163 = scmp.eq.s32.totalorder %s32, 0
      %p164 = por %p162, %p163
      %s166 = sadd.s32 %s165, 1
      %p169 = scmp.eq.s32.totalorder %s26, 1
      %p170 = scmp.ne.s32.totalorder %s165, %s167
      %p171 = scmp.eq.s32.totalorder %s26, 0
      %p172 = por %p170, %p171
      %p173 = scmp.ne.s32.totalorder %s165, %s167
      %p174 = scmp.eq.s32.totalorder %s31, 1
      %p175 = por %p173, %p174
      %p176 = scmp.ne.s32.totalorder %s167, %s168
      %p177 = scmp.eq.s32.totalorder %s31, 0
      %p178 = por %p176, %p177
      %p179 = scmp.ne.s32.totalorder %s167, %s168
      %p180 = scmp.eq.s32.totalorder %s32, 1
      %p181 = por %p179, %p180
      %p183 = scmp.ne.s32.totalorder %s168, %s182
      %p184 = scmp.eq.s32.totalorder %s32, 0
      %p185 = por %p183, %p184
      %s187 = sadd.s32 %s186, 1
      %p190 = scmp.eq.s32.totalorder %s26, 1
      %p191 = scmp.ne.s32.totalorder %s186, %s188
      %p192 = scmp.eq.s32.totalorder %s26, 0
      %p193 = por %p191, %p192
      %p194 = scmp.ne.s32.totalorder %s186, %s188
      %p195 = scmp.eq.s32.totalorder %s31, 1
      %p196 = por %p194, %p195
      %p197 = scmp.ne.s32.totalorder %s188, %s189
      %p198 = scmp.eq.s32.totalorder %s31, 0
      %p199 = por %p197, %p198
      %p200 = scmp.ne.s32.totalorder %s188, %s189
      %p201 = scmp.eq.s32.totalorder %s32, 1
      %p202 = por %p200, %p201
      %p204 = scmp.ne.s32.totalorder %s189, %s203
      %p205 = scmp.eq.s32.totalorder %s32, 0
      %p206 = por %p204, %p205
      %s208 = sadd.s32 %s207, 1
      %p211 = scmp.eq.s32.totalorder %s26, 1
      %p212 = scmp.ne.s32.totalorder %s207, %s209
      %p213 = scmp.eq.s32.totalorder %s26, 0
      %p214 = por %p212, %p213
      %p215 = scmp.ne.s32.totalorder %s207, %s209
      %p216 = scmp.eq.s32.totalorder %s31, 1
      %p217 = por %p215, %p216
      %p218 = scmp.ne.s32.totalorder %s209, %s210
      %p219 = scmp.eq.s32.totalorder %s31, 0
      %p220 = por %p218, %p219
      %p221 = scmp.ne.s32.totalorder %s209, %s210
      %p222 = scmp.eq.s32.totalorder %s32, 1
      %p223 = por %p221, %p222
      %p225 = scmp.ne.s32.totalorder %s210, %s224
      %p226 = scmp.eq.s32.totalorder %s32, 0
      %p227 = por %p225, %p226
      %s229 = sadd.s32 %s228, 1
      %p232 = scmp.eq.s32.totalorder %s26, 1
      %p233 = scmp.ne.s32.totalorder %s228, %s230
      %p234 = scmp.eq.s32.totalorder %s26, 0
      %p235 = por %p233, %p234
      %p236 = scmp.ne.s32.totalorder %s228, %s230
      %p237 = scmp.eq.s32.totalorder %s31, 1
      %p238 = por %p236, %p237
      %p239 = scmp.ne.s32.totalorder %s230, %s231
      %p240 = scmp.eq.s32.totalorder %s31, 0
      %p241 = por %p239, %p240
      %p242 = scmp.ne.s32.totalorder %s230, %s231
      %p243 = scmp.eq.s32.totalorder %s32, 1
      %p244 = por %p242, %p243
      %p246 = scmp.ne.s32.totalorder %s231, %s245
      %p247 = scmp.eq.s32.totalorder %s32, 0
      %p248 = por %p246, %p247
      %s249 = ssub.s32 %s26, %s33
      %p250 = scmp.eq.s32.totalorder %s249, 0
      %s252 = sadd.s32 %s251, 1
      %s253 = scalar_select %p250, %s251, %s252
      %p256 = pneg %p250
      %p257 = scmp.eq.s32.totalorder %s26, 1
      %p258 = por %p256, %p257
      %p259 = scmp.ne.s32.totalorder %s251, %s254
      %p260 = scmp.eq.s32.totalorder %s26, 0
      %p261 = por %p259, %p260
      %p262 = scmp.ne.s32.totalorder %s251, %s254
      %p263 = scmp.eq.s32.totalorder %s31, 1
      %p264 = por %p262, %p263
      %p265 = scmp.ne.s32.totalorder %s254, %s255
      %p266 = scmp.eq.s32.totalorder %s31, 0
      %p267 = por %p265, %p266
      %p268 = scmp.ne.s32.totalorder %s254, %s255
      %p269 = scmp.eq.s32.totalorder %s32, 1
      %p270 = por %p268, %p269
      %p272 = scmp.ne.s32.totalorder %s255, %s271
      %p273 = scmp.eq.s32.totalorder %s32, 0
      %p274 = por %p272, %p273
      %p275 = scmp.le.s32.totalorder 1, %s26
      %p276 = scmp.lt.s32.totalorder %s26, 3
      %p277 = pnand %p275, %p276
      %p278 = pneg %p277
      // Predicated region
      $region9: #{tpu_custom_call.1} parent=5 // pred_check
        _
      $region10: #{tpu_custom_call.1} parent=5 // pred_check_branch
        %280 = sbr.rel (%p277) target = $region12
      $region11: #{tpu_custom_call.1} parent=5 // pred_region
        %s281 = ssub.s32 %s26, 1
        // Predicated region
        $region13: #{tpu_custom_call.1} parent=11 // pred_check
          %p282 = pneg %p73
        $region14: #{tpu_custom_call.1} parent=11 // pred_check_branch
          %284 = sbr.rel (%p282) target = $region16
        $region15: #{tpu_custom_call.1} parent=11 // pred_region
          %s286 = ssub.s32 16384, 16384
          %287 = vsyncadd [#allocation7], %s286
          %s288 = sshll.u32 [#allocation6], 4
          %s289 = int_to_ptr.vmem [resolvable:$true] %s288
          %294 = dma.hbm_to_vmem [thread:$0]  %s1, 16384, %s289, [#allocation7], 1024, 1024, 64
        $region16: #{tpu_custom_call.1} parent=11 // pred_fallthru
          _
        // Predicated region
        $region17: #{tpu_custom_call.1} parent=11 // pred_check
          %p295 = pneg %p94
        $region18: #{tpu_custom_call.1} parent=11 // pred_check_branch
          %297 = sbr.rel (%p295) target = $region20
        $region19: #{tpu_custom_call.1} parent=11 // pred_region
          %s299 = ssub.s32 128, 128
          %300 = vsyncadd [#allocation7], %s299
          %s302 = sshll.u32 [#allocation8], 4
          %s303 = int_to_ptr.vmem [resolvable:$true] %s302
          %305 = dma.hbm_to_vmem [thread:$0]  %s2, 128, %s303, [#allocation7]
        $region20: #{tpu_custom_call.1} parent=11 // pred_fallthru
          _
        // Predicated region
        $region21: #{tpu_custom_call.1} parent=11 // pred_check
          %p306 = pneg %p115
        $region22: #{tpu_custom_call.1} parent=11 // pred_check_branch
          %308 = sbr.rel (%p306) target = $region24
        $region23: #{tpu_custom_call.1} parent=11 // pred_region
          %s310 = ssub.s32 8192, 8192
          %311 = vsyncadd [#allocation10], %s310
          %s312 = sshll.u32 [#allocation9], 4
          %s313 = int_to_ptr.vmem [resolvable:$true] %s312
          %318 = dma.hbm_to_vmem [thread:$0]  %s3, 8192, %s313, [#allocation10], 512, 512, 32
        $region24: #{tpu_custom_call.1} parent=11 // pred_fallthru
          _
        // Predicated region
        $region25: #{tpu_custom_call.1} parent=11 // pred_check
          %p319 = pneg %p136
        $region26: #{tpu_custom_call.1} parent=11 // pred_check_branch
          %321 = sbr.rel (%p319) target = $region28
        $region27: #{tpu_custom_call.1} parent=11 // pred_region
          %s323 = ssub.s32 8192, 8192
          %324 = vsyncadd [#allocation10], %s323
          %s325 = sshll.u32 [#allocation11], 4
          %s326 = int_to_ptr.vmem [resolvable:$true] %s325
          %331 = dma.hbm_to_vmem [thread:$0]  %s4, 8192, %s326, [#allocation10], 512, 512, 32
        $region28: #{tpu_custom_call.1} parent=11 // pred_fallthru
          _
        // Predicated region
        $region29: #{tpu_custom_call.1} parent=11 // pred_check
          %p332 = pneg %p157
        $region30: #{tpu_custom_call.1} parent=11 // pred_check_branch
          %334 = sbr.rel (%p332) target = $region32
        $region31: #{tpu_custom_call.1} parent=11 // pred_region
          %s336 = ssub.s32 2048, 2048
          %337 = vsyncadd [#allocation13], %s336
          %s338 = sshll.u32 [#allocation12], 4
          %s339 = int_to_ptr.vmem [resolvable:$true] %s338
          %344 = dma.hbm_to_vmem [thread:$0]  %s5, 2048, %s339, [#allocation13], 128, 128, 8
        $region32: #{tpu_custom_call.1} parent=11 // pred_fallthru
          _
        // Predicated region
        $region33: #{tpu_custom_call.1} parent=11 // pred_check
          %p345 = pneg %p178
        $region34: #{tpu_custom_call.1} parent=11 // pred_check_branch
          %347 = sbr.rel (%p345) target = $region36
        $region35: #{tpu_custom_call.1} parent=11 // pred_region
          %s349 = ssub.s32 2048, 2048
          %350 = vsyncadd [#allocation13], %s349
          %s351 = sshll.u32 [#allocation14], 4
          %s352 = int_to_ptr.vmem [resolvable:$true] %s351
          %357 = dma.hbm_to_vmem [thread:$0]  %s6, 2048, %s352, [#allocation13], 128, 128, 8
        $region36: #{tpu_custom_call.1} parent=11 // pred_fallthru
          _
        // Predicated region
        $region37: #{tpu_custom_call.1} parent=11 // pred_check
          %p358 = pneg %p199
        $region38: #{tpu_custom_call.1} parent=11 // pred_check_branch
          %360 = sbr.rel (%p358) target = $region40
        $region39: #{tpu_custom_call.1} parent=11 // pred_region
          _
        $region40: #{tpu_custom_call.1} parent=11 // pred_fallthru
          _
        // Predicated region
        $region41: #{tpu_custom_call.1} parent=11 // pred_check
          %p361 = pneg %p220
        $region42: #{tpu_custom_call.1} parent=11 // pred_check_branch
          %363 = sbr.rel (%p361) target = $region44
        $region43: #{tpu_custom_call.1} parent=11 // pred_region
          %s365 = ssub.s32 2048, 2048
          %366 = vsyncadd [#allocation16], %s365
          %s367 = sshll.u32 [#allocation15], 4
          %s368 = int_to_ptr.vmem [resolvable:$true] %s367
          %373 = dma.hbm_to_vmem [thread:$0]  %s8, 2048, %s368, [#allocation16], 128, 128, 8
        $region44: #{tpu_custom_call.1} parent=11 // pred_fallthru
          _
        // Predicated region
        $region45: #{tpu_custom_call.1} parent=11 // pred_check
          %p374 = pneg %p241
        $region46: #{tpu_custom_call.1} parent=11 // pred_check_branch
          %376 = sbr.rel (%p374) target = $region48
        $region47: #{tpu_custom_call.1} parent=11 // pred_region
          _
        $region48: #{tpu_custom_call.1} parent=11 // pred_fallthru
          _
      $region12: #{tpu_custom_call.1} parent=5 // pred_fallthru
        _
      %p377 = scmp.lt.s32.totalorder %s26, 2
      // Predicated region
      $region49: #{tpu_custom_call.1} parent=5 // pred_check
        %p378 = pneg %p377
      $region50: #{tpu_custom_call.1} parent=5 // pred_check_branch
        %380 = sbr.rel (%p378) target = $region52
      $region51: #{tpu_custom_call.1} parent=5 // pred_region
        // Predicated region
        $region53: #{tpu_custom_call.1} parent=51 // pred_check
          %p381 = pneg %p46
        $region54: #{tpu_custom_call.1} parent=51 // pred_check_branch
          %383 = sbr.rel (%p381) target = $region56
        $region55: #{tpu_custom_call.1} parent=51 // pred_region
          %s384 = sand.u32 %s36, 1
          %s385 = scalar_lea.sflag [#allocation4], %s384
          %s386 = sand.u32 %s36, 1
          %s387 = smul.addr %s386, 64
          %s388 = scalar_lea.vmem [#allocation3], %s387
          %s390 = ssub.s32 1024, 1024
          %391 = vsyncadd %s385, %s390
          %s392 = smul.addr %s26, 128
          %s393 = scalar_lea.hbm %s0, %s392
          %s394 = sshll.u32 %s388, 4
          %s395 = int_to_ptr.vmem [resolvable:$true] %s394
          %400 = dma.hbm_to_vmem [thread:$0]  %s393, 1024, %s395, %s385, 256, 128, 8
        $region56: #{tpu_custom_call.1} parent=51 // pred_fallthru
          _
      $region52: #{tpu_custom_call.1} parent=5 // pred_fallthru
        _
      %p401 = scmp.le.s32.totalorder 1, %s26
      %p402 = scmp.lt.s32.totalorder %s26, 3
      %p403 = pnand %p401, %p402
      %p404 = pneg %p403
      // Predicated region
      $region57: #{tpu_custom_call.1} parent=5 // pred_check
        _
      $region58: #{tpu_custom_call.1} parent=5 // pred_check_branch
        %406 = sbr.rel (%p403) target = $region60
      $region59: #{tpu_custom_call.1} parent=5 // pred_region
        %s407 = ssub.s32 %s26, 1
        %s408 = sand.u32 %s39, 1
        %s409 = scalar_lea.sflag [#allocation4], %s408
        %s410 = sand.u32 %s39, 1
        %s411 = smul.addr %s410, 64
        %s412 = scalar_lea.vmem [#allocation3], %s411
        // Predicated region
        $region61: #{tpu_custom_call.1} parent=59 // pred_check
          %p413 = pneg %p52
        $region62: #{tpu_custom_call.1} parent=59 // pred_check_branch
          %415 = sbr.rel (%p413) target = $region64
        $region63: #{tpu_custom_call.1} parent=59 // pred_region
          %416 = dma.done %s409, 1024
        $region64: #{tpu_custom_call.1} parent=59 // pred_fallthru
          _
        // Predicated region
        $region65: #{tpu_custom_call.1} parent=59 // pred_check
          %p417 = pneg %p73
        $region66: #{tpu_custom_call.1} parent=59 // pred_check_branch
          %419 = sbr.rel (%p417) target = $region68
        $region67: #{tpu_custom_call.1} parent=59 // pred_region
          %420 = dma.done [#allocation7], 16384
        $region68: #{tpu_custom_call.1} parent=59 // pred_fallthru
          _
        // Predicated region
        $region69: #{tpu_custom_call.1} parent=59 // pred_check
          %p421 = pneg %p94
        $region70: #{tpu_custom_call.1} parent=59 // pred_check_branch
          %423 = sbr.rel (%p421) target = $region72
        $region71: #{tpu_custom_call.1} parent=59 // pred_region
          %424 = dma.done [#allocation7], 128
        $region72: #{tpu_custom_call.1} parent=59 // pred_fallthru
          _
        // Predicated region
        $region73: #{tpu_custom_call.1} parent=59 // pred_check
          %p425 = pneg %p115
        $region74: #{tpu_custom_call.1} parent=59 // pred_check_branch
          %427 = sbr.rel (%p425) target = $region76
        $region75: #{tpu_custom_call.1} parent=59 // pred_region
          %428 = dma.done [#allocation10], 8192
        $region76: #{tpu_custom_call.1} parent=59 // pred_fallthru
          _
        // Predicated region
        $region77: #{tpu_custom_call.1} parent=59 // pred_check
          %p429 = pneg %p136
        $region78: #{tpu_custom_call.1} parent=59 // pred_check_branch
          %431 = sbr.rel (%p429) target = $region80
        $region79: #{tpu_custom_call.1} parent=59 // pred_region
          %432 = dma.done [#allocation10], 8192
        $region80: #{tpu_custom_call.1} parent=59 // pred_fallthru
          _
        // Predicated region
        $region81: #{tpu_custom_call.1} parent=59 // pred_check
          %p433 = pneg %p157
        $region82: #{tpu_custom_call.1} parent=59 // pred_check_branch
          %435 = sbr.rel (%p433) target = $region84
        $region83: #{tpu_custom_call.1} parent=59 // pred_region
          %436 = dma.done [#allocation13], 2048
        $region84: #{tpu_custom_call.1} parent=59 // pred_fallthru
          _
        // Predicated region
        $region85: #{tpu_custom_call.1} parent=59 // pred_check
          %p437 = pneg %p178
        $region86: #{tpu_custom_call.1} parent=59 // pred_check_branch
          %439 = sbr.rel (%p437) target = $region88
        $region87: #{tpu_custom_call.1} parent=59 // pred_region
          %440 = dma.done [#allocation13], 2048
        $region88: #{tpu_custom_call.1} parent=59 // pred_fallthru
          _
        // Predicated region
        $region89: #{tpu_custom_call.1} parent=59 // pred_check
          %p441 = pneg %p220
        $region90: #{tpu_custom_call.1} parent=59 // pred_check_branch
          %443 = sbr.rel (%p441) target = $region92
        $region91: #{tpu_custom_call.1} parent=59 // pred_region
          %444 = dma.done [#allocation16], 2048
        $region92: #{tpu_custom_call.1} parent=59 // pred_fallthru
          _
        %s445 = sand.u32 %s39, 1
        %s446 = scalar_lea.sflag [#allocation4], %s445
        %s447 = sand.u32 %s39, 1
        %s448 = smul.addr %s447, 64
        %s449 = scalar_lea.vmem [#allocation3], %s448
        %p450 = pneg %p52
        %p451 = pneg %p49
        %p452 = pneg %p73
        %p453 = pneg %p70
        %p454 = pneg %p94
        %p455 = pneg %p91
        %p456 = pneg %p115
        %p457 = pneg %p112
        %p458 = pneg %p136
        %p459 = pneg %p133
        %p460 = pneg %p157
        %p461 = pneg %p154
        %p462 = pneg %p178
        %p463 = pneg %p175
        %p464 = pneg %p199
        %p465 = pneg %p196
        %p466 = pneg %p220
        %p467 = pneg %p217
        %p468 = pneg %p241
        %p469 = pneg %p238
        %p470 = pneg %p267
        %p471 = pneg %p264
        %s472 = sand.u32 %s254, 1
        %s473 = scalar_lea.sflag [#allocation5], %s472
        %s474 = sand.u32 %s254, 1
        %s475 = smul.addr %s474, 8
        %s476 = scalar_lea.vmem [#allocation17], %s475
        %v477 = vld [vmem:[%s412] sm:$0xff]
        %v478 = vld [vmem:[%s412 + $0x8] sm:$0xff]
        %v479 = vld [vmem:[%s412 + $0x10] sm:$0xff]
        %v480 = vld [vmem:[%s412 + $0x18] sm:$0xff]
        %v481 = vld [vmem:[%s412 + $0x20] sm:$0xff]
        %v482 = vld [vmem:[%s412 + $0x28] sm:$0xff]
        %v483 = vld [vmem:[%s412 + $0x30] sm:$0xff]
        %v484 = vld [vmem:[%s412 + $0x38] sm:$0xff]
        %v485 = vld [vmem:[#allocation6] sm:$0xff]
        %v486 = vld [vmem:[#allocation6 + $0x8] sm:$0xff]
        %v487 = vld [vmem:[#allocation6 + $0x10] sm:$0xff]
        %v488 = vld [vmem:[#allocation6 + $0x18] sm:$0xff]
        %v489 = vld [vmem:[#allocation6 + $0x20] sm:$0xff]
        %v490 = vld [vmem:[#allocation6 + $0x28] sm:$0xff]
        %v491 = vld [vmem:[#allocation6 + $0x30] sm:$0xff]
        %v492 = vld [vmem:[#allocation6 + $0x38] sm:$0xff]
        %v493 = vld [vmem:[#allocation6 + $0x40] sm:$0xff]
        %v494 = vld [vmem:[#allocation6 + $0x48] sm:$0xff]
        %v495 = vld [vmem:[#allocation6 + $0x50] sm:$0xff]
        %v496 = vld [vmem:[#allocation6 + $0x58] sm:$0xff]
        %v497 = vld [vmem:[#allocation6 + $0x60] sm:$0xff]
        %v498 = vld [vmem:[#allocation6 + $0x68] sm:$0xff]
        %v499 = vld [vmem:[#allocation6 + $0x70] sm:$0xff]
        %v500 = vld [vmem:[#allocation6 + $0x78] sm:$0xff]
        %v501 = vld [vmem:[#allocation6 + $0x80] sm:$0xff]
        %v502 = vld [vmem:[#allocation6 + $0x88] sm:$0xff]
        %v503 = vld [vmem:[#allocation6 + $0x90] sm:$0xff]
        %v504 = vld [vmem:[#allocation6 + $0x98] sm:$0xff]
        %v505 = vld [vmem:[#allocation6 + $0xa0] sm:$0xff]
        %v506 = vld [vmem:[#allocation6 + $0xa8] sm:$0xff]
        %v507 = vld [vmem:[#allocation6 + $0xb0] sm:$0xff]
        %v508 = vld [vmem:[#allocation6 + $0xb8] sm:$0xff]
        %v509 = vld [vmem:[#allocation6 + $0xc0] sm:$0xff]
        %v510 = vld [vmem:[#allocation6 + $0xc8] sm:$0xff]
        %v511 = vld [vmem:[#allocation6 + $0xd0] sm:$0xff]
        %v512 = vld [vmem:[#allocation6 + $0xd8] sm:$0xff]
        %v513 = vld [vmem:[#allocation6 + $0xe0] sm:$0xff]
        %v514 = vld [vmem:[#allocation6 + $0xe8] sm:$0xff]
        %v515 = vld [vmem:[#allocation6 + $0xf0] sm:$0xff]
        %v516 = vld [vmem:[#allocation6 + $0xf8] sm:$0xff]
        %v517 = vld [vmem:[#allocation6 + $0x100] sm:$0xff]
        %v518 = vld [vmem:[#allocation6 + $0x108] sm:$0xff]
        %v519 = vld [vmem:[#allocation6 + $0x110] sm:$0xff]
        %v520 = vld [vmem:[#allocation6 + $0x118] sm:$0xff]
        %v521 = vld [vmem:[#allocation6 + $0x120] sm:$0xff]
        %v522 = vld [vmem:[#allocation6 + $0x128] sm:$0xff]
        %v523 = vld [vmem:[#allocation6 + $0x130] sm:$0xff]
        %v524 = vld [vmem:[#allocation6 + $0x138] sm:$0xff]
        %v525 = vld [vmem:[#allocation6 + $0x140] sm:$0xff]
        %v526 = vld [vmem:[#allocation6 + $0x148] sm:$0xff]
        %v527 = vld [vmem:[#allocation6 + $0x150] sm:$0xff]
        %v528 = vld [vmem:[#allocation6 + $0x158] sm:$0xff]
        %v529 = vld [vmem:[#allocation6 + $0x160] sm:$0xff]
        %v530 = vld [vmem:[#allocation6 + $0x168] sm:$0xff]
        %v531 = vld [vmem:[#allocation6 + $0x170] sm:$0xff]
        %v532 = vld [vmem:[#allocation6 + $0x178] sm:$0xff]
        %v533 = vld [vmem:[#allocation6 + $0x180] sm:$0xff]
        %v534 = vld [vmem:[#allocation6 + $0x188] sm:$0xff]
        %v535 = vld [vmem:[#allocation6 + $0x190] sm:$0xff]
        %v536 = vld [vmem:[#allocation6 + $0x198] sm:$0xff]
        %v537 = vld [vmem:[#allocation6 + $0x1a0] sm:$0xff]
        %v538 = vld [vmem:[#allocation6 + $0x1a8] sm:$0xff]
        %v539 = vld [vmem:[#allocation6 + $0x1b0] sm:$0xff]
        %v540 = vld [vmem:[#allocation6 + $0x1b8] sm:$0xff]
        %v541 = vld [vmem:[#allocation6 + $0x1c0] sm:$0xff]
        %v542 = vld [vmem:[#allocation6 + $0x1c8] sm:$0xff]
        %v543 = vld [vmem:[#allocation6 + $0x1d0] sm:$0xff]
        %v544 = vld [vmem:[#allocation6 + $0x1d8] sm:$0xff]
        %v545 = vld [vmem:[#allocation6 + $0x1e0] sm:$0xff]
        %v546 = vld [vmem:[#allocation6 + $0x1e8] sm:$0xff]
        %v547 = vld [vmem:[#allocation6 + $0x1f0] sm:$0xff]
        %v548 = vld [vmem:[#allocation6 + $0x1f8] sm:$0xff]
        %v549 = vld [vmem:[#allocation6 + $0x200] sm:$0xff]
        %v550 = vld [vmem:[#allocation6 + $0x208] sm:$0xff]
        %v551 = vld [vmem:[#allocation6 + $0x210] sm:$0xff]
        %v552 = vld [vmem:[#allocation6 + $0x218] sm:$0xff]
        %v553 = vld [vmem:[#allocation6 + $0x220] sm:$0xff]
        %v554 = vld [vmem:[#allocation6 + $0x228] sm:$0xff]
        %v555 = vld [vmem:[#allocation6 + $0x230] sm:$0xff]
        %v556 = vld [vmem:[#allocation6 + $0x238] sm:$0xff]
        %v557 = vld [vmem:[#allocation6 + $0x240] sm:$0xff]
        %v558 = vld [vmem:[#allocation6 + $0x248] sm:$0xff]
        %v559 = vld [vmem:[#allocation6 + $0x250] sm:$0xff]
        %v560 = vld [vmem:[#allocation6 + $0x258] sm:$0xff]
        %v561 = vld [vmem:[#allocation6 + $0x260] sm:$0xff]
        %v562 = vld [vmem:[#allocation6 + $0x268] sm:$0xff]
        %v563 = vld [vmem:[#allocation6 + $0x270] sm:$0xff]
        %v564 = vld [vmem:[#allocation6 + $0x278] sm:$0xff]
        %v565 = vld [vmem:[#allocation6 + $0x280] sm:$0xff]
        %v566 = vld [vmem:[#allocation6 + $0x288] sm:$0xff]
        %v567 = vld [vmem:[#allocation6 + $0x290] sm:$0xff]
        %v568 = vld [vmem:[#allocation6 + $0x298] sm:$0xff]
        %v569 = vld [vmem:[#allocation6 + $0x2a0] sm:$0xff]
        %v570 = vld [vmem:[#allocation6 + $0x2a8] sm:$0xff]
        %v571 = vld [vmem:[#allocation6 + $0x2b0] sm:$0xff]
        %v572 = vld [vmem:[#allocation6 + $0x2b8] sm:$0xff]
        %v573 = vld [vmem:[#allocation6 + $0x2c0] sm:$0xff]
        %v574 = vld [vmem:[#allocation6 + $0x2c8] sm:$0xff]
        %v575 = vld [vmem:[#allocation6 + $0x2d0] sm:$0xff]
        %v576 = vld [vmem:[#allocation6 + $0x2d8] sm:$0xff]
        %v577 = vld [vmem:[#allocation6 + $0x2e0] sm:$0xff]
        %v578 = vld [vmem:[#allocation6 + $0x2e8] sm:$0xff]
        %v579 = vld [vmem:[#allocation6 + $0x2f0] sm:$0xff]
        %v580 = vld [vmem:[#allocation6 + $0x2f8] sm:$0xff]
        %v581 = vld [vmem:[#allocation6 + $0x300] sm:$0xff]
        %v582 = vld [vmem:[#allocation6 + $0x308] sm:$0xff]
        %v583 = vld [vmem:[#allocation6 + $0x310] sm:$0xff]
        %v584 = vld [vmem:[#allocation6 + $0x318] sm:$0xff]
        %v585 = vld [vmem:[#allocation6 + $0x320] sm:$0xff]
        %v586 = vld [vmem:[#allocation6 + $0x328] sm:$0xff]
        %v587 = vld [vmem:[#allocation6 + $0x330] sm:$0xff]
        %v588 = vld [vmem:[#allocation6 + $0x338] sm:$0xff]
        %v589 = vld [vmem:[#allocation6 + $0x340] sm:$0xff]
        %v590 = vld [vmem:[#allocation6 + $0x348] sm:$0xff]
        %v591 = vld [vmem:[#allocation6 + $0x350] sm:$0xff]
        %v592 = vld [vmem:[#allocation6 + $0x358] sm:$0xff]
        %v593 = vld [vmem:[#allocation6 + $0x360] sm:$0xff]
        %v594 = vld [vmem:[#allocation6 + $0x368] sm:$0xff]
        %v595 = vld [vmem:[#allocation6 + $0x370] sm:$0xff]
        %v596 = vld [vmem:[#allocation6 + $0x378] sm:$0xff]
        %v597 = vld [vmem:[#allocation6 + $0x380] sm:$0xff]
        %v598 = vld [vmem:[#allocation6 + $0x388] sm:$0xff]
        %v599 = vld [vmem:[#allocation6 + $0x390] sm:$0xff]
        %v600 = vld [vmem:[#allocation6 + $0x398] sm:$0xff]
        %v601 = vld [vmem:[#allocation6 + $0x3a0] sm:$0xff]
        %v602 = vld [vmem:[#allocation6 + $0x3a8] sm:$0xff]
        %v603 = vld [vmem:[#allocation6 + $0x3b0] sm:$0xff]
        %v604 = vld [vmem:[#allocation6 + $0x3b8] sm:$0xff]
        %v605 = vld [vmem:[#allocation6 + $0x3c0] sm:$0xff]
        %v606 = vld [vmem:[#allocation6 + $0x3c8] sm:$0xff]
        %v607 = vld [vmem:[#allocation6 + $0x3d0] sm:$0xff]
        %v608 = vld [vmem:[#allocation6 + $0x3d8] sm:$0xff]
        %v609 = vld [vmem:[#allocation6 + $0x3e0] sm:$0xff]
        %v610 = vld [vmem:[#allocation6 + $0x3e8] sm:$0xff]
        %v611 = vld [vmem:[#allocation6 + $0x3f0] sm:$0xff]
        %v612 = vld [vmem:[#allocation6 + $0x3f8] sm:$0xff]
        %v613 = vld [vmem:[#allocation8] sm:$0xff]
        %v615 = vlaneseq
        %v616 = vshrl.u32 %v615, 7
        %v617 = vsub.s32 0, %v616
        %v618 = vrot.slane %v613, %v617
        %v619 = vlaneseq
        %v620 = vshrl.u32 %v619, 7
        %v621 = vsub.s32 1, %v620
        %v622 = vrot.slane %v613, %v621
        %v623 = vlaneseq
        %v624 = vshrl.u32 %v623, 7
        %v625 = vsub.s32 2, %v624
        %v626 = vrot.slane %v613, %v625
        %v627 = vlaneseq
        %v628 = vshrl.u32 %v627, 7
        %v629 = vsub.s32 3, %v628
        %v630 = vrot.slane %v613, %v629
        %v631 = vlaneseq
        %v632 = vshrl.u32 %v631, 7
        %v633 = vsub.s32 4, %v632
        %v634 = vrot.slane %v613, %v633
        %v635 = vlaneseq
        %v636 = vshrl.u32 %v635, 7
        %v637 = vsub.s32 5, %v636
        %v638 = vrot.slane %v613, %v637
        %v639 = vlaneseq
        %v640 = vshrl.u32 %v639, 7
        %v641 = vsub.s32 6, %v640
        %v642 = vrot.slane %v613, %v641
        %v643 = vlaneseq
        %v644 = vshrl.u32 %v643, 7
        %v645 = vsub.s32 7, %v644
        %v646 = vrot.slane %v613, %v645
        %655 = vmatprep.subr.mxu0 %v606
        %656 = vmatpush1.msra.mxu0 %v605
        %657 = vmatprep.subr.mxu0 %v598
        %658 = vmatpush1.msra.mxu0 %v597
        %659 = vmatprep.subr.mxu0 %v590
        %660 = vmatpush1.msra.mxu0 %v589
        %661 = vmatprep.subr.mxu0 %v582
        %662 = vmatpush1.msra.mxu0 %v581
        %663 = vmatprep.subr.mxu0 %v574
        %664 = vmatpush1.msra.mxu0 %v573
        %665 = vmatprep.subr.mxu0 %v566
        %666 = vmatpush1.msra.mxu0 %v565
        %667 = vmatprep.subr.mxu0 %v558
        %668 = vmatpush1.msra.mxu0 %v557
        %669 = vmatprep.subr.mxu0 %v550
        %670 = vmatpush1.msra.mxu0 %v549
        %671 = vmatprep.subr.mxu0 %v542
        %672 = vmatpush1.msra.mxu0 %v541
        %673 = vmatprep.subr.mxu0 %v534
        %674 = vmatpush1.msra.mxu0 %v533
        %675 = vmatprep.subr.mxu0 %v526
        %676 = vmatpush1.msra.mxu0 %v525
        %677 = vmatprep.subr.mxu0 %v518
        %678 = vmatpush1.msra.mxu0 %v517
        %679 = vmatprep.subr.mxu0 %v510
        %680 = vmatpush1.msra.mxu0 %v509
        %681 = vmatprep.subr.mxu0 %v502
        %682 = vmatpush1.msra.mxu0 %v501
        %683 = vmatprep.subr.mxu0 %v494
        %684 = vmatpush1.msra.mxu0 %v493
        %685 = vmatprep.subr.mxu0 %v486
        %686 = vmatpush1.msra.mxu0 %v485
        %687 = vmatprep.subr.mxu0 0.0
        %688 = vmatpush2.msra.mxu0 0.0
        %689 = vmatprep.subr.mxu0 0.0
        %690 = vmatpush2.msra.mxu0 0.0
        %691 = vmatprep.subr.mxu0 0.0
        %692 = vmatpush2.msra.mxu0 0.0
        %693 = vmatprep.subr.mxu0 0.0
        %694 = vmatpush2.msra.mxu0 0.0
        %695 = vmatprep.subr.mxu0 0.0
        %696 = vmatpush2.msra.mxu0 0.0
        %697 = vmatprep.subr.mxu0 0.0
        %698 = vmatpush2.msra.mxu0 0.0
        %699 = vmatprep.subr.mxu0 0.0
        %700 = vmatpush2.msra.mxu0 0.0
        %701 = vmatprep.subr.mxu0 0.0
        %702 = vmatpush2.msra.mxu0 0.0
        %703 = vmatprep.subr.mxu0 0.0
        %704 = vmatpush2.msra.mxu0 0.0
        %705 = vmatprep.subr.mxu0 0.0
        %706 = vmatpush2.msra.mxu0 0.0
        %707 = vmatprep.subr.mxu0 0.0
        %708 = vmatpush2.msra.mxu0 0.0
        %709 = vmatprep.subr.mxu0 0.0
        %710 = vmatpush2.msra.mxu0 0.0
        %711 = vmatprep.subr.mxu0 0.0
        %712 = vmatpush2.msra.mxu0 0.0
        %713 = vmatprep.subr.mxu0 0.0
        %714 = vmatpush2.msra.mxu0 0.0
        %715 = vmatprep.subr.mxu0 0.0
        %716 = vmatpush2.msra.mxu0 0.0
        %717 = vmatprep.subr.mxu0 0.0
        %718 = vmatpush2.msra.mxu0 0.0
        %719 = vmatprep.mubr.f32.mxu0 0.0
        %720 = vmatmul.mubr.f32.gmra.mxu0 %v477
        %v721 = vpop.f32.mrf.mxu0
        %v722 = vadd.f32 %v618, %v721
        %v723 = vpop.f32.mrf.mxu0
        %v724 = vadd.f32 %v622, %v723
        %725 = vmatprep.mubr.f32.mxu0 0.0
        %726 = vmatmul.mubr.f32.gmra.mxu0 %v478
        %v727 = vpop.f32.mrf.mxu0
        %v728 = vadd.f32 %v618, %v727
        %v729 = vpop.f32.mrf.mxu0
        %v730 = vadd.f32 %v622, %v729
        %731 = vmatprep.mubr.f32.mxu0 0.0
        %732 = vmatmul.mubr.f32.gmra.mxu0 %v479
        %v733 = vpop.f32.mrf.mxu0
        %v734 = vadd.f32 %v618, %v733
        %v735 = vpop.f32.mrf.mxu0
        %v736 = vadd.f32 %v622, %v735
        %737 = vmatprep.mubr.f32.mxu0 0.0
        %738 = vmatmul.mubr.f32.gmra.mxu0 %v480
        %v739 = vpop.f32.mrf.mxu0
        %v740 = vadd.f32 %v618, %v739
        %v741 = vpop.f32.mrf.mxu0
        %v742 = vadd.f32 %v622, %v741
        %743 = vmatprep.mubr.f32.mxu0 0.0
        %744 = vmatmul.mubr.f32.gmra.mxu0 %v481
        %v745 = vpop.f32.mrf.mxu0
        %v746 = vadd.f32 %v618, %v745
        %v747 = vpop.f32.mrf.mxu0
        %v748 = vadd.f32 %v622, %v747
        %749 = vmatprep.mubr.f32.mxu0 0.0
        %750 = vmatmul.mubr.f32.gmra.mxu0 %v482
        %v751 = vpop.f32.mrf.mxu0
        %v752 = vadd.f32 %v618, %v751
        %v753 = vpop.f32.mrf.mxu0
        %v754 = vadd.f32 %v622, %v753
        %755 = vmatprep.mubr.f32.mxu0 0.0
        %756 = vmatmul.mubr.f32.gmra.mxu0 %v483
        %v757 = vpop.f32.mrf.mxu0
        %v758 = vadd.f32 %v618, %v757
        %v759 = vpop.f32.mrf.mxu0
        %v760 = vadd.f32 %v622, %v759
        %761 = vmatprep.mubr.f32.mxu0 0.0
        %762 = vmatmul.mubr.f32.gmra.mxu0 %v484
        %v763 = vpop.f32.mrf.mxu0
        %v764 = vadd.f32 %v618, %v763
        %v765 = vpop.f32.mrf.mxu0
        %v766 = vadd.f32 %v622, %v765
        %767 = vdwg.mxu0
        %768 = vmatprep.subr.mxu0 %v608
        %769 = vmatpush1.msra.mxu0 %v607
        %770 = vmatprep.subr.mxu0 %v600
        %771 = vmatpush1.msra.mxu0 %v599
        %772 = vmatprep.subr.mxu0 %v592
        %773 = vmatpush1.msra.mxu0 %v591
        %774 = vmatprep.subr.mxu0 %v584
        %775 = vmatpush1.msra.mxu0 %v583
        %776 = vmatprep.subr.mxu0 %v576
        %777 = vmatpush1.msra.mxu0 %v575
        %778 = vmatprep.subr.mxu0 %v568
        %779 = vmatpush1.msra.mxu0 %v567
        %780 = vmatprep.subr.mxu0 %v560
        %781 = vmatpush1.msra.mxu0 %v559
        %782 = vmatprep.subr.mxu0 %v552
        %783 = vmatpush1.msra.mxu0 %v551
        %784 = vmatprep.subr.mxu0 %v544
        %785 = vmatpush1.msra.mxu0 %v543
        %786 = vmatprep.subr.mxu0 %v536
        %787 = vmatpush1.msra.mxu0 %v535
        %788 = vmatprep.subr.mxu0 %v528
        %789 = vmatpush1.msra.mxu0 %v527
        %790 = vmatprep.subr.mxu0 %v520
        %791 = vmatpush1.msra.mxu0 %v519
        %792 = vmatprep.subr.mxu0 %v512
        %793 = vmatpush1.msra.mxu0 %v511
        %794 = vmatprep.subr.mxu0 %v504
        %795 = vmatpush1.msra.mxu0 %v503
        %796 = vmatprep.subr.mxu0 %v496
        %797 = vmatpush1.msra.mxu0 %v495
        %798 = vmatprep.subr.mxu0 %v488
        %799 = vmatpush1.msra.mxu0 %v487
        %800 = vmatprep.subr.mxu0 0.0
        %801 = vmatpush2.msra.mxu0 0.0
        %802 = vmatprep.subr.mxu0 0.0
        %803 = vmatpush2.msra.mxu0 0.0
        %804 = vmatprep.subr.mxu0 0.0
        %805 = vmatpush2.msra.mxu0 0.0
        %806 = vmatprep.subr.mxu0 0.0
        %807 = vmatpush2.msra.mxu0 0.0
        %808 = vmatprep.subr.mxu0 0.0
        %809 = vmatpush2.msra.mxu0 0.0
        %810 = vmatprep.subr.mxu0 0.0
        %811 = vmatpush2.msra.mxu0 0.0
        %812 = vmatprep.subr.mxu0 0.0
        %813 = vmatpush2.msra.mxu0 0.0
        %814 = vmatprep.subr.mxu0 0.0
        %815 = vmatpush2.msra.mxu0 0.0
        %816 = vmatprep.subr.mxu0 0.0
        %817 = vmatpush2.msra.mxu0 0.0
        %818 = vmatprep.subr.mxu0 0.0
        %819 = vmatpush2.msra.mxu0 0.0
        %820 = vmatprep.subr.mxu0 0.0
        %821 = vmatpush2.msra.mxu0 0.0
        %822 = vmatprep.subr.mxu0 0.0
        %823 = vmatpush2.msra.mxu0 0.0
        %824 = vmatprep.subr.mxu0 0.0
        %825 = vmatpush2.msra.mxu0 0.0
        %826 = vmatprep.subr.mxu0 0.0
        %827 = vmatpush2.msra.mxu0 0.0
        %828 = vmatprep.subr.mxu0 0.0
        %829 = vmatpush2.msra.mxu0 0.0
        %830 = vmatprep.subr.mxu0 0.0
        %831 = vmatpush2.msra.mxu0 0.0
        %832 = vmatprep.mubr.f32.mxu0 0.0
        %833 = vmatmul.mubr.f32.gmra.mxu0 %v477
        %v834 = vpop.f32.mrf.mxu0
        %v835 = vadd.f32 %v626, %v834
        %v836 = vpop.f32.mrf.mxu0
        %v837 = vadd.f32 %v630, %v836
        %838 = vmatprep.mubr.f32.mxu0 0.0
        %839 = vmatmul.mubr.f32.gmra.mxu0 %v478
        %v840 = vpop.f32.mrf.mxu0
        %v841 = vadd.f32 %v626, %v840
        %v842 = vpop.f32.mrf.mxu0
        %v843 = vadd.f32 %v630, %v842
        %844 = vmatprep.mubr.f32.mxu0 0.0
        %845 = vmatmul.mubr.f32.gmra.mxu0 %v479
        %v846 = vpop.f32.mrf.mxu0
        %v847 = vadd.f32 %v626, %v846
        %v848 = vpop.f32.mrf.mxu0
        %v849 = vadd.f32 %v630, %v848
        %850 = vmatprep.mubr.f32.mxu0 0.0
        %851 = vmatmul.mubr.f32.gmra.mxu0 %v480
        %v852 = vpop.f32.mrf.mxu0
        %v853 = vadd.f32 %v626, %v852
        %v854 = vpop.f32.mrf.mxu0
        %v855 = vadd.f32 %v630, %v854
        %856 = vmatprep.mubr.f32.mxu0 0.0
        %857 = vmatmul.mubr.f32.gmra.mxu0 %v481
        %v858 = vpop.f32.mrf.mxu0
        %v859 = vadd.f32 %v626, %v858
        %v860 = vpop.f32.mrf.mxu0
        %v861 = vadd.f32 %v630, %v860
        %862 = vmatprep.mubr.f32.mxu0 0.0
        %863 = vmatmul.mubr.f32.gmra.mxu0 %v482
        %v864 = vpop.f32.mrf.mxu0
        %v865 = vadd.f32 %v626, %v864
        %v866 = vpop.f32.mrf.mxu0
        %v867 = vadd.f32 %v630, %v866
        %868 = vmatprep.mubr.f32.mxu0 0.0
        %869 = vmatmul.mubr.f32.gmra.mxu0 %v483
        %v870 = vpop.f32.mrf.mxu0
        %v871 = vadd.f32 %v626, %v870
        %v872 = vpop.f32.mrf.mxu0
        %v873 = vadd.f32 %v630, %v872
        %874 = vmatprep.mubr.f32.mxu0 0.0
        %875 = vmatmul.mubr.f32.gmra.mxu0 %v484
        %v876 = vpop.f32.mrf.mxu0
        %v877 = vadd.f32 %v626, %v876
        %v878 = vpop.f32.mrf.mxu0
        %v879 = vadd.f32 %v630, %v878
        %880 = vdwg.mxu0
        %881 = vmatprep.subr.mxu0 %v610
        %882 = vmatpush1.msra.mxu0 %v609
        %883 = vmatprep.subr.mxu0 %v602
        %884 = vmatpush1.msra.mxu0 %v601
        %885 = vmatprep.subr.mxu0 %v594
        %886 = vmatpush1.msra.mxu0 %v593
        %887 = vmatprep.subr.mxu0 %v586
        %888 = vmatpush1.msra.mxu0 %v585
        %889 = vmatprep.subr.mxu0 %v578
        %890 = vmatpush1.msra.mxu0 %v577
        %891 = vmatprep.subr.mxu0 %v570
        %892 = vmatpush1.msra.mxu0 %v569
        %893 = vmatprep.subr.mxu0 %v562
        %894 = vmatpush1.msra.mxu0 %v561
        %895 = vmatprep.subr.mxu0 %v554
        %896 = vmatpush1.msra.mxu0 %v553
        %897 = vmatprep.subr.mxu0 %v546
        %898 = vmatpush1.msra.mxu0 %v545
        %899 = vmatprep.subr.mxu0 %v538
        %900 = vmatpush1.msra.mxu0 %v537
        %901 = vmatprep.subr.mxu0 %v530
        %902 = vmatpush1.msra.mxu0 %v529
        %903 = vmatprep.subr.mxu0 %v522
        %904 = vmatpush1.msra.mxu0 %v521
        %905 = vmatprep.subr.mxu0 %v514
        %906 = vmatpush1.msra.mxu0 %v513
        %907 = vmatprep.subr.mxu0 %v506
        %908 = vmatpush1.msra.mxu0 %v505
        %909 = vmatprep.subr.mxu0 %v498
        %910 = vmatpush1.msra.mxu0 %v497
        %911 = vmatprep.subr.mxu0 %v490
        %912 = vmatpush1.msra.mxu0 %v489
        %913 = vmatprep.subr.mxu0 0.0
        %914 = vmatpush2.msra.mxu0 0.0
        %915 = vmatprep.subr.mxu0 0.0
        %916 = vmatpush2.msra.mxu0 0.0
        %917 = vmatprep.subr.mxu0 0.0
        %918 = vmatpush2.msra.mxu0 0.0
        %919 = vmatprep.subr.mxu0 0.0
        %920 = vmatpush2.msra.mxu0 0.0
        %921 = vmatprep.subr.mxu0 0.0
        %922 = vmatpush2.msra.mxu0 0.0
        %923 = vmatprep.subr.mxu0 0.0
        %924 = vmatpush2.msra.mxu0 0.0
        %925 = vmatprep.subr.mxu0 0.0
        %926 = vmatpush2.msra.mxu0 0.0
        %927 = vmatprep.subr.mxu0 0.0
        %928 = vmatpush2.msra.mxu0 0.0
        %929 = vmatprep.subr.mxu0 0.0
        %930 = vmatpush2.msra.mxu0 0.0
        %931 = vmatprep.subr.mxu0 0.0
        %932 = vmatpush2.msra.mxu0 0.0
        %933 = vmatprep.subr.mxu0 0.0
        %934 = vmatpush2.msra.mxu0 0.0
        %935 = vmatprep.subr.mxu0 0.0
        %936 = vmatpush2.msra.mxu0 0.0
        %937 = vmatprep.subr.mxu0 0.0
        %938 = vmatpush2.msra.mxu0 0.0
        %939 = vmatprep.subr.mxu0 0.0
        %940 = vmatpush2.msra.mxu0 0.0
        %941 = vmatprep.subr.mxu0 0.0
        %942 = vmatpush2.msra.mxu0 0.0
        %943 = vmatprep.subr.mxu0 0.0
        %944 = vmatpush2.msra.mxu0 0.0
        %945 = vmatprep.mubr.f32.mxu0 0.0
        %946 = vmatmul.mubr.f32.gmra.mxu0 %v477
        %v947 = vpop.f32.mrf.mxu0
        %v948 = vadd.f32 %v634, %v947
        %v949 = vpop.f32.mrf.mxu0
        %v950 = vadd.f32 %v638, %v949
        %951 = vmatprep.mubr.f32.mxu0 0.0
        %952 = vmatmul.mubr.f32.gmra.mxu0 %v478
        %v953 = vpop.f32.mrf.mxu0
        %v954 = vadd.f32 %v634, %v953
        %v955 = vpop.f32.mrf.mxu0
        %v956 = vadd.f32 %v638, %v955
        %957 = vmatprep.mubr.f32.mxu0 0.0
        %958 = vmatmul.mubr.f32.gmra.mxu0 %v479
        %v959 = vpop.f32.mrf.mxu0
        %v960 = vadd.f32 %v634, %v959
        %v961 = vpop.f32.mrf.mxu0
        %v962 = vadd.f32 %v638, %v961
        %963 = vmatprep.mubr.f32.mxu0 0.0
        %964 = vmatmul.mubr.f32.gmra.mxu0 %v480
        %v965 = vpop.f32.mrf.mxu0
        %v966 = vadd.f32 %v634, %v965
        %v967 = vpop.f32.mrf.mxu0
        %v968 = vadd.f32 %v638, %v967
        %969 = vmatprep.mubr.f32.mxu0 0.0
        %970 = vmatmul.mubr.f32.gmra.mxu0 %v481
        %v971 = vpop.f32.mrf.mxu0
        %v972 = vadd.f32 %v634, %v971
        %v973 = vpop.f32.mrf.mxu0
        %v974 = vadd.f32 %v638, %v973
        %975 = vmatprep.mubr.f32.mxu0 0.0
        %976 = vmatmul.mubr.f32.gmra.mxu0 %v482
        %v977 = vpop.f32.mrf.mxu0
        %v978 = vadd.f32 %v634, %v977
        %v979 = vpop.f32.mrf.mxu0
        %v980 = vadd.f32 %v638, %v979
        %981 = vmatprep.mubr.f32.mxu0 0.0
        %982 = vmatmul.mubr.f32.gmra.mxu0 %v483
        %v983 = vpop.f32.mrf.mxu0
        %v984 = vadd.f32 %v634, %v983
        %v985 = vpop.f32.mrf.mxu0
        %v986 = vadd.f32 %v638, %v985
        %987 = vmatprep.mubr.f32.mxu0 0.0
        %988 = vmatmul.mubr.f32.gmra.mxu0 %v484
        %v989 = vpop.f32.mrf.mxu0
        %v990 = vadd.f32 %v634, %v989
        %v991 = vpop.f32.mrf.mxu0
        %v992 = vadd.f32 %v638, %v991
        %993 = vdwg.mxu0
        %994 = vmatprep.subr.mxu0 %v612
        %995 = vmatpush1.msra.mxu0 %v611
        %996 = vmatprep.subr.mxu0 %v604
        %997 = vmatpush1.msra.mxu0 %v603
        %998 = vmatprep.subr.mxu0 %v596
        %999 = vmatpush1.msra.mxu0 %v595
        %1000 = vmatprep.subr.mxu0 %v588
        %1001 = vmatpush1.msra.mxu0 %v587
        %1002 = vmatprep.subr.mxu0 %v580
        %1003 = vmatpush1.msra.mxu0 %v579
        %1004 = vmatprep.subr.mxu0 %v572
        %1005 = vmatpush1.msra.mxu0 %v571
        %1006 = vmatprep.subr.mxu0 %v564
        %1007 = vmatpush1.msra.mxu0 %v563
        %1008 = vmatprep.subr.mxu0 %v556
        %1009 = vmatpush1.msra.mxu0 %v555
        %1010 = vmatprep.subr.mxu0 %v548
        %1011 = vmatpush1.msra.mxu0 %v547
        %1012 = vmatprep.subr.mxu0 %v540
        %1013 = vmatpush1.msra.mxu0 %v539
        %1014 = vmatprep.subr.mxu0 %v532
        %1015 = vmatpush1.msra.mxu0 %v531
        %1016 = vmatprep.subr.mxu0 %v524
        %1017 = vmatpush1.msra.mxu0 %v523
        %1018 = vmatprep.subr.mxu0 %v516
        %1019 = vmatpush1.msra.mxu0 %v515
        %1020 = vmatprep.subr.mxu0 %v508
        %1021 = vmatpush1.msra.mxu0 %v507
        %1022 = vmatprep.subr.mxu0 %v500
        %1023 = vmatpush1.msra.mxu0 %v499
        %1024 = vmatprep.subr.mxu0 %v492
        %1025 = vmatpush1.msra.mxu0 %v491
        %1026 = vmatprep.subr.mxu0 0.0
        %1027 = vmatpush2.msra.mxu0 0.0
        %1028 = vmatprep.subr.mxu0 0.0
        %1029 = vmatpush2.msra.mxu0 0.0
        %1030 = vmatprep.subr.mxu0 0.0
        %1031 = vmatpush2.msra.mxu0 0.0
        %1032 = vmatprep.subr.mxu0 0.0
        %1033 = vmatpush2.msra.mxu0 0.0
        %1034 = vmatprep.subr.mxu0 0.0
        %1035 = vmatpush2.msra.mxu0 0.0
        %1036 = vmatprep.subr.mxu0 0.0
        %1037 = vmatpush2.msra.mxu0 0.0
        %1038 = vmatprep.subr.mxu0 0.0
        %1039 = vmatpush2.msra.mxu0 0.0
        %1040 = vmatprep.subr.mxu0 0.0
        %1041 = vmatpush2.msra.mxu0 0.0
        %1042 = vmatprep.subr.mxu0 0.0
        %1043 = vmatpush2.msra.mxu0 0.0
        %1044 = vmatprep.subr.mxu0 0.0
        %1045 = vmatpush2.msra.mxu0 0.0
        %1046 = vmatprep.subr.mxu0 0.0
        %1047 = vmatpush2.msra.mxu0 0.0
        %1048 = vmatprep.subr.mxu0 0.0
        %1049 = vmatpush2.msra.mxu0 0.0
        %1050 = vmatprep.subr.mxu0 0.0
        %1051 = vmatpush2.msra.mxu0 0.0
        %1052 = vmatprep.subr.mxu0 0.0
        %1053 = vmatpush2.msra.mxu0 0.0
        %1054 = vmatprep.subr.mxu0 0.0
        %1055 = vmatpush2.msra.mxu0 0.0
        %1056 = vmatprep.subr.mxu0 0.0
        %1057 = vmatpush2.msra.mxu0 0.0
        %1058 = vmatprep.mubr.f32.mxu0 0.0
        %1059 = vmatmul.mubr.f32.gmra.mxu0 %v477
        %v1060 = vpop.f32.mrf.mxu0
        %v1061 = vadd.f32 %v642, %v1060
        %v1062 = vpop.f32.mrf.mxu0
        %v1063 = vadd.f32 %v646, %v1062
        %1064 = vmatprep.mubr.f32.mxu0 0.0
        %1065 = vmatmul.mubr.f32.gmra.mxu0 %v478
        %v1066 = vpop.f32.mrf.mxu0
        %v1067 = vadd.f32 %v642, %v1066
        %v1068 = vpop.f32.mrf.mxu0
        %v1069 = vadd.f32 %v646, %v1068
        %1070 = vmatprep.mubr.f32.mxu0 0.0
        %1071 = vmatmul.mubr.f32.gmra.mxu0 %v479
        %v1072 = vpop.f32.mrf.mxu0
        %v1073 = vadd.f32 %v642, %v1072
        %v1074 = vpop.f32.mrf.mxu0
        %v1075 = vadd.f32 %v646, %v1074
        %1076 = vmatprep.mubr.f32.mxu0 0.0
        %1077 = vmatmul.mubr.f32.gmra.mxu0 %v480
        %v1078 = vpop.f32.mrf.mxu0
        %v1079 = vadd.f32 %v642, %v1078
        %v1080 = vpop.f32.mrf.mxu0
        %v1081 = vadd.f32 %v646, %v1080
        %1082 = vmatprep.mubr.f32.mxu0 0.0
        %1083 = vmatmul.mubr.f32.gmra.mxu0 %v481
        %v1084 = vpop.f32.mrf.mxu0
        %v1085 = vadd.f32 %v642, %v1084
        %v1086 = vpop.f32.mrf.mxu0
        %v1087 = vadd.f32 %v646, %v1086
        %1088 = vmatprep.mubr.f32.mxu0 0.0
        %1089 = vmatmul.mubr.f32.gmra.mxu0 %v482
        %v1090 = vpop.f32.mrf.mxu0
        %v1091 = vadd.f32 %v642, %v1090
        %v1092 = vpop.f32.mrf.mxu0
        %v1093 = vadd.f32 %v646, %v1092
        %1094 = vmatprep.mubr.f32.mxu0 0.0
        %1095 = vmatmul.mubr.f32.gmra.mxu0 %v483
        %v1096 = vpop.f32.mrf.mxu0
        %v1097 = vadd.f32 %v642, %v1096
        %v1098 = vpop.f32.mrf.mxu0
        %v1099 = vadd.f32 %v646, %v1098
        %1100 = vmatprep.mubr.f32.mxu0 0.0
        %1101 = vmatmul.mubr.f32.gmra.mxu0 %v484
        %v1102 = vpop.f32.mrf.mxu0
        %v1103 = vadd.f32 %v642, %v1102
        %v1104 = vpop.f32.mrf.mxu0
        %v1105 = vadd.f32 %v646, %v1104
        %1106 = vdwg.mxu0
        %1107 = vst [vmem:[#allocation2] sm:$0xff] %v722
        %1108 = vst [vmem:[#allocation2 + $0x8] sm:$0xff] %v724
        %1109 = vst [vmem:[#allocation2 + $0x10] sm:$0xff] %v835
        %1110 = vst [vmem:[#allocation2 + $0x18] sm:$0xff] %v837
        %1111 = vst [vmem:[#allocation2 + $0x20] sm:$0xff] %v948
        %1112 = vst [vmem:[#allocation2 + $0x28] sm:$0xff] %v950
        %1113 = vst [vmem:[#allocation2 + $0x30] sm:$0xff] %v1061
        %1114 = vst [vmem:[#allocation2 + $0x38] sm:$0xff] %v1063
        %1115 = vst [vmem:[#allocation2 + $0x40] sm:$0xff] %v728
        %1116 = vst [vmem:[#allocation2 + $0x48] sm:$0xff] %v730
        %1117 = vst [vmem:[#allocation2 + $0x50] sm:$0xff] %v841
        %1118 = vst [vmem:[#allocation2 + $0x58] sm:$0xff] %v843
        %1119 = vst [vmem:[#allocation2 + $0x60] sm:$0xff] %v954
        %1120 = vst [vmem:[#allocation2 + $0x68] sm:$0xff] %v956
        %1121 = vst [vmem:[#allocation2 + $0x70] sm:$0xff] %v1067
        %1122 = vst [vmem:[#allocation2 + $0x78] sm:$0xff] %v1069
        %1123 = vst [vmem:[#allocation2 + $0x80] sm:$0xff] %v734
        %1124 = vst [vmem:[#allocation2 + $0x88] sm:$0xff] %v736
        %1125 = vst [vmem:[#allocation2 + $0x90] sm:$0xff] %v847
        %1126 = vst [vmem:[#allocation2 + $0x98] sm:$0xff] %v849
        %1127 = vst [vmem:[#allocation2 + $0xa0] sm:$0xff] %v960
        %1128 = vst [vmem:[#allocation2 + $0xa8] sm:$0xff] %v962
        %1129 = vst [vmem:[#allocation2 + $0xb0] sm:$0xff] %v1073
        %1130 = vst [vmem:[#allocation2 + $0xb8] sm:$0xff] %v1075
        %1131 = vst [vmem:[#allocation2 + $0xc0] sm:$0xff] %v740
        %1132 = vst [vmem:[#allocation2 + $0xc8] sm:$0xff] %v742
        %1133 = vst [vmem:[#allocation2 + $0xd0] sm:$0xff] %v853
        %1134 = vst [vmem:[#allocation2 + $0xd8] sm:$0xff] %v855
        %1135 = vst [vmem:[#allocation2 + $0xe0] sm:$0xff] %v966
        %1136 = vst [vmem:[#allocation2 + $0xe8] sm:$0xff] %v968
        %1137 = vst [vmem:[#allocation2 + $0xf0] sm:$0xff] %v1079
        %1138 = vst [vmem:[#allocation2 + $0xf8] sm:$0xff] %v1081
        %1139 = vst [vmem:[#allocation2 + $0x100] sm:$0xff] %v746
        %1140 = vst [vmem:[#allocation2 + $0x108] sm:$0xff] %v748
        %1141 = vst [vmem:[#allocation2 + $0x110] sm:$0xff] %v859
        %1142 = vst [vmem:[#allocation2 + $0x118] sm:$0xff] %v861
        %1143 = vst [vmem:[#allocation2 + $0x120] sm:$0xff] %v972
        %1144 = vst [vmem:[#allocation2 + $0x128] sm:$0xff] %v974
        %1145 = vst [vmem:[#allocation2 + $0x130] sm:$0xff] %v1085
        %1146 = vst [vmem:[#allocation2 + $0x138] sm:$0xff] %v1087
        %1147 = vst [vmem:[#allocation2 + $0x140] sm:$0xff] %v752
        %1148 = vst [vmem:[#allocation2 + $0x148] sm:$0xff] %v754
        %1149 = vst [vmem:[#allocation2 + $0x150] sm:$0xff] %v865
        %1150 = vst [vmem:[#allocation2 + $0x158] sm:$0xff] %v867
        %1151 = vst [vmem:[#allocation2 + $0x160] sm:$0xff] %v978
        %1152 = vst [vmem:[#allocation2 + $0x168] sm:$0xff] %v980
        %1153 = vst [vmem:[#allocation2 + $0x170] sm:$0xff] %v1091
        %1154 = vst [vmem:[#allocation2 + $0x178] sm:$0xff] %v1093
        %1155 = vst [vmem:[#allocation2 + $0x180] sm:$0xff] %v758
        %1156 = vst [vmem:[#allocation2 + $0x188] sm:$0xff] %v760
        %1157 = vst [vmem:[#allocation2 + $0x190] sm:$0xff] %v871
        %1158 = vst [vmem:[#allocation2 + $0x198] sm:$0xff] %v873
        %1159 = vst [vmem:[#allocation2 + $0x1a0] sm:$0xff] %v984
        %1160 = vst [vmem:[#allocation2 + $0x1a8] sm:$0xff] %v986
        %1161 = vst [vmem:[#allocation2 + $0x1b0] sm:$0xff] %v1097
        %1162 = vst [vmem:[#allocation2 + $0x1b8] sm:$0xff] %v1099
        %1163 = vst [vmem:[#allocation2 + $0x1c0] sm:$0xff] %v764
        %1164 = vst [vmem:[#allocation2 + $0x1c8] sm:$0xff] %v766
        %1165 = vst [vmem:[#allocation2 + $0x1d0] sm:$0xff] %v877
        %1166 = vst [vmem:[#allocation2 + $0x1d8] sm:$0xff] %v879
        %1167 = vst [vmem:[#allocation2 + $0x1e0] sm:$0xff] %v990
        %1168 = vst [vmem:[#allocation2 + $0x1e8] sm:$0xff] %v992
        %1169 = vst [vmem:[#allocation2 + $0x1f0] sm:$0xff] %v1103
        %1170 = vst [vmem:[#allocation2 + $0x1f8] sm:$0xff] %v1105
        %v1171 = vld [vmem:[#allocation2] sm:$0xff]
        %v1172 = vld [vmem:[#allocation2 + $0x8] sm:$0xff]
        %v1173 = vld [vmem:[#allocation2 + $0x10] sm:$0xff]
        %v1174 = vld [vmem:[#allocation2 + $0x18] sm:$0xff]
        %v1175 = vld [vmem:[#allocation2 + $0x20] sm:$0xff]
        %v1176 = vld [vmem:[#allocation2 + $0x28] sm:$0xff]
        %v1177 = vld [vmem:[#allocation2 + $0x30] sm:$0xff]
        %v1178 = vld [vmem:[#allocation2 + $0x38] sm:$0xff]
        %v1179 = vld [vmem:[#allocation2 + $0x1c0] sm:$0xff]
        %v1180 = vld [vmem:[#allocation2 + $0x1c8] sm:$0xff]
        %v1181 = vld [vmem:[#allocation2 + $0x1d0] sm:$0xff]
        %v1182 = vld [vmem:[#allocation2 + $0x1d8] sm:$0xff]
        %v1183 = vld [vmem:[#allocation2 + $0x1e0] sm:$0xff]
        %v1184 = vld [vmem:[#allocation2 + $0x1e8] sm:$0xff]
        %v1185 = vld [vmem:[#allocation2 + $0x1f0] sm:$0xff]
        %v1186 = vld [vmem:[#allocation2 + $0x1f8] sm:$0xff]
        %v1187 = vld [vmem:[#allocation9] sm:$0xff]
        %v1188 = vld [vmem:[#allocation9 + $0x8] sm:$0xff]
        %v1189 = vld [vmem:[#allocation9 + $0x10] sm:$0xff]
        %v1190 = vld [vmem:[#allocation9 + $0x18] sm:$0xff]
        %v1191 = vld [vmem:[#allocation9 + $0x20] sm:$0xff]
        %v1192 = vld [vmem:[#allocation9 + $0x28] sm:$0xff]
        %v1193 = vld [vmem:[#allocation9 + $0x30] sm:$0xff]
        %v1194 = vld [vmem:[#allocation9 + $0x38] sm:$0xff]
        %v1195 = vld [vmem:[#allocation9 + $0x40] sm:$0xff]
        %v1196 = vld [vmem:[#allocation9 + $0x48] sm:$0xff]
        %v1197 = vld [vmem:[#allocation9 + $0x50] sm:$0xff]
        %v1198 = vld [vmem:[#allocation9 + $0x58] sm:$0xff]
        %v1199 = vld [vmem:[#allocation9 + $0x60] sm:$0xff]
        %v1200 = vld [vmem:[#allocation9 + $0x68] sm:$0xff]
        %v1201 = vld [vmem:[#allocation9 + $0x70] sm:$0xff]
        %v1202 = vld [vmem:[#allocation9 + $0x78] sm:$0xff]
        %v1203 = vld [vmem:[#allocation9 + $0x80] sm:$0xff]
        %v1204 = vld [vmem:[#allocation9 + $0x88] sm:$0xff]
        %v1205 = vld [vmem:[#allocation9 + $0x90] sm:$0xff]
        %v1206 = vld [vmem:[#allocation9 + $0x98] sm:$0xff]
        %v1207 = vld [vmem:[#allocation9 + $0xa0] sm:$0xff]
        %v1208 = vld [vmem:[#allocation9 + $0xa8] sm:$0xff]
        %v1209 = vld [vmem:[#allocation9 + $0xb0] sm:$0xff]
        %v1210 = vld [vmem:[#allocation9 + $0xb8] sm:$0xff]
        %v1211 = vld [vmem:[#allocation9 + $0xc0] sm:$0xff]
        %v1212 = vld [vmem:[#allocation9 + $0xc8] sm:$0xff]
        %v1213 = vld [vmem:[#allocation9 + $0xd0] sm:$0xff]
        %v1214 = vld [vmem:[#allocation9 + $0xd8] sm:$0xff]
        %v1215 = vld [vmem:[#allocation9 + $0xe0] sm:$0xff]
        %v1216 = vld [vmem:[#allocation9 + $0xe8] sm:$0xff]
        %v1217 = vld [vmem:[#allocation9 + $0xf0] sm:$0xff]
        %v1218 = vld [vmem:[#allocation9 + $0xf8] sm:$0xff]
        %v1219 = vld [vmem:[#allocation9 + $0x100] sm:$0xff]
        %v1220 = vld [vmem:[#allocation9 + $0x108] sm:$0xff]
        %v1221 = vld [vmem:[#allocation9 + $0x110] sm:$0xff]
        %v1222 = vld [vmem:[#allocation9 + $0x118] sm:$0xff]
        %v1223 = vld [vmem:[#allocation9 + $0x120] sm:$0xff]
        %v1224 = vld [vmem:[#allocation9 + $0x128] sm:$0xff]
        %v1225 = vld [vmem:[#allocation9 + $0x130] sm:$0xff]
        %v1226 = vld [vmem:[#allocation9 + $0x138] sm:$0xff]
        %v1227 = vld [vmem:[#allocation9 + $0x140] sm:$0xff]
        %v1228 = vld [vmem:[#allocation9 + $0x148] sm:$0xff]
        %v1229 = vld [vmem:[#allocation9 + $0x150] sm:$0xff]
        %v1230 = vld [vmem:[#allocation9 + $0x158] sm:$0xff]
        %v1231 = vld [vmem:[#allocation9 + $0x160] sm:$0xff]
        %v1232 = vld [vmem:[#allocation9 + $0x168] sm:$0xff]
        %v1233 = vld [vmem:[#allocation9 + $0x170] sm:$0xff]
        %v1234 = vld [vmem:[#allocation9 + $0x178] sm:$0xff]
        %v1235 = vld [vmem:[#allocation9 + $0x180] sm:$0xff]
        %v1236 = vld [vmem:[#allocation9 + $0x188] sm:$0xff]
        %v1237 = vld [vmem:[#allocation9 + $0x190] sm:$0xff]
        %v1238 = vld [vmem:[#allocation9 + $0x198] sm:$0xff]
        %v1239 = vld [vmem:[#allocation9 + $0x1a0] sm:$0xff]
        %v1240 = vld [vmem:[#allocation9 + $0x1a8] sm:$0xff]
        %v1241 = vld [vmem:[#allocation9 + $0x1b0] sm:$0xff]
        %v1242 = vld [vmem:[#allocation9 + $0x1b8] sm:$0xff]
        %v1243 = vld [vmem:[#allocation9 + $0x1c0] sm:$0xff]
        %v1244 = vld [vmem:[#allocation9 + $0x1c8] sm:$0xff]
        %v1245 = vld [vmem:[#allocation9 + $0x1d0] sm:$0xff]
        %v1246 = vld [vmem:[#allocation9 + $0x1d8] sm:$0xff]
        %v1247 = vld [vmem:[#allocation9 + $0x1e0] sm:$0xff]
        %v1248 = vld [vmem:[#allocation9 + $0x1e8] sm:$0xff]
        %v1249 = vld [vmem:[#allocation9 + $0x1f0] sm:$0xff]
        %v1250 = vld [vmem:[#allocation9 + $0x1f8] sm:$0xff]
        %1251 = vmatprep.subr.mxu0 %v1248
        %1252 = vmatpush1.msra.mxu0 %v1247
        %1253 = vmatprep.subr.mxu0 %v1244
        %1254 = vmatpush1.msra.mxu0 %v1243
        %1255 = vmatprep.subr.mxu0 %v1240
        %1256 = vmatpush1.msra.mxu0 %v1239
        %1257 = vmatprep.subr.mxu0 %v1236
        %1258 = vmatpush1.msra.mxu0 %v1235
        %1259 = vmatprep.subr.mxu0 %v1232
        %1260 = vmatpush1.msra.mxu0 %v1231
        %1261 = vmatprep.subr.mxu0 %v1228
        %1262 = vmatpush1.msra.mxu0 %v1227
        %1263 = vmatprep.subr.mxu0 %v1224
        %1264 = vmatpush1.msra.mxu0 %v1223
        %1265 = vmatprep.subr.mxu0 %v1220
        %1266 = vmatpush1.msra.mxu0 %v1219
        %1267 = vmatprep.subr.mxu0 %v1216
        %1268 = vmatpush1.msra.mxu0 %v1215
        %1269 = vmatprep.subr.mxu0 %v1212
        %1270 = vmatpush1.msra.mxu0 %v1211
        %1271 = vmatprep.subr.mxu0 %v1208
        %1272 = vmatpush1.msra.mxu0 %v1207
        %1273 = vmatprep.subr.mxu0 %v1204
        %1274 = vmatpush1.msra.mxu0 %v1203
        %1275 = vmatprep.subr.mxu0 %v1200
        %1276 = vmatpush1.msra.mxu0 %v1199
        %1277 = vmatprep.subr.mxu0 %v1196
        %1278 = vmatpush1.msra.mxu0 %v1195
        %1279 = vmatprep.subr.mxu0 %v1192
        %1280 = vmatpush1.msra.mxu0 %v1191
        %1281 = vmatprep.subr.mxu0 %v1188
        %1282 = vmatpush1.msra.mxu0 %v1187
        %1283 = vmatprep.subr.mxu0 0.0
        %1284 = vmatpush2.msra.mxu0 0.0
        %1285 = vmatprep.subr.mxu0 0.0
        %1286 = vmatpush2.msra.mxu0 0.0
        %1287 = vmatprep.subr.mxu0 0.0
        %1288 = vmatpush2.msra.mxu0 0.0
        %1289 = vmatprep.subr.mxu0 0.0
        %1290 = vmatpush2.msra.mxu0 0.0
        %1291 = vmatprep.subr.mxu0 0.0
        %1292 = vmatpush2.msra.mxu0 0.0
        %1293 = vmatprep.subr.mxu0 0.0
        %1294 = vmatpush2.msra.mxu0 0.0
        %1295 = vmatprep.subr.mxu0 0.0
        %1296 = vmatpush2.msra.mxu0 0.0
        %1297 = vmatprep.subr.mxu0 0.0
        %1298 = vmatpush2.msra.mxu0 0.0
        %1299 = vmatprep.subr.mxu0 0.0
        %1300 = vmatpush2.msra.mxu0 0.0
        %1301 = vmatprep.subr.mxu0 0.0
        %1302 = vmatpush2.msra.mxu0 0.0
        %1303 = vmatprep.subr.mxu0 0.0
        %1304 = vmatpush2.msra.mxu0 0.0
        %1305 = vmatprep.subr.mxu0 0.0
        %1306 = vmatpush2.msra.mxu0 0.0
        %1307 = vmatprep.subr.mxu0 0.0
        %1308 = vmatpush2.msra.mxu0 0.0
        %1309 = vmatprep.subr.mxu0 0.0
        %1310 = vmatpush2.msra.mxu0 0.0
        %1311 = vmatprep.subr.mxu0 0.0
        %1312 = vmatpush2.msra.mxu0 0.0
        %1313 = vmatprep.subr.mxu0 0.0
        %1314 = vmatpush2.msra.mxu0 0.0
        %1315 = vmatprep.mubr.f32.mxu0 0.0
        %1316 = vmatmul.mubr.f32.gmra.mxu0 0.0
        %v1317 = vpop.f32.mrf.mxu0
        %v1318 = vadd.f32 0.0, %v1317
        %v1319 = vpop.f32.mrf.mxu0
        %v1320 = vadd.f32 0.0, %v1319
        %1321 = vdwg.mxu0
        %1322 = vmatprep.subr.mxu0 %v1250
        %1323 = vmatpush1.msra.mxu0 %v1249
        %1324 = vmatprep.subr.mxu0 %v1246
        %1325 = vmatpush1.msra.mxu0 %v1245
        %1326 = vmatprep.subr.mxu0 %v1242
        %1327 = vmatpush1.msra.mxu0 %v1241
        %1328 = vmatprep.subr.mxu0 %v1238
        %1329 = vmatpush1.msra.mxu0 %v1237
        %1330 = vmatprep.subr.mxu0 %v1234
        %1331 = vmatpush1.msra.mxu0 %v1233
        %1332 = vmatprep.subr.mxu0 %v1230
        %1333 = vmatpush1.msra.mxu0 %v1229
        %1334 = vmatprep.subr.mxu0 %v1226
        %1335 = vmatpush1.msra.mxu0 %v1225
        %1336 = vmatprep.subr.mxu0 %v1222
        %1337 = vmatpush1.msra.mxu0 %v1221
        %1338 = vmatprep.subr.mxu0 %v1218
        %1339 = vmatpush1.msra.mxu0 %v1217
        %1340 = vmatprep.subr.mxu0 %v1214
        %1341 = vmatpush1.msra.mxu0 %v1213
        %1342 = vmatprep.subr.mxu0 %v1210
        %1343 = vmatpush1.msra.mxu0 %v1209
        %1344 = vmatprep.subr.mxu0 %v1206
        %1345 = vmatpush1.msra.mxu0 %v1205
        %1346 = vmatprep.subr.mxu0 %v1202
        %1347 = vmatpush1.msra.mxu0 %v1201
        %1348 = vmatprep.subr.mxu0 %v1198
        %1349 = vmatpush1.msra.mxu0 %v1197
        %1350 = vmatprep.subr.mxu0 %v1194
        %1351 = vmatpush1.msra.mxu0 %v1193
        %1352 = vmatprep.subr.mxu0 %v1190
        %1353 = vmatpush1.msra.mxu0 %v1189
        %1354 = vmatprep.subr.mxu0 0.0
        %1355 = vmatpush2.msra.mxu0 0.0
        %1356 = vmatprep.subr.mxu0 0.0
        %1357 = vmatpush2.msra.mxu0 0.0
        %1358 = vmatprep.subr.mxu0 0.0
        %1359 = vmatpush2.msra.mxu0 0.0
        %1360 = vmatprep.subr.mxu0 0.0
        %1361 = vmatpush2.msra.mxu0 0.0
        %1362 = vmatprep.subr.mxu0 0.0
        %1363 = vmatpush2.msra.mxu0 0.0
        %1364 = vmatprep.subr.mxu0 0.0
        %1365 = vmatpush2.msra.mxu0 0.0
        %1366 = vmatprep.subr.mxu0 0.0
        %1367 = vmatpush2.msra.mxu0 0.0
        %1368 = vmatprep.subr.mxu0 0.0
        %1369 = vmatpush2.msra.mxu0 0.0
        %1370 = vmatprep.subr.mxu0 0.0
        %1371 = vmatpush2.msra.mxu0 0.0
        %1372 = vmatprep.subr.mxu0 0.0
        %1373 = vmatpush2.msra.mxu0 0.0
        %1374 = vmatprep.subr.mxu0 0.0
        %1375 = vmatpush2.msra.mxu0 0.0
        %1376 = vmatprep.subr.mxu0 0.0
        %1377 = vmatpush2.msra.mxu0 0.0
        %1378 = vmatprep.subr.mxu0 0.0
        %1379 = vmatpush2.msra.mxu0 0.0
        %1380 = vmatprep.subr.mxu0 0.0
        %1381 = vmatpush2.msra.mxu0 0.0
        %1382 = vmatprep.subr.mxu0 0.0
        %1383 = vmatpush2.msra.mxu0 0.0
        %1384 = vmatprep.subr.mxu0 0.0
        %1385 = vmatpush2.msra.mxu0 0.0
        %1386 = vmatprep.mubr.f32.mxu0 0.0
        %1387 = vmatmul.mubr.f32.gmra.mxu0 0.0
        %v1388 = vpop.f32.mrf.mxu0
        %v1389 = vadd.f32 0.0, %v1388
        %v1390 = vpop.f32.mrf.mxu0
        %v1391 = vadd.f32 0.0, %v1390
        %1392 = vdwg.mxu0
        %v1393 = vadd.f32 %v1171, %v1318
        %v1394 = vadd.f32 %v1172, %v1320
        %v1395 = vadd.f32 %v1173, %v1389
        %v1396 = vadd.f32 %v1174, %v1391
        %v1397 = vld [vmem:[#allocation11] sm:$0xff]
        %v1398 = vld [vmem:[#allocation11 + $0x8] sm:$0xff]
        %v1399 = vld [vmem:[#allocation11 + $0x10] sm:$0xff]
        %v1400 = vld [vmem:[#allocation11 + $0x18] sm:$0xff]
        %v1401 = vld [vmem:[#allocation11 + $0x20] sm:$0xff]
        %v1402 = vld [vmem:[#allocation11 + $0x28] sm:$0xff]
        %v1403 = vld [vmem:[#allocation11 + $0x30] sm:$0xff]
        %v1404 = vld [vmem:[#allocation11 + $0x38] sm:$0xff]
        %v1405 = vld [vmem:[#allocation11 + $0x40] sm:$0xff]
        %v1406 = vld [vmem:[#allocation11 + $0x48] sm:$0xff]
        %v1407 = vld [vmem:[#allocation11 + $0x50] sm:$0xff]
        %v1408 = vld [vmem:[#allocation11 + $0x58] sm:$0xff]
        %v1409 = vld [vmem:[#allocation11 + $0x60] sm:$0xff]
        %v1410 = vld [vmem:[#allocation11 + $0x68] sm:$0xff]
        %v1411 = vld [vmem:[#allocation11 + $0x70] sm:$0xff]
        %v1412 = vld [vmem:[#allocation11 + $0x78] sm:$0xff]
        %v1413 = vld [vmem:[#allocation11 + $0x80] sm:$0xff]
        %v1414 = vld [vmem:[#allocation11 + $0x88] sm:$0xff]
        %v1415 = vld [vmem:[#allocation11 + $0x90] sm:$0xff]
        %v1416 = vld [vmem:[#allocation11 + $0x98] sm:$0xff]
        %v1417 = vld [vmem:[#allocation11 + $0xa0] sm:$0xff]
        %v1418 = vld [vmem:[#allocation11 + $0xa8] sm:$0xff]
        %v1419 = vld [vmem:[#allocation11 + $0xb0] sm:$0xff]
        %v1420 = vld [vmem:[#allocation11 + $0xb8] sm:$0xff]
        %v1421 = vld [vmem:[#allocation11 + $0xc0] sm:$0xff]
        %v1422 = vld [vmem:[#allocation11 + $0xc8] sm:$0xff]
        %v1423 = vld [vmem:[#allocation11 + $0xd0] sm:$0xff]
        %v1424 = vld [vmem:[#allocation11 + $0xd8] sm:$0xff]
        %v1425 = vld [vmem:[#allocation11 + $0xe0] sm:$0xff]
        %v1426 = vld [vmem:[#allocation11 + $0xe8] sm:$0xff]
        %v1427 = vld [vmem:[#allocation11 + $0xf0] sm:$0xff]
        %v1428 = vld [vmem:[#allocation11 + $0xf8] sm:$0xff]
        %v1429 = vld [vmem:[#allocation11 + $0x100] sm:$0xff]
        %v1430 = vld [vmem:[#allocation11 + $0x108] sm:$0xff]
        %v1431 = vld [vmem:[#allocation11 + $0x110] sm:$0xff]
        %v1432 = vld [vmem:[#allocation11 + $0x118] sm:$0xff]
        %v1433 = vld [vmem:[#allocation11 + $0x120] sm:$0xff]
        %v1434 = vld [vmem:[#allocation11 + $0x128] sm:$0xff]
        %v1435 = vld [vmem:[#allocation11 + $0x130] sm:$0xff]
        %v1436 = vld [vmem:[#allocation11 + $0x138] sm:$0xff]
        %v1437 = vld [vmem:[#allocation11 + $0x140] sm:$0xff]
        %v1438 = vld [vmem:[#allocation11 + $0x148] sm:$0xff]
        %v1439 = vld [vmem:[#allocation11 + $0x150] sm:$0xff]
        %v1440 = vld [vmem:[#allocation11 + $0x158] sm:$0xff]
        %v1441 = vld [vmem:[#allocation11 + $0x160] sm:$0xff]
        %v1442 = vld [vmem:[#allocation11 + $0x168] sm:$0xff]
        %v1443 = vld [vmem:[#allocation11 + $0x170] sm:$0xff]
        %v1444 = vld [vmem:[#allocation11 + $0x178] sm:$0xff]
        %v1445 = vld [vmem:[#allocation11 + $0x180] sm:$0xff]
        %v1446 = vld [vmem:[#allocation11 + $0x188] sm:$0xff]
        %v1447 = vld [vmem:[#allocation11 + $0x190] sm:$0xff]
        %v1448 = vld [vmem:[#allocation11 + $0x198] sm:$0xff]
        %v1449 = vld [vmem:[#allocation11 + $0x1a0] sm:$0xff]
        %v1450 = vld [vmem:[#allocation11 + $0x1a8] sm:$0xff]
        %v1451 = vld [vmem:[#allocation11 + $0x1b0] sm:$0xff]
        %v1452 = vld [vmem:[#allocation11 + $0x1b8] sm:$0xff]
        %v1453 = vld [vmem:[#allocation11 + $0x1c0] sm:$0xff]
        %v1454 = vld [vmem:[#allocation11 + $0x1c8] sm:$0xff]
        %v1455 = vld [vmem:[#allocation11 + $0x1d0] sm:$0xff]
        %v1456 = vld [vmem:[#allocation11 + $0x1d8] sm:$0xff]
        %v1457 = vld [vmem:[#allocation11 + $0x1e0] sm:$0xff]
        %v1458 = vld [vmem:[#allocation11 + $0x1e8] sm:$0xff]
        %v1459 = vld [vmem:[#allocation11 + $0x1f0] sm:$0xff]
        %v1460 = vld [vmem:[#allocation11 + $0x1f8] sm:$0xff]
        %1461 = vmatprep.subr.mxu0 %v1458
        %1462 = vmatpush1.msra.mxu0 %v1457
        %1463 = vmatprep.subr.mxu0 %v1454
        %1464 = vmatpush1.msra.mxu0 %v1453
        %1465 = vmatprep.subr.mxu0 %v1450
        %1466 = vmatpush1.msra.mxu0 %v1449
        %1467 = vmatprep.subr.mxu0 %v1446
        %1468 = vmatpush1.msra.mxu0 %v1445
        %1469 = vmatprep.subr.mxu0 %v1442
        %1470 = vmatpush1.msra.mxu0 %v1441
        %1471 = vmatprep.subr.mxu0 %v1438
        %1472 = vmatpush1.msra.mxu0 %v1437
        %1473 = vmatprep.subr.mxu0 %v1434
        %1474 = vmatpush1.msra.mxu0 %v1433
        %1475 = vmatprep.subr.mxu0 %v1430
        %1476 = vmatpush1.msra.mxu0 %v1429
        %1477 = vmatprep.subr.mxu0 %v1426
        %1478 = vmatpush1.msra.mxu0 %v1425
        %1479 = vmatprep.subr.mxu0 %v1422
        %1480 = vmatpush1.msra.mxu0 %v1421
        %1481 = vmatprep.subr.mxu0 %v1418
        %1482 = vmatpush1.msra.mxu0 %v1417
        %1483 = vmatprep.subr.mxu0 %v1414
        %1484 = vmatpush1.msra.mxu0 %v1413
        %1485 = vmatprep.subr.mxu0 %v1410
        %1486 = vmatpush1.msra.mxu0 %v1409
        %1487 = vmatprep.subr.mxu0 %v1406
        %1488 = vmatpush1.msra.mxu0 %v1405
        %1489 = vmatprep.subr.mxu0 %v1402
        %1490 = vmatpush1.msra.mxu0 %v1401
        %1491 = vmatprep.subr.mxu0 %v1398
        %1492 = vmatpush1.msra.mxu0 %v1397
        %1493 = vmatprep.subr.mxu0 0.0
        %1494 = vmatpush2.msra.mxu0 0.0
        %1495 = vmatprep.subr.mxu0 0.0
        %1496 = vmatpush2.msra.mxu0 0.0
        %1497 = vmatprep.subr.mxu0 0.0
        %1498 = vmatpush2.msra.mxu0 0.0
        %1499 = vmatprep.subr.mxu0 0.0
        %1500 = vmatpush2.msra.mxu0 0.0
        %1501 = vmatprep.subr.mxu0 0.0
        %1502 = vmatpush2.msra.mxu0 0.0
        %1503 = vmatprep.subr.mxu0 0.0
        %1504 = vmatpush2.msra.mxu0 0.0
        %1505 = vmatprep.subr.mxu0 0.0
        %1506 = vmatpush2.msra.mxu0 0.0
        %1507 = vmatprep.subr.mxu0 0.0
        %1508 = vmatpush2.msra.mxu0 0.0
        %1509 = vmatprep.subr.mxu0 0.0
        %1510 = vmatpush2.msra.mxu0 0.0
        %1511 = vmatprep.subr.mxu0 0.0
        %1512 = vmatpush2.msra.mxu0 0.0
        %1513 = vmatprep.subr.mxu0 0.0
        %1514 = vmatpush2.msra.mxu0 0.0
        %1515 = vmatprep.subr.mxu0 0.0
        %1516 = vmatpush2.msra.mxu0 0.0
        %1517 = vmatprep.subr.mxu0 0.0
        %1518 = vmatpush2.msra.mxu0 0.0
        %1519 = vmatprep.subr.mxu0 0.0
        %1520 = vmatpush2.msra.mxu0 0.0
        %1521 = vmatprep.subr.mxu0 0.0
        %1522 = vmatpush2.msra.mxu0 0.0
        %1523 = vmatprep.subr.mxu0 0.0
        %1524 = vmatpush2.msra.mxu0 0.0
        %1525 = vmatprep.mubr.f32.mxu0 0.0
        %1526 = vmatmul.mubr.f32.gmra.mxu0 0.0
        %v1527 = vpop.f32.mrf.mxu0
        %v1528 = vadd.f32 0.0, %v1527
        %v1529 = vpop.f32.mrf.mxu0
        %v1530 = vadd.f32 0.0, %v1529
        %1531 = vdwg.mxu0
        %1532 = vmatprep.subr.mxu0 %v1460
        %1533 = vmatpush1.msra.mxu0 %v1459
        %1534 = vmatprep.subr.mxu0 %v1456
        %1535 = vmatpush1.msra.mxu0 %v1455
        %1536 = vmatprep.subr.mxu0 %v1452
        %1537 = vmatpush1.msra.mxu0 %v1451
        %1538 = vmatprep.subr.mxu0 %v1448
        %1539 = vmatpush1.msra.mxu0 %v1447
        %1540 = vmatprep.subr.mxu0 %v1444
        %1541 = vmatpush1.msra.mxu0 %v1443
        %1542 = vmatprep.subr.mxu0 %v1440
        %1543 = vmatpush1.msra.mxu0 %v1439
        %1544 = vmatprep.subr.mxu0 %v1436
        %1545 = vmatpush1.msra.mxu0 %v1435
        %1546 = vmatprep.subr.mxu0 %v1432
        %1547 = vmatpush1.msra.mxu0 %v1431
        %1548 = vmatprep.subr.mxu0 %v1428
        %1549 = vmatpush1.msra.mxu0 %v1427
        %1550 = vmatprep.subr.mxu0 %v1424
        %1551 = vmatpush1.msra.mxu0 %v1423
        %1552 = vmatprep.subr.mxu0 %v1420
        %1553 = vmatpush1.msra.mxu0 %v1419
        %1554 = vmatprep.subr.mxu0 %v1416
        %1555 = vmatpush1.msra.mxu0 %v1415
        %1556 = vmatprep.subr.mxu0 %v1412
        %1557 = vmatpush1.msra.mxu0 %v1411
        %1558 = vmatprep.subr.mxu0 %v1408
        %1559 = vmatpush1.msra.mxu0 %v1407
        %1560 = vmatprep.subr.mxu0 %v1404
        %1561 = vmatpush1.msra.mxu0 %v1403
        %1562 = vmatprep.subr.mxu0 %v1400
        %1563 = vmatpush1.msra.mxu0 %v1399
        %1564 = vmatprep.subr.mxu0 0.0
        %1565 = vmatpush2.msra.mxu0 0.0
        %1566 = vmatprep.subr.mxu0 0.0
        %1567 = vmatpush2.msra.mxu0 0.0
        %1568 = vmatprep.subr.mxu0 0.0
        %1569 = vmatpush2.msra.mxu0 0.0
        %1570 = vmatprep.subr.mxu0 0.0
        %1571 = vmatpush2.msra.mxu0 0.0
        %1572 = vmatprep.subr.mxu0 0.0
        %1573 = vmatpush2.msra.mxu0 0.0
        %1574 = vmatprep.subr.mxu0 0.0
        %1575 = vmatpush2.msra.mxu0 0.0
        %1576 = vmatprep.subr.mxu0 0.0
        %1577 = vmatpush2.msra.mxu0 0.0
        %1578 = vmatprep.subr.mxu0 0.0
        %1579 = vmatpush2.msra.mxu0 0.0
        %1580 = vmatprep.subr.mxu0 0.0
        %1581 = vmatpush2.msra.mxu0 0.0
        %1582 = vmatprep.subr.mxu0 0.0
        %1583 = vmatpush2.msra.mxu0 0.0
        %1584 = vmatprep.subr.mxu0 0.0
        %1585 = vmatpush2.msra.mxu0 0.0
        %1586 = vmatprep.subr.mxu0 0.0
        %1587 = vmatpush2.msra.mxu0 0.0
        %1588 = vmatprep.subr.mxu0 0.0
        %1589 = vmatpush2.msra.mxu0 0.0
        %1590 = vmatprep.subr.mxu0 0.0
        %1591 = vmatpush2.msra.mxu0 0.0
        %1592 = vmatprep.subr.mxu0 0.0
        %1593 = vmatpush2.msra.mxu0 0.0
        %1594 = vmatprep.subr.mxu0 0.0
        %1595 = vmatpush2.msra.mxu0 0.0
        %1596 = vmatprep.mubr.f32.mxu0 0.0
        %1597 = vmatmul.mubr.f32.gmra.mxu0 0.0
        %v1598 = vpop.f32.mrf.mxu0
        %v1599 = vadd.f32 0.0, %v1598
        %v1600 = vpop.f32.mrf.mxu0
        %v1601 = vadd.f32 0.0, %v1600
        %1602 = vdwg.mxu0
        %v1603 = vadd.f32 %v1183, %v1528
        %v1604 = vadd.f32 %v1184, %v1530
        %v1605 = vadd.f32 %v1185, %v1599
        %v1606 = vadd.f32 %v1186, %v1601
        %v1607 = vmul.f32 %v1393, 0.5
        %v1608 = vtanh.pop %v1607
        %v1609 = vadd.f32 %v1608, 1.0
        %v1610 = vmul.f32 %v1609, 0.5
        %v1611 = vmul.f32 %v1394, 0.5
        %v1612 = vtanh.pop %v1611
        %v1613 = vadd.f32 %v1612, 1.0
        %v1614 = vmul.f32 %v1613, 0.5
        %v1615 = vtanh.pop %v1395
        %v1616 = vmul.f32 %v1396, 0.5
        %v1617 = vtanh.pop %v1616
        %v1618 = vadd.f32 %v1617, 1.0
        %v1619 = vmul.f32 %v1618, 0.5
        %v1620 = vmul.f32 %v1614, 0.0
        %v1621 = vmul.f32 %v1610, %v1615
        %v1622 = vadd.f32 %v1620, %v1621
        %v1623 = vtanh.pop %v1622
        %v1624 = vmul.f32 %v1619, %v1623
        %v1625 = vmul.f32 %v1603, 0.5
        %v1626 = vtanh.pop %v1625
        %v1627 = vadd.f32 %v1626, 1.0
        %v1628 = vmul.f32 %v1627, 0.5
        %v1629 = vmul.f32 %v1604, 0.5
        %v1630 = vtanh.pop %v1629
        %v1631 = vadd.f32 %v1630, 1.0
        %v1632 = vmul.f32 %v1631, 0.5
        %v1633 = vtanh.pop %v1605
        %v1634 = vmul.f32 %v1606, 0.5
        %v1635 = vtanh.pop %v1634
        %v1636 = vadd.f32 %v1635, 1.0
        %v1637 = vmul.f32 %v1636, 0.5
        %v1638 = vmul.f32 %v1632, 0.0
        %v1639 = vmul.f32 %v1628, %v1633
        %v1640 = vadd.f32 %v1638, %v1639
        %v1641 = vtanh.pop %v1640
        %v1642 = vmul.f32 %v1637, %v1641
        %v1643 = vld [vmem:[#allocation2 + $0x40] sm:$0xff]
        %v1644 = vld [vmem:[#allocation2 + $0x48] sm:$0xff]
        %v1645 = vld [vmem:[#allocation2 + $0x50] sm:$0xff]
        %v1646 = vld [vmem:[#allocation2 + $0x58] sm:$0xff]
        %v1647 = vld [vmem:[#allocation2 + $0x60] sm:$0xff]
        %v1648 = vld [vmem:[#allocation2 + $0x68] sm:$0xff]
        %v1649 = vld [vmem:[#allocation2 + $0x70] sm:$0xff]
        %v1650 = vld [vmem:[#allocation2 + $0x78] sm:$0xff]
        %v1651 = vld [vmem:[#allocation2 + $0x180] sm:$0xff]
        %v1652 = vld [vmem:[#allocation2 + $0x188] sm:$0xff]
        %v1653 = vld [vmem:[#allocation2 + $0x190] sm:$0xff]
        %v1654 = vld [vmem:[#allocation2 + $0x198] sm:$0xff]
        %v1655 = vld [vmem:[#allocation2 + $0x1a0] sm:$0xff]
        %v1656 = vld [vmem:[#allocation2 + $0x1a8] sm:$0xff]
        %v1657 = vld [vmem:[#allocation2 + $0x1b0] sm:$0xff]
        %v1658 = vld [vmem:[#allocation2 + $0x1b8] sm:$0xff]
        %1659 = vmatprep.subr.mxu0 %v1248
        %1660 = vmatpush1.msra.mxu0 %v1247
        %1661 = vmatprep.subr.mxu0 %v1244
        %1662 = vmatpush1.msra.mxu0 %v1243
        %1663 = vmatprep.subr.mxu0 %v1240
        %1664 = vmatpush1.msra.mxu0 %v1239
        %1665 = vmatprep.subr.mxu0 %v1236
        %1666 = vmatpush1.msra.mxu0 %v1235
        %1667 = vmatprep.subr.mxu0 %v1232
        %1668 = vmatpush1.msra.mxu0 %v1231
        %1669 = vmatprep.subr.mxu0 %v1228
        %1670 = vmatpush1.msra.mxu0 %v1227
        %1671 = vmatprep.subr.mxu0 %v1224
        %1672 = vmatpush1.msra.mxu0 %v1223
        %1673 = vmatprep.subr.mxu0 %v1220
        %1674 = vmatpush1.msra.mxu0 %v1219
        %1675 = vmatprep.subr.mxu0 %v1216
        %1676 = vmatpush1.msra.mxu0 %v1215
        %1677 = vmatprep.subr.mxu0 %v1212
        %1678 = vmatpush1.msra.mxu0 %v1211
        %1679 = vmatprep.subr.mxu0 %v1208
        %1680 = vmatpush1.msra.mxu0 %v1207
        %1681 = vmatprep.subr.mxu0 %v1204
        %1682 = vmatpush1.msra.mxu0 %v1203
        %1683 = vmatprep.subr.mxu0 %v1200
        %1684 = vmatpush1.msra.mxu0 %v1199
        %1685 = vmatprep.subr.mxu0 %v1196
        %1686 = vmatpush1.msra.mxu0 %v1195
        %1687 = vmatprep.subr.mxu0 %v1192
        %1688 = vmatpush1.msra.mxu0 %v1191
        %1689 = vmatprep.subr.mxu0 %v1188
        %1690 = vmatpush1.msra.mxu0 %v1187
        %1691 = vmatprep.subr.mxu0 0.0
        %1692 = vmatpush2.msra.mxu0 0.0
        %1693 = vmatprep.subr.mxu0 0.0
        %1694 = vmatpush2.msra.mxu0 0.0
        %1695 = vmatprep.subr.mxu0 0.0
        %1696 = vmatpush2.msra.mxu0 0.0
        %1697 = vmatprep.subr.mxu0 0.0
        %1698 = vmatpush2.msra.mxu0 0.0
        %1699 = vmatprep.subr.mxu0 0.0
        %1700 = vmatpush2.msra.mxu0 0.0
        %1701 = vmatprep.subr.mxu0 0.0
        %1702 = vmatpush2.msra.mxu0 0.0
        %1703 = vmatprep.subr.mxu0 0.0
        %1704 = vmatpush2.msra.mxu0 0.0
        %1705 = vmatprep.subr.mxu0 0.0
        %1706 = vmatpush2.msra.mxu0 0.0
        %1707 = vmatprep.subr.mxu0 0.0
        %1708 = vmatpush2.msra.mxu0 0.0
        %1709 = vmatprep.subr.mxu0 0.0
        %1710 = vmatpush2.msra.mxu0 0.0
        %1711 = vmatprep.subr.mxu0 0.0
        %1712 = vmatpush2.msra.mxu0 0.0
        %1713 = vmatprep.subr.mxu0 0.0
        %1714 = vmatpush2.msra.mxu0 0.0
        %1715 = vmatprep.subr.mxu0 0.0
        %1716 = vmatpush2.msra.mxu0 0.0
        %1717 = vmatprep.subr.mxu0 0.0
        %1718 = vmatpush2.msra.mxu0 0.0
        %1719 = vmatprep.subr.mxu0 0.0
        %1720 = vmatpush2.msra.mxu0 0.0
        %1721 = vmatprep.subr.mxu0 0.0
        %1722 = vmatpush2.msra.mxu0 0.0
        %1723 = vmatprep.mubr.f32.mxu0 0.0
        %1724 = vmatmul.mubr.f32.gmra.mxu0 %v1624
        %v1725 = vpop.f32.mrf.mxu0
        %v1726 = vadd.f32 0.0, %v1725
        %v1727 = vpop.f32.mrf.mxu0
        %v1728 = vadd.f32 0.0, %v1727
        %1729 = vdwg.mxu0
        %1730 = vmatprep.subr.mxu0 %v1250
        %1731 = vmatpush1.msra.mxu0 %v1249
        %1732 = vmatprep.subr.mxu0 %v1246
        %1733 = vmatpush1.msra.mxu0 %v1245
        %1734 = vmatprep.subr.mxu0 %v1242
        %1735 = vmatpush1.msra.mxu0 %v1241
        %1736 = vmatprep.subr.mxu0 %v1238
        %1737 = vmatpush1.msra.mxu0 %v1237
        %1738 = vmatprep.subr.mxu0 %v1234
        %1739 = vmatpush1.msra.mxu0 %v1233
        %1740 = vmatprep.subr.mxu0 %v1230
        %1741 = vmatpush1.msra.mxu0 %v1229
        %1742 = vmatprep.subr.mxu0 %v1226
        %1743 = vmatpush1.msra.mxu0 %v1225
        %1744 = vmatprep.subr.mxu0 %v1222
        %1745 = vmatpush1.msra.mxu0 %v1221
        %1746 = vmatprep.subr.mxu0 %v1218
        %1747 = vmatpush1.msra.mxu0 %v1217
        %1748 = vmatprep.subr.mxu0 %v1214
        %1749 = vmatpush1.msra.mxu0 %v1213
        %1750 = vmatprep.subr.mxu0 %v1210
        %1751 = vmatpush1.msra.mxu0 %v1209
        %1752 = vmatprep.subr.mxu0 %v1206
        %1753 = vmatpush1.msra.mxu0 %v1205
        %1754 = vmatprep.subr.mxu0 %v1202
        %1755 = vmatpush1.msra.mxu0 %v1201
        %1756 = vmatprep.subr.mxu0 %v1198
        %1757 = vmatpush1.msra.mxu0 %v1197
        %1758 = vmatprep.subr.mxu0 %v1194
        %1759 = vmatpush1.msra.mxu0 %v1193
        %1760 = vmatprep.subr.mxu0 %v1190
        %1761 = vmatpush1.msra.mxu0 %v1189
        %1762 = vmatprep.subr.mxu0 0.0
        %1763 = vmatpush2.msra.mxu0 0.0
        %1764 = vmatprep.subr.mxu0 0.0
        %1765 = vmatpush2.msra.mxu0 0.0
        %1766 = vmatprep.subr.mxu0 0.0
        %1767 = vmatpush2.msra.mxu0 0.0
        %1768 = vmatprep.subr.mxu0 0.0
        %1769 = vmatpush2.msra.mxu0 0.0
        %1770 = vmatprep.subr.mxu0 0.0
        %1771 = vmatpush2.msra.mxu0 0.0
        %1772 = vmatprep.subr.mxu0 0.0
        %1773 = vmatpush2.msra.mxu0 0.0
        %1774 = vmatprep.subr.mxu0 0.0
        %1775 = vmatpush2.msra.mxu0 0.0
        %1776 = vmatprep.subr.mxu0 0.0
        %1777 = vmatpush2.msra.mxu0 0.0
        %1778 = vmatprep.subr.mxu0 0.0
        %1779 = vmatpush2.msra.mxu0 0.0
        %1780 = vmatprep.subr.mxu0 0.0
        %1781 = vmatpush2.msra.mxu0 0.0
        %1782 = vmatprep.subr.mxu0 0.0
        %1783 = vmatpush2.msra.mxu0 0.0
        %1784 = vmatprep.subr.mxu0 0.0
        %1785 = vmatpush2.msra.mxu0 0.0
        %1786 = vmatprep.subr.mxu0 0.0
        %1787 = vmatpush2.msra.mxu0 0.0
        %1788 = vmatprep.subr.mxu0 0.0
        %1789 = vmatpush2.msra.mxu0 0.0
        %1790 = vmatprep.subr.mxu0 0.0
        %1791 = vmatpush2.msra.mxu0 0.0
        %1792 = vmatprep.subr.mxu0 0.0
        %1793 = vmatpush2.msra.mxu0 0.0
        %1794 = vmatprep.mubr.f32.mxu0 0.0
        %1795 = vmatmul.mubr.f32.gmra.mxu0 %v1624
        %v1796 = vpop.f32.mrf.mxu0
        %v1797 = vadd.f32 0.0, %v1796
        %v1798 = vpop.f32.mrf.mxu0
        %v1799 = vadd.f32 0.0, %v1798
        %1800 = vdwg.mxu0
        %v1801 = vadd.f32 %v1643, %v1726
        %v1802 = vadd.f32 %v1644, %v1728
        %v1803 = vadd.f32 %v1645, %v1797
        %v1804 = vadd.f32 %v1646, %v1799
        %1805 = vmatprep.subr.mxu0 %v1458
        %1806 = vmatpush1.msra.mxu0 %v1457
        %1807 = vmatprep.subr.mxu0 %v1454
        %1808 = vmatpush1.msra.mxu0 %v1453
        %1809 = vmatprep.subr.mxu0 %v1450
        %1810 = vmatpush1.msra.mxu0 %v1449
        %1811 = vmatprep.subr.mxu0 %v1446
        %1812 = vmatpush1.msra.mxu0 %v1445
        %1813 = vmatprep.subr.mxu0 %v1442
        %1814 = vmatpush1.msra.mxu0 %v1441
        %1815 = vmatprep.subr.mxu0 %v1438
        %1816 = vmatpush1.msra.mxu0 %v1437
        %1817 = vmatprep.subr.mxu0 %v1434
        %1818 = vmatpush1.msra.mxu0 %v1433
        %1819 = vmatprep.subr.mxu0 %v1430
        %1820 = vmatpush1.msra.mxu0 %v1429
        %1821 = vmatprep.subr.mxu0 %v1426
        %1822 = vmatpush1.msra.mxu0 %v1425
        %1823 = vmatprep.subr.mxu0 %v1422
        %1824 = vmatpush1.msra.mxu0 %v1421
        %1825 = vmatprep.subr.mxu0 %v1418
        %1826 = vmatpush1.msra.mxu0 %v1417
        %1827 = vmatprep.subr.mxu0 %v1414
        %1828 = vmatpush1.msra.mxu0 %v1413
        %1829 = vmatprep.subr.mxu0 %v1410
        %1830 = vmatpush1.msra.mxu0 %v1409
        %1831 = vmatprep.subr.mxu0 %v1406
        %1832 = vmatpush1.msra.mxu0 %v1405
        %1833 = vmatprep.subr.mxu0 %v1402
        %1834 = vmatpush1.msra.mxu0 %v1401
        %1835 = vmatprep.subr.mxu0 %v1398
        %1836 = vmatpush1.msra.mxu0 %v1397
        %1837 = vmatprep.subr.mxu0 0.0
        %1838 = vmatpush2.msra.mxu0 0.0
        %1839 = vmatprep.subr.mxu0 0.0
        %1840 = vmatpush2.msra.mxu0 0.0
        %1841 = vmatprep.subr.mxu0 0.0
        %1842 = vmatpush2.msra.mxu0 0.0
        %1843 = vmatprep.subr.mxu0 0.0
        %1844 = vmatpush2.msra.mxu0 0.0
        %1845 = vmatprep.subr.mxu0 0.0
        %1846 = vmatpush2.msra.mxu0 0.0
        %1847 = vmatprep.subr.mxu0 0.0
        %1848 = vmatpush2.msra.mxu0 0.0
        %1849 = vmatprep.subr.mxu0 0.0
        %1850 = vmatpush2.msra.mxu0 0.0
        %1851 = vmatprep.subr.mxu0 0.0
        %1852 = vmatpush2.msra.mxu0 0.0
        %1853 = vmatprep.subr.mxu0 0.0
        %1854 = vmatpush2.msra.mxu0 0.0
        %1855 = vmatprep.subr.mxu0 0.0
        %1856 = vmatpush2.msra.mxu0 0.0
        %1857 = vmatprep.subr.mxu0 0.0
        %1858 = vmatpush2.msra.mxu0 0.0
        %1859 = vmatprep.subr.mxu0 0.0
        %1860 = vmatpush2.msra.mxu0 0.0
        %1861 = vmatprep.subr.mxu0 0.0
        %1862 = vmatpush2.msra.mxu0 0.0
        %1863 = vmatprep.subr.mxu0 0.0
        %1864 = vmatpush2.msra.mxu0 0.0
        %1865 = vmatprep.subr.mxu0 0.0
        %1866 = vmatpush2.msra.mxu0 0.0
        %1867 = vmatprep.subr.mxu0 0.0
        %1868 = vmatpush2.msra.mxu0 0.0
        %1869 = vmatprep.mubr.f32.mxu0 0.0
        %1870 = vmatmul.mubr.f32.gmra.mxu0 %v1642
        %v1871 = vpop.f32.mrf.mxu0
        %v1872 = vadd.f32 0.0, %v1871
        %v1873 = vpop.f32.mrf.mxu0
        %v1874 = vadd.f32 0.0, %v1873
        %1875 = vdwg.mxu0
        %1876 = vmatprep.subr.mxu0 %v1460
        %1877 = vmatpush1.msra.mxu0 %v1459
        %1878 = vmatprep.subr.mxu0 %v1456
        %1879 = vmatpush1.msra.mxu0 %v1455
        %1880 = vmatprep.subr.mxu0 %v1452
        %1881 = vmatpush1.msra.mxu0 %v1451
        %1882 = vmatprep.subr.mxu0 %v1448
        %1883 = vmatpush1.msra.mxu0 %v1447
        %1884 = vmatprep.subr.mxu0 %v1444
        %1885 = vmatpush1.msra.mxu0 %v1443
        %1886 = vmatprep.subr.mxu0 %v1440
        %1887 = vmatpush1.msra.mxu0 %v1439
        %1888 = vmatprep.subr.mxu0 %v1436
        %1889 = vmatpush1.msra.mxu0 %v1435
        %1890 = vmatprep.subr.mxu0 %v1432
        %1891 = vmatpush1.msra.mxu0 %v1431
        %1892 = vmatprep.subr.mxu0 %v1428
        %1893 = vmatpush1.msra.mxu0 %v1427
        %1894 = vmatprep.subr.mxu0 %v1424
        %1895 = vmatpush1.msra.mxu0 %v1423
        %1896 = vmatprep.subr.mxu0 %v1420
        %1897 = vmatpush1.msra.mxu0 %v1419
        %1898 = vmatprep.subr.mxu0 %v1416
        %1899 = vmatpush1.msra.mxu0 %v1415
        %1900 = vmatprep.subr.mxu0 %v1412
        %1901 = vmatpush1.msra.mxu0 %v1411
        %1902 = vmatprep.subr.mxu0 %v1408
        %1903 = vmatpush1.msra.mxu0 %v1407
        %1904 = vmatprep.subr.mxu0 %v1404
        %1905 = vmatpush1.msra.mxu0 %v1403
        %1906 = vmatprep.subr.mxu0 %v1400
        %1907 = vmatpush1.msra.mxu0 %v1399
        %1908 = vmatprep.subr.mxu0 0.0
        %1909 = vmatpush2.msra.mxu0 0.0
        %1910 = vmatprep.subr.mxu0 0.0
        %1911 = vmatpush2.msra.mxu0 0.0
        %1912 = vmatprep.subr.mxu0 0.0
        %1913 = vmatpush2.msra.mxu0 0.0
        %1914 = vmatprep.subr.mxu0 0.0
        %1915 = vmatpush2.msra.mxu0 0.0
        %1916 = vmatprep.subr.mxu0 0.0
        %1917 = vmatpush2.msra.mxu0 0.0
        %1918 = vmatprep.subr.mxu0 0.0
        %1919 = vmatpush2.msra.mxu0 0.0
        %1920 = vmatprep.subr.mxu0 0.0
        %1921 = vmatpush2.msra.mxu0 0.0
        %1922 = vmatprep.subr.mxu0 0.0
        %1923 = vmatpush2.msra.mxu0 0.0
        %1924 = vmatprep.subr.mxu0 0.0
        %1925 = vmatpush2.msra.mxu0 0.0
        %1926 = vmatprep.subr.mxu0 0.0
        %1927 = vmatpush2.msra.mxu0 0.0
        %1928 = vmatprep.subr.mxu0 0.0
        %1929 = vmatpush2.msra.mxu0 0.0
        %1930 = vmatprep.subr.mxu0 0.0
        %1931 = vmatpush2.msra.mxu0 0.0
        %1932 = vmatprep.subr.mxu0 0.0
        %1933 = vmatpush2.msra.mxu0 0.0
        %1934 = vmatprep.subr.mxu0 0.0
        %1935 = vmatpush2.msra.mxu0 0.0
        %1936 = vmatprep.subr.mxu0 0.0
        %1937 = vmatpush2.msra.mxu0 0.0
        %1938 = vmatprep.subr.mxu0 0.0
        %1939 = vmatpush2.msra.mxu0 0.0
        %1940 = vmatprep.mubr.f32.mxu0 0.0
        %1941 = vmatmul.mubr.f32.gmra.mxu0 %v1642
        %v1942 = vpop.f32.mrf.mxu0
        %v1943 = vadd.f32 0.0, %v1942
        %v1944 = vpop.f32.mrf.mxu0
        %v1945 = vadd.f32 0.0, %v1944
        %1946 = vdwg.mxu0
        %v1947 = vadd.f32 %v1655, %v1872
        %v1948 = vadd.f32 %v1656, %v1874
        %v1949 = vadd.f32 %v1657, %v1943
        %v1950 = vadd.f32 %v1658, %v1945
        %v1951 = vmul.f32 %v1801, 0.5
        %v1952 = vtanh.pop %v1951
        %v1953 = vadd.f32 %v1952, 1.0
        %v1954 = vmul.f32 %v1953, 0.5
        %v1955 = vmul.f32 %v1802, 0.5
        %v1956 = vtanh.pop %v1955
        %v1957 = vadd.f32 %v1956, 1.0
        %v1958 = vmul.f32 %v1957, 0.5
        %v1959 = vtanh.pop %v1803
        %v1960 = vmul.f32 %v1804, 0.5
        %v1961 = vtanh.pop %v1960
        %v1962 = vadd.f32 %v1961, 1.0
        %v1963 = vmul.f32 %v1962, 0.5
        %v1964 = vmul.f32 %v1958, %v1622
        %v1965 = vmul.f32 %v1954, %v1959
        %v1966 = vadd.f32 %v1964, %v1965
        %v1967 = vtanh.pop %v1966
        %v1968 = vmul.f32 %v1963, %v1967
        %v1969 = vmul.f32 %v1947, 0.5
        %v1970 = vtanh.pop %v1969
        %v1971 = vadd.f32 %v1970, 1.0
        %v1972 = vmul.f32 %v1971, 0.5
        %v1973 = vmul.f32 %v1948, 0.5
        %v1974 = vtanh.pop %v1973
        %v1975 = vadd.f32 %v1974, 1.0
        %v1976 = vmul.f32 %v1975, 0.5
        %v1977 = vtanh.pop %v1949
        %v1978 = vmul.f32 %v1950, 0.5
        %v1979 = vtanh.pop %v1978
        %v1980 = vadd.f32 %v1979, 1.0
        %v1981 = vmul.f32 %v1980, 0.5
        %v1982 = vmul.f32 %v1976, %v1640
        %v1983 = vmul.f32 %v1972, %v1977
        %v1984 = vadd.f32 %v1982, %v1983
        %v1985 = vtanh.pop %v1984
        %v1986 = vmul.f32 %v1981, %v1985
        %v1987 = vld [vmem:[#allocation2 + $0x80] sm:$0xff]
        %v1988 = vld [vmem:[#allocation2 + $0x88] sm:$0xff]
        %v1989 = vld [vmem:[#allocation2 + $0x90] sm:$0xff]
        %v1990 = vld [vmem:[#allocation2 + $0x98] sm:$0xff]
        %v1991 = vld [vmem:[#allocation2 + $0xa0] sm:$0xff]
        %v1992 = vld [vmem:[#allocation2 + $0xa8] sm:$0xff]
        %v1993 = vld [vmem:[#allocation2 + $0xb0] sm:$0xff]
        %v1994 = vld [vmem:[#allocation2 + $0xb8] sm:$0xff]
        %v1995 = vld [vmem:[#allocation2 + $0x140] sm:$0xff]
        %v1996 = vld [vmem:[#allocation2 + $0x148] sm:$0xff]
        %v1997 = vld [vmem:[#allocation2 + $0x150] sm:$0xff]
        %v1998 = vld [vmem:[#allocation2 + $0x158] sm:$0xff]
        %v1999 = vld [vmem:[#allocation2 + $0x160] sm:$0xff]
        %v2000 = vld [vmem:[#allocation2 + $0x168] sm:$0xff]
        %v2001 = vld [vmem:[#allocation2 + $0x170] sm:$0xff]
        %v2002 = vld [vmem:[#allocation2 + $0x178] sm:$0xff]
        %2003 = vmatprep.subr.mxu0 %v1248
        %2004 = vmatpush1.msra.mxu0 %v1247
        %2005 = vmatprep.subr.mxu0 %v1244
        %2006 = vmatpush1.msra.mxu0 %v1243
        %2007 = vmatprep.subr.mxu0 %v1240
        %2008 = vmatpush1.msra.mxu0 %v1239
        %2009 = vmatprep.subr.mxu0 %v1236
        %2010 = vmatpush1.msra.mxu0 %v1235
        %2011 = vmatprep.subr.mxu0 %v1232
        %2012 = vmatpush1.msra.mxu0 %v1231
        %2013 = vmatprep.subr.mxu0 %v1228
        %2014 = vmatpush1.msra.mxu0 %v1227
        %2015 = vmatprep.subr.mxu0 %v1224
        %2016 = vmatpush1.msra.mxu0 %v1223
        %2017 = vmatprep.subr.mxu0 %v1220
        %2018 = vmatpush1.msra.mxu0 %v1219
        %2019 = vmatprep.subr.mxu0 %v1216
        %2020 = vmatpush1.msra.mxu0 %v1215
        %2021 = vmatprep.subr.mxu0 %v1212
        %2022 = vmatpush1.msra.mxu0 %v1211
        %2023 = vmatprep.subr.mxu0 %v1208
        %2024 = vmatpush1.msra.mxu0 %v1207
        %2025 = vmatprep.subr.mxu0 %v1204
        %2026 = vmatpush1.msra.mxu0 %v1203
        %2027 = vmatprep.subr.mxu0 %v1200
        %2028 = vmatpush1.msra.mxu0 %v1199
        %2029 = vmatprep.subr.mxu0 %v1196
        %2030 = vmatpush1.msra.mxu0 %v1195
        %2031 = vmatprep.subr.mxu0 %v1192
        %2032 = vmatpush1.msra.mxu0 %v1191
        %2033 = vmatprep.subr.mxu0 %v1188
        %2034 = vmatpush1.msra.mxu0 %v1187
        %2035 = vmatprep.subr.mxu0 0.0
        %2036 = vmatpush2.msra.mxu0 0.0
        %2037 = vmatprep.subr.mxu0 0.0
        %2038 = vmatpush2.msra.mxu0 0.0
        %2039 = vmatprep.subr.mxu0 0.0
        %2040 = vmatpush2.msra.mxu0 0.0
        %2041 = vmatprep.subr.mxu0 0.0
        %2042 = vmatpush2.msra.mxu0 0.0
        %2043 = vmatprep.subr.mxu0 0.0
        %2044 = vmatpush2.msra.mxu0 0.0
        %2045 = vmatprep.subr.mxu0 0.0
        %2046 = vmatpush2.msra.mxu0 0.0
        %2047 = vmatprep.subr.mxu0 0.0
        %2048 = vmatpush2.msra.mxu0 0.0
        %2049 = vmatprep.subr.mxu0 0.0
        %2050 = vmatpush2.msra.mxu0 0.0
        %2051 = vmatprep.subr.mxu0 0.0
        %2052 = vmatpush2.msra.mxu0 0.0
        %2053 = vmatprep.subr.mxu0 0.0
        %2054 = vmatpush2.msra.mxu0 0.0
        %2055 = vmatprep.subr.mxu0 0.0
        %2056 = vmatpush2.msra.mxu0 0.0
        %2057 = vmatprep.subr.mxu0 0.0
        %2058 = vmatpush2.msra.mxu0 0.0
        %2059 = vmatprep.subr.mxu0 0.0
        %2060 = vmatpush2.msra.mxu0 0.0
        %2061 = vmatprep.subr.mxu0 0.0
        %2062 = vmatpush2.msra.mxu0 0.0
        %2063 = vmatprep.subr.mxu0 0.0
        %2064 = vmatpush2.msra.mxu0 0.0
        %2065 = vmatprep.subr.mxu0 0.0
        %2066 = vmatpush2.msra.mxu0 0.0
        %2067 = vmatprep.mubr.f32.mxu0 0.0
        %2068 = vmatmul.mubr.f32.gmra.mxu0 %v1968
        %v2069 = vpop.f32.mrf.mxu0
        %v2070 = vadd.f32 0.0, %v2069
        %v2071 = vpop.f32.mrf.mxu0
        %v2072 = vadd.f32 0.0, %v2071
        %2073 = vdwg.mxu0
        %2074 = vmatprep.subr.mxu0 %v1250
        %2075 = vmatpush1.msra.mxu0 %v1249
        %2076 = vmatprep.subr.mxu0 %v1246
        %2077 = vmatpush1.msra.mxu0 %v1245
        %2078 = vmatprep.subr.mxu0 %v1242
        %2079 = vmatpush1.msra.mxu0 %v1241
        %2080 = vmatprep.subr.mxu0 %v1238
        %2081 = vmatpush1.msra.mxu0 %v1237
        %2082 = vmatprep.subr.mxu0 %v1234
        %2083 = vmatpush1.msra.mxu0 %v1233
        %2084 = vmatprep.subr.mxu0 %v1230
        %2085 = vmatpush1.msra.mxu0 %v1229
        %2086 = vmatprep.subr.mxu0 %v1226
        %2087 = vmatpush1.msra.mxu0 %v1225
        %2088 = vmatprep.subr.mxu0 %v1222
        %2089 = vmatpush1.msra.mxu0 %v1221
        %2090 = vmatprep.subr.mxu0 %v1218
        %2091 = vmatpush1.msra.mxu0 %v1217
        %2092 = vmatprep.subr.mxu0 %v1214
        %2093 = vmatpush1.msra.mxu0 %v1213
        %2094 = vmatprep.subr.mxu0 %v1210
        %2095 = vmatpush1.msra.mxu0 %v1209
        %2096 = vmatprep.subr.mxu0 %v1206
        %2097 = vmatpush1.msra.mxu0 %v1205
        %2098 = vmatprep.subr.mxu0 %v1202
        %2099 = vmatpush1.msra.mxu0 %v1201
        %2100 = vmatprep.subr.mxu0 %v1198
        %2101 = vmatpush1.msra.mxu0 %v1197
        %2102 = vmatprep.subr.mxu0 %v1194
        %2103 = vmatpush1.msra.mxu0 %v1193
        %2104 = vmatprep.subr.mxu0 %v1190
        %2105 = vmatpush1.msra.mxu0 %v1189
        %2106 = vmatprep.subr.mxu0 0.0
        %2107 = vmatpush2.msra.mxu0 0.0
        %2108 = vmatprep.subr.mxu0 0.0
        %2109 = vmatpush2.msra.mxu0 0.0
        %2110 = vmatprep.subr.mxu0 0.0
        %2111 = vmatpush2.msra.mxu0 0.0
        %2112 = vmatprep.subr.mxu0 0.0
        %2113 = vmatpush2.msra.mxu0 0.0
        %2114 = vmatprep.subr.mxu0 0.0
        %2115 = vmatpush2.msra.mxu0 0.0
        %2116 = vmatprep.subr.mxu0 0.0
        %2117 = vmatpush2.msra.mxu0 0.0
        %2118 = vmatprep.subr.mxu0 0.0
        %2119 = vmatpush2.msra.mxu0 0.0
        %2120 = vmatprep.subr.mxu0 0.0
        %2121 = vmatpush2.msra.mxu0 0.0
        %2122 = vmatprep.subr.mxu0 0.0
        %2123 = vmatpush2.msra.mxu0 0.0
        %2124 = vmatprep.subr.mxu0 0.0
        %2125 = vmatpush2.msra.mxu0 0.0
        %2126 = vmatprep.subr.mxu0 0.0
        %2127 = vmatpush2.msra.mxu0 0.0
        %2128 = vmatprep.subr.mxu0 0.0
        %2129 = vmatpush2.msra.mxu0 0.0
        %2130 = vmatprep.subr.mxu0 0.0
        %2131 = vmatpush2.msra.mxu0 0.0
        %2132 = vmatprep.subr.mxu0 0.0
        %2133 = vmatpush2.msra.mxu0 0.0
        %2134 = vmatprep.subr.mxu0 0.0
        %2135 = vmatpush2.msra.mxu0 0.0
        %2136 = vmatprep.subr.mxu0 0.0
        %2137 = vmatpush2.msra.mxu0 0.0
        %2138 = vmatprep.mubr.f32.mxu0 0.0
        %2139 = vmatmul.mubr.f32.gmra.mxu0 %v1968
        %v2140 = vpop.f32.mrf.mxu0
        %v2141 = vadd.f32 0.0, %v2140
        %v2142 = vpop.f32.mrf.mxu0
        %v2143 = vadd.f32 0.0, %v2142
        %2144 = vdwg.mxu0
        %v2145 = vadd.f32 %v1987, %v2070
        %v2146 = vadd.f32 %v1988, %v2072
        %v2147 = vadd.f32 %v1989, %v2141
        %v2148 = vadd.f32 %v1990, %v2143
        %2149 = vmatprep.subr.mxu0 %v1458
        %2150 = vmatpush1.msra.mxu0 %v1457
        %2151 = vmatprep.subr.mxu0 %v1454
        %2152 = vmatpush1.msra.mxu0 %v1453
        %2153 = vmatprep.subr.mxu0 %v1450
        %2154 = vmatpush1.msra.mxu0 %v1449
        %2155 = vmatprep.subr.mxu0 %v1446
        %2156 = vmatpush1.msra.mxu0 %v1445
        %2157 = vmatprep.subr.mxu0 %v1442
        %2158 = vmatpush1.msra.mxu0 %v1441
        %2159 = vmatprep.subr.mxu0 %v1438
        %2160 = vmatpush1.msra.mxu0 %v1437
        %2161 = vmatprep.subr.mxu0 %v1434
        %2162 = vmatpush1.msra.mxu0 %v1433
        %2163 = vmatprep.subr.mxu0 %v1430
        %2164 = vmatpush1.msra.mxu0 %v1429
        %2165 = vmatprep.subr.mxu0 %v1426
        %2166 = vmatpush1.msra.mxu0 %v1425
        %2167 = vmatprep.subr.mxu0 %v1422
        %2168 = vmatpush1.msra.mxu0 %v1421
        %2169 = vmatprep.subr.mxu0 %v1418
        %2170 = vmatpush1.msra.mxu0 %v1417
        %2171 = vmatprep.subr.mxu0 %v1414
        %2172 = vmatpush1.msra.mxu0 %v1413
        %2173 = vmatprep.subr.mxu0 %v1410
        %2174 = vmatpush1.msra.mxu0 %v1409
        %2175 = vmatprep.subr.mxu0 %v1406
        %2176 = vmatpush1.msra.mxu0 %v1405
        %2177 = vmatprep.subr.mxu0 %v1402
        %2178 = vmatpush1.msra.mxu0 %v1401
        %2179 = vmatprep.subr.mxu0 %v1398
        %2180 = vmatpush1.msra.mxu0 %v1397
        %2181 = vmatprep.subr.mxu0 0.0
        %2182 = vmatpush2.msra.mxu0 0.0
        %2183 = vmatprep.subr.mxu0 0.0
        %2184 = vmatpush2.msra.mxu0 0.0
        %2185 = vmatprep.subr.mxu0 0.0
        %2186 = vmatpush2.msra.mxu0 0.0
        %2187 = vmatprep.subr.mxu0 0.0
        %2188 = vmatpush2.msra.mxu0 0.0
        %2189 = vmatprep.subr.mxu0 0.0
        %2190 = vmatpush2.msra.mxu0 0.0
        %2191 = vmatprep.subr.mxu0 0.0
        %2192 = vmatpush2.msra.mxu0 0.0
        %2193 = vmatprep.subr.mxu0 0.0
        %2194 = vmatpush2.msra.mxu0 0.0
        %2195 = vmatprep.subr.mxu0 0.0
        %2196 = vmatpush2.msra.mxu0 0.0
        %2197 = vmatprep.subr.mxu0 0.0
        %2198 = vmatpush2.msra.mxu0 0.0
        %2199 = vmatprep.subr.mxu0 0.0
        %2200 = vmatpush2.msra.mxu0 0.0
        %2201 = vmatprep.subr.mxu0 0.0
        %2202 = vmatpush2.msra.mxu0 0.0
        %2203 = vmatprep.subr.mxu0 0.0
        %2204 = vmatpush2.msra.mxu0 0.0
        %2205 = vmatprep.subr.mxu0 0.0
        %2206 = vmatpush2.msra.mxu0 0.0
        %2207 = vmatprep.subr.mxu0 0.0
        %2208 = vmatpush2.msra.mxu0 0.0
        %2209 = vmatprep.subr.mxu0 0.0
        %2210 = vmatpush2.msra.mxu0 0.0
        %2211 = vmatprep.subr.mxu0 0.0
        %2212 = vmatpush2.msra.mxu0 0.0
        %2213 = vmatprep.mubr.f32.mxu0 0.0
        %2214 = vmatmul.mubr.f32.gmra.mxu0 %v1986
        %v2215 = vpop.f32.mrf.mxu0
        %v2216 = vadd.f32 0.0, %v2215
        %v2217 = vpop.f32.mrf.mxu0
        %v2218 = vadd.f32 0.0, %v2217
        %2219 = vdwg.mxu0
        %2220 = vmatprep.subr.mxu0 %v1460
        %2221 = vmatpush1.msra.mxu0 %v1459
        %2222 = vmatprep.subr.mxu0 %v1456
        %2223 = vmatpush1.msra.mxu0 %v1455
        %2224 = vmatprep.subr.mxu0 %v1452
        %2225 = vmatpush1.msra.mxu0 %v1451
        %2226 = vmatprep.subr.mxu0 %v1448
        %2227 = vmatpush1.msra.mxu0 %v1447
        %2228 = vmatprep.subr.mxu0 %v1444
        %2229 = vmatpush1.msra.mxu0 %v1443
        %2230 = vmatprep.subr.mxu0 %v1440
        %2231 = vmatpush1.msra.mxu0 %v1439
        %2232 = vmatprep.subr.mxu0 %v1436
        %2233 = vmatpush1.msra.mxu0 %v1435
        %2234 = vmatprep.subr.mxu0 %v1432
        %2235 = vmatpush1.msra.mxu0 %v1431
        %2236 = vmatprep.subr.mxu0 %v1428
        %2237 = vmatpush1.msra.mxu0 %v1427
        %2238 = vmatprep.subr.mxu0 %v1424
        %2239 = vmatpush1.msra.mxu0 %v1423
        %2240 = vmatprep.subr.mxu0 %v1420
        %2241 = vmatpush1.msra.mxu0 %v1419
        %2242 = vmatprep.subr.mxu0 %v1416
        %2243 = vmatpush1.msra.mxu0 %v1415
        %2244 = vmatprep.subr.mxu0 %v1412
        %2245 = vmatpush1.msra.mxu0 %v1411
        %2246 = vmatprep.subr.mxu0 %v1408
        %2247 = vmatpush1.msra.mxu0 %v1407
        %2248 = vmatprep.subr.mxu0 %v1404
        %2249 = vmatpush1.msra.mxu0 %v1403
        %2250 = vmatprep.subr.mxu0 %v1400
        %2251 = vmatpush1.msra.mxu0 %v1399
        %2252 = vmatprep.subr.mxu0 0.0
        %2253 = vmatpush2.msra.mxu0 0.0
        %2254 = vmatprep.subr.mxu0 0.0
        %2255 = vmatpush2.msra.mxu0 0.0
        %2256 = vmatprep.subr.mxu0 0.0
        %2257 = vmatpush2.msra.mxu0 0.0
        %2258 = vmatprep.subr.mxu0 0.0
        %2259 = vmatpush2.msra.mxu0 0.0
        %2260 = vmatprep.subr.mxu0 0.0
        %2261 = vmatpush2.msra.mxu0 0.0
        %2262 = vmatprep.subr.mxu0 0.0
        %2263 = vmatpush2.msra.mxu0 0.0
        %2264 = vmatprep.subr.mxu0 0.0
        %2265 = vmatpush2.msra.mxu0 0.0
        %2266 = vmatprep.subr.mxu0 0.0
        %2267 = vmatpush2.msra.mxu0 0.0
        %2268 = vmatprep.subr.mxu0 0.0
        %2269 = vmatpush2.msra.mxu0 0.0
        %2270 = vmatprep.subr.mxu0 0.0
        %2271 = vmatpush2.msra.mxu0 0.0
        %2272 = vmatprep.subr.mxu0 0.0
        %2273 = vmatpush2.msra.mxu0 0.0
        %2274 = vmatprep.subr.mxu0 0.0
        %2275 = vmatpush2.msra.mxu0 0.0
        %2276 = vmatprep.subr.mxu0 0.0
        %2277 = vmatpush2.msra.mxu0 0.0
        %2278 = vmatprep.subr.mxu0 0.0
        %2279 = vmatpush2.msra.mxu0 0.0
        %2280 = vmatprep.subr.mxu0 0.0
        %2281 = vmatpush2.msra.mxu0 0.0
        %2282 = vmatprep.subr.mxu0 0.0
        %2283 = vmatpush2.msra.mxu0 0.0
        %2284 = vmatprep.mubr.f32.mxu0 0.0
        %2285 = vmatmul.mubr.f32.gmra.mxu0 %v1986
        %v2286 = vpop.f32.mrf.mxu0
        %v2287 = vadd.f32 0.0, %v2286
        %v2288 = vpop.f32.mrf.mxu0
        %v2289 = vadd.f32 0.0, %v2288
        %2290 = vdwg.mxu0
        %v2291 = vadd.f32 %v1999, %v2216
        %v2292 = vadd.f32 %v2000, %v2218
        %v2293 = vadd.f32 %v2001, %v2287
        %v2294 = vadd.f32 %v2002, %v2289
        %v2295 = vmul.f32 %v2145, 0.5
        %v2296 = vtanh.pop %v2295
        %v2297 = vadd.f32 %v2296, 1.0
        %v2298 = vmul.f32 %v2297, 0.5
        %v2299 = vmul.f32 %v2146, 0.5
        %v2300 = vtanh.pop %v2299
        %v2301 = vadd.f32 %v2300, 1.0
        %v2302 = vmul.f32 %v2301, 0.5
        %v2303 = vtanh.pop %v2147
        %v2304 = vmul.f32 %v2148, 0.5
        %v2305 = vtanh.pop %v2304
        %v2306 = vadd.f32 %v2305, 1.0
        %v2307 = vmul.f32 %v2306, 0.5
        %v2308 = vmul.f32 %v2302, %v1966
        %v2309 = vmul.f32 %v2298, %v2303
        %v2310 = vadd.f32 %v2308, %v2309
        %v2311 = vtanh.pop %v2310
        %v2312 = vmul.f32 %v2307, %v2311
        %v2313 = vmul.f32 %v2291, 0.5
        %v2314 = vtanh.pop %v2313
        %v2315 = vadd.f32 %v2314, 1.0
        %v2316 = vmul.f32 %v2315, 0.5
        %v2317 = vmul.f32 %v2292, 0.5
        %v2318 = vtanh.pop %v2317
        %v2319 = vadd.f32 %v2318, 1.0
        %v2320 = vmul.f32 %v2319, 0.5
        %v2321 = vtanh.pop %v2293
        %v2322 = vmul.f32 %v2294, 0.5
        %v2323 = vtanh.pop %v2322
        %v2324 = vadd.f32 %v2323, 1.0
        %v2325 = vmul.f32 %v2324, 0.5
        %v2326 = vmul.f32 %v2320, %v1984
        %v2327 = vmul.f32 %v2316, %v2321
        %v2328 = vadd.f32 %v2326, %v2327
        %v2329 = vtanh.pop %v2328
        %v2330 = vmul.f32 %v2325, %v2329
        %v2331 = vld [vmem:[#allocation2 + $0xc0] sm:$0xff]
        %v2332 = vld [vmem:[#allocation2 + $0xc8] sm:$0xff]
        %v2333 = vld [vmem:[#allocation2 + $0xd0] sm:$0xff]
        %v2334 = vld [vmem:[#allocation2 + $0xd8] sm:$0xff]
        %v2335 = vld [vmem:[#allocation2 + $0xe0] sm:$0xff]
        %v2336 = vld [vmem:[#allocation2 + $0xe8] sm:$0xff]
        %v2337 = vld [vmem:[#allocation2 + $0xf0] sm:$0xff]
        %v2338 = vld [vmem:[#allocation2 + $0xf8] sm:$0xff]
        %v2339 = vld [vmem:[#allocation2 + $0x100] sm:$0xff]
        %v2340 = vld [vmem:[#allocation2 + $0x108] sm:$0xff]
        %v2341 = vld [vmem:[#allocation2 + $0x110] sm:$0xff]
        %v2342 = vld [vmem:[#allocation2 + $0x118] sm:$0xff]
        %v2343 = vld [vmem:[#allocation2 + $0x120] sm:$0xff]
        %v2344 = vld [vmem:[#allocation2 + $0x128] sm:$0xff]
        %v2345 = vld [vmem:[#allocation2 + $0x130] sm:$0xff]
        %v2346 = vld [vmem:[#allocation2 + $0x138] sm:$0xff]
        %2347 = vmatprep.subr.mxu0 %v1248
        %2348 = vmatpush1.msra.mxu0 %v1247
        %2349 = vmatprep.subr.mxu0 %v1244
        %2350 = vmatpush1.msra.mxu0 %v1243
        %2351 = vmatprep.subr.mxu0 %v1240
        %2352 = vmatpush1.msra.mxu0 %v1239
        %2353 = vmatprep.subr.mxu0 %v1236
        %2354 = vmatpush1.msra.mxu0 %v1235
        %2355 = vmatprep.subr.mxu0 %v1232
        %2356 = vmatpush1.msra.mxu0 %v1231
        %2357 = vmatprep.subr.mxu0 %v1228
        %2358 = vmatpush1.msra.mxu0 %v1227
        %2359 = vmatprep.subr.mxu0 %v1224
        %2360 = vmatpush1.msra.mxu0 %v1223
        %2361 = vmatprep.subr.mxu0 %v1220
        %2362 = vmatpush1.msra.mxu0 %v1219
        %2363 = vmatprep.subr.mxu0 %v1216
        %2364 = vmatpush1.msra.mxu0 %v1215
        %2365 = vmatprep.subr.mxu0 %v1212
        %2366 = vmatpush1.msra.mxu0 %v1211
        %2367 = vmatprep.subr.mxu0 %v1208
        %2368 = vmatpush1.msra.mxu0 %v1207
        %2369 = vmatprep.subr.mxu0 %v1204
        %2370 = vmatpush1.msra.mxu0 %v1203
        %2371 = vmatprep.subr.mxu0 %v1200
        %2372 = vmatpush1.msra.mxu0 %v1199
        %2373 = vmatprep.subr.mxu0 %v1196
        %2374 = vmatpush1.msra.mxu0 %v1195
        %2375 = vmatprep.subr.mxu0 %v1192
        %2376 = vmatpush1.msra.mxu0 %v1191
        %2377 = vmatprep.subr.mxu0 %v1188
        %2378 = vmatpush1.msra.mxu0 %v1187
        %2379 = vmatprep.subr.mxu0 0.0
        %2380 = vmatpush2.msra.mxu0 0.0
        %2381 = vmatprep.subr.mxu0 0.0
        %2382 = vmatpush2.msra.mxu0 0.0
        %2383 = vmatprep.subr.mxu0 0.0
        %2384 = vmatpush2.msra.mxu0 0.0
        %2385 = vmatprep.subr.mxu0 0.0
        %2386 = vmatpush2.msra.mxu0 0.0
        %2387 = vmatprep.subr.mxu0 0.0
        %2388 = vmatpush2.msra.mxu0 0.0
        %2389 = vmatprep.subr.mxu0 0.0
        %2390 = vmatpush2.msra.mxu0 0.0
        %2391 = vmatprep.subr.mxu0 0.0
        %2392 = vmatpush2.msra.mxu0 0.0
        %2393 = vmatprep.subr.mxu0 0.0
        %2394 = vmatpush2.msra.mxu0 0.0
        %2395 = vmatprep.subr.mxu0 0.0
        %2396 = vmatpush2.msra.mxu0 0.0
        %2397 = vmatprep.subr.mxu0 0.0
        %2398 = vmatpush2.msra.mxu0 0.0
        %2399 = vmatprep.subr.mxu0 0.0
        %2400 = vmatpush2.msra.mxu0 0.0
        %2401 = vmatprep.subr.mxu0 0.0
        %2402 = vmatpush2.msra.mxu0 0.0
        %2403 = vmatprep.subr.mxu0 0.0
        %2404 = vmatpush2.msra.mxu0 0.0
        %2405 = vmatprep.subr.mxu0 0.0
        %2406 = vmatpush2.msra.mxu0 0.0
        %2407 = vmatprep.subr.mxu0 0.0
        %2408 = vmatpush2.msra.mxu0 0.0
        %2409 = vmatprep.subr.mxu0 0.0
        %2410 = vmatpush2.msra.mxu0 0.0
        %2411 = vmatprep.mubr.f32.mxu0 0.0
        %2412 = vmatmul.mubr.f32.gmra.mxu0 %v2312
        %v2413 = vpop.f32.mrf.mxu0
        %v2414 = vadd.f32 0.0, %v2413
        %v2415 = vpop.f32.mrf.mxu0
        %v2416 = vadd.f32 0.0, %v2415
        %2417 = vdwg.mxu0
        %2418 = vmatprep.subr.mxu0 %v1250
        %2419 = vmatpush1.msra.mxu0 %v1249
        %2420 = vmatprep.subr.mxu0 %v1246
        %2421 = vmatpush1.msra.mxu0 %v1245
        %2422 = vmatprep.subr.mxu0 %v1242
        %2423 = vmatpush1.msra.mxu0 %v1241
        %2424 = vmatprep.subr.mxu0 %v1238
        %2425 = vmatpush1.msra.mxu0 %v1237
        %2426 = vmatprep.subr.mxu0 %v1234
        %2427 = vmatpush1.msra.mxu0 %v1233
        %2428 = vmatprep.subr.mxu0 %v1230
        %2429 = vmatpush1.msra.mxu0 %v1229
        %2430 = vmatprep.subr.mxu0 %v1226
        %2431 = vmatpush1.msra.mxu0 %v1225
        %2432 = vmatprep.subr.mxu0 %v1222
        %2433 = vmatpush1.msra.mxu0 %v1221
        %2434 = vmatprep.subr.mxu0 %v1218
        %2435 = vmatpush1.msra.mxu0 %v1217
        %2436 = vmatprep.subr.mxu0 %v1214
        %2437 = vmatpush1.msra.mxu0 %v1213
        %2438 = vmatprep.subr.mxu0 %v1210
        %2439 = vmatpush1.msra.mxu0 %v1209
        %2440 = vmatprep.subr.mxu0 %v1206
        %2441 = vmatpush1.msra.mxu0 %v1205
        %2442 = vmatprep.subr.mxu0 %v1202
        %2443 = vmatpush1.msra.mxu0 %v1201
        %2444 = vmatprep.subr.mxu0 %v1198
        %2445 = vmatpush1.msra.mxu0 %v1197
        %2446 = vmatprep.subr.mxu0 %v1194
        %2447 = vmatpush1.msra.mxu0 %v1193
        %2448 = vmatprep.subr.mxu0 %v1190
        %2449 = vmatpush1.msra.mxu0 %v1189
        %2450 = vmatprep.subr.mxu0 0.0
        %2451 = vmatpush2.msra.mxu0 0.0
        %2452 = vmatprep.subr.mxu0 0.0
        %2453 = vmatpush2.msra.mxu0 0.0
        %2454 = vmatprep.subr.mxu0 0.0
        %2455 = vmatpush2.msra.mxu0 0.0
        %2456 = vmatprep.subr.mxu0 0.0
        %2457 = vmatpush2.msra.mxu0 0.0
        %2458 = vmatprep.subr.mxu0 0.0
        %2459 = vmatpush2.msra.mxu0 0.0
        %2460 = vmatprep.subr.mxu0 0.0
        %2461 = vmatpush2.msra.mxu0 0.0
        %2462 = vmatprep.subr.mxu0 0.0
        %2463 = vmatpush2.msra.mxu0 0.0
        %2464 = vmatprep.subr.mxu0 0.0
        %2465 = vmatpush2.msra.mxu0 0.0
        %2466 = vmatprep.subr.mxu0 0.0
        %2467 = vmatpush2.msra.mxu0 0.0
        %2468 = vmatprep.subr.mxu0 0.0
        %2469 = vmatpush2.msra.mxu0 0.0
        %2470 = vmatprep.subr.mxu0 0.0
        %2471 = vmatpush2.msra.mxu0 0.0
        %2472 = vmatprep.subr.mxu0 0.0
        %2473 = vmatpush2.msra.mxu0 0.0
        %2474 = vmatprep.subr.mxu0 0.0
        %2475 = vmatpush2.msra.mxu0 0.0
        %2476 = vmatprep.subr.mxu0 0.0
        %2477 = vmatpush2.msra.mxu0 0.0
        %2478 = vmatprep.subr.mxu0 0.0
        %2479 = vmatpush2.msra.mxu0 0.0
        %2480 = vmatprep.subr.mxu0 0.0
        %2481 = vmatpush2.msra.mxu0 0.0
        %2482 = vmatprep.mubr.f32.mxu0 0.0
        %2483 = vmatmul.mubr.f32.gmra.mxu0 %v2312
        %v2484 = vpop.f32.mrf.mxu0
        %v2485 = vadd.f32 0.0, %v2484
        %v2486 = vpop.f32.mrf.mxu0
        %v2487 = vadd.f32 0.0, %v2486
        %2488 = vdwg.mxu0
        %v2489 = vadd.f32 %v2331, %v2414
        %v2490 = vadd.f32 %v2332, %v2416
        %v2491 = vadd.f32 %v2333, %v2485
        %v2492 = vadd.f32 %v2334, %v2487
        %2493 = vmatprep.subr.mxu0 %v1458
        %2494 = vmatpush1.msra.mxu0 %v1457
        %2495 = vmatprep.subr.mxu0 %v1454
        %2496 = vmatpush1.msra.mxu0 %v1453
        %2497 = vmatprep.subr.mxu0 %v1450
        %2498 = vmatpush1.msra.mxu0 %v1449
        %2499 = vmatprep.subr.mxu0 %v1446
        %2500 = vmatpush1.msra.mxu0 %v1445
        %2501 = vmatprep.subr.mxu0 %v1442
        %2502 = vmatpush1.msra.mxu0 %v1441
        %2503 = vmatprep.subr.mxu0 %v1438
        %2504 = vmatpush1.msra.mxu0 %v1437
        %2505 = vmatprep.subr.mxu0 %v1434
        %2506 = vmatpush1.msra.mxu0 %v1433
        %2507 = vmatprep.subr.mxu0 %v1430
        %2508 = vmatpush1.msra.mxu0 %v1429
        %2509 = vmatprep.subr.mxu0 %v1426
        %2510 = vmatpush1.msra.mxu0 %v1425
        %2511 = vmatprep.subr.mxu0 %v1422
        %2512 = vmatpush1.msra.mxu0 %v1421
        %2513 = vmatprep.subr.mxu0 %v1418
        %2514 = vmatpush1.msra.mxu0 %v1417
        %2515 = vmatprep.subr.mxu0 %v1414
        %2516 = vmatpush1.msra.mxu0 %v1413
        %2517 = vmatprep.subr.mxu0 %v1410
        %2518 = vmatpush1.msra.mxu0 %v1409
        %2519 = vmatprep.subr.mxu0 %v1406
        %2520 = vmatpush1.msra.mxu0 %v1405
        %2521 = vmatprep.subr.mxu0 %v1402
        %2522 = vmatpush1.msra.mxu0 %v1401
        %2523 = vmatprep.subr.mxu0 %v1398
        %2524 = vmatpush1.msra.mxu0 %v1397
        %2525 = vmatprep.subr.mxu0 0.0
        %2526 = vmatpush2.msra.mxu0 0.0
        %2527 = vmatprep.subr.mxu0 0.0
        %2528 = vmatpush2.msra.mxu0 0.0
        %2529 = vmatprep.subr.mxu0 0.0
        %2530 = vmatpush2.msra.mxu0 0.0
        %2531 = vmatprep.subr.mxu0 0.0
        %2532 = vmatpush2.msra.mxu0 0.0
        %2533 = vmatprep.subr.mxu0 0.0
        %2534 = vmatpush2.msra.mxu0 0.0
        %2535 = vmatprep.subr.mxu0 0.0
        %2536 = vmatpush2.msra.mxu0 0.0
        %2537 = vmatprep.subr.mxu0 0.0
        %2538 = vmatpush2.msra.mxu0 0.0
        %2539 = vmatprep.subr.mxu0 0.0
        %2540 = vmatpush2.msra.mxu0 0.0
        %2541 = vmatprep.subr.mxu0 0.0
        %2542 = vmatpush2.msra.mxu0 0.0
        %2543 = vmatprep.subr.mxu0 0.0
        %2544 = vmatpush2.msra.mxu0 0.0
        %2545 = vmatprep.subr.mxu0 0.0
        %2546 = vmatpush2.msra.mxu0 0.0
        %2547 = vmatprep.subr.mxu0 0.0
        %2548 = vmatpush2.msra.mxu0 0.0
        %2549 = vmatprep.subr.mxu0 0.0
        %2550 = vmatpush2.msra.mxu0 0.0
        %2551 = vmatprep.subr.mxu0 0.0
        %2552 = vmatpush2.msra.mxu0 0.0
        %2553 = vmatprep.subr.mxu0 0.0
        %2554 = vmatpush2.msra.mxu0 0.0
        %2555 = vmatprep.subr.mxu0 0.0
        %2556 = vmatpush2.msra.mxu0 0.0
        %2557 = vmatprep.mubr.f32.mxu0 0.0
        %2558 = vmatmul.mubr.f32.gmra.mxu0 %v2330
        %v2559 = vpop.f32.mrf.mxu0
        %v2560 = vadd.f32 0.0, %v2559
        %v2561 = vpop.f32.mrf.mxu0
        %v2562 = vadd.f32 0.0, %v2561
        %2563 = vdwg.mxu0
        %2564 = vmatprep.subr.mxu0 %v1460
        %2565 = vmatpush1.msra.mxu0 %v1459
        %2566 = vmatprep.subr.mxu0 %v1456
        %2567 = vmatpush1.msra.mxu0 %v1455
        %2568 = vmatprep.subr.mxu0 %v1452
        %2569 = vmatpush1.msra.mxu0 %v1451
        %2570 = vmatprep.subr.mxu0 %v1448
        %2571 = vmatpush1.msra.mxu0 %v1447
        %2572 = vmatprep.subr.mxu0 %v1444
        %2573 = vmatpush1.msra.mxu0 %v1443
        %2574 = vmatprep.subr.mxu0 %v1440
        %2575 = vmatpush1.msra.mxu0 %v1439
        %2576 = vmatprep.subr.mxu0 %v1436
        %2577 = vmatpush1.msra.mxu0 %v1435
        %2578 = vmatprep.subr.mxu0 %v1432
        %2579 = vmatpush1.msra.mxu0 %v1431
        %2580 = vmatprep.subr.mxu0 %v1428
        %2581 = vmatpush1.msra.mxu0 %v1427
        %2582 = vmatprep.subr.mxu0 %v1424
        %2583 = vmatpush1.msra.mxu0 %v1423
        %2584 = vmatprep.subr.mxu0 %v1420
        %2585 = vmatpush1.msra.mxu0 %v1419
        %2586 = vmatprep.subr.mxu0 %v1416
        %2587 = vmatpush1.msra.mxu0 %v1415
        %2588 = vmatprep.subr.mxu0 %v1412
        %2589 = vmatpush1.msra.mxu0 %v1411
        %2590 = vmatprep.subr.mxu0 %v1408
        %2591 = vmatpush1.msra.mxu0 %v1407
        %2592 = vmatprep.subr.mxu0 %v1404
        %2593 = vmatpush1.msra.mxu0 %v1403
        %2594 = vmatprep.subr.mxu0 %v1400
        %2595 = vmatpush1.msra.mxu0 %v1399
        %2596 = vmatprep.subr.mxu0 0.0
        %2597 = vmatpush2.msra.mxu0 0.0
        %2598 = vmatprep.subr.mxu0 0.0
        %2599 = vmatpush2.msra.mxu0 0.0
        %2600 = vmatprep.subr.mxu0 0.0
        %2601 = vmatpush2.msra.mxu0 0.0
        %2602 = vmatprep.subr.mxu0 0.0
        %2603 = vmatpush2.msra.mxu0 0.0
        %2604 = vmatprep.subr.mxu0 0.0
        %2605 = vmatpush2.msra.mxu0 0.0
        %2606 = vmatprep.subr.mxu0 0.0
        %2607 = vmatpush2.msra.mxu0 0.0
        %2608 = vmatprep.subr.mxu0 0.0
        %2609 = vmatpush2.msra.mxu0 0.0
        %2610 = vmatprep.subr.mxu0 0.0
        %2611 = vmatpush2.msra.mxu0 0.0
        %2612 = vmatprep.subr.mxu0 0.0
        %2613 = vmatpush2.msra.mxu0 0.0
        %2614 = vmatprep.subr.mxu0 0.0
        %2615 = vmatpush2.msra.mxu0 0.0
        %2616 = vmatprep.subr.mxu0 0.0
        %2617 = vmatpush2.msra.mxu0 0.0
        %2618 = vmatprep.subr.mxu0 0.0
        %2619 = vmatpush2.msra.mxu0 0.0
        %2620 = vmatprep.subr.mxu0 0.0
        %2621 = vmatpush2.msra.mxu0 0.0
        %2622 = vmatprep.subr.mxu0 0.0
        %2623 = vmatpush2.msra.mxu0 0.0
        %2624 = vmatprep.subr.mxu0 0.0
        %2625 = vmatpush2.msra.mxu0 0.0
        %2626 = vmatprep.subr.mxu0 0.0
        %2627 = vmatpush2.msra.mxu0 0.0
        %2628 = vmatprep.mubr.f32.mxu0 0.0
        %2629 = vmatmul.mubr.f32.gmra.mxu0 %v2330
        %v2630 = vpop.f32.mrf.mxu0
        %v2631 = vadd.f32 0.0, %v2630
        %v2632 = vpop.f32.mrf.mxu0
        %v2633 = vadd.f32 0.0, %v2632
        %2634 = vdwg.mxu0
        %v2635 = vadd.f32 %v2343, %v2560
        %v2636 = vadd.f32 %v2344, %v2562
        %v2637 = vadd.f32 %v2345, %v2631
        %v2638 = vadd.f32 %v2346, %v2633
        %v2639 = vmul.f32 %v2489, 0.5
        %v2640 = vtanh.pop %v2639
        %v2641 = vadd.f32 %v2640, 1.0
        %v2642 = vmul.f32 %v2641, 0.5
        %v2643 = vmul.f32 %v2490, 0.5
        %v2644 = vtanh.pop %v2643
        %v2645 = vadd.f32 %v2644, 1.0
        %v2646 = vmul.f32 %v2645, 0.5
        %v2647 = vtanh.pop %v2491
        %v2648 = vmul.f32 %v2492, 0.5
        %v2649 = vtanh.pop %v2648
        %v2650 = vadd.f32 %v2649, 1.0
        %v2651 = vmul.f32 %v2650, 0.5
        %v2652 = vmul.f32 %v2646, %v2310
        %v2653 = vmul.f32 %v2642, %v2647
        %v2654 = vadd.f32 %v2652, %v2653
        %v2655 = vtanh.pop %v2654
        %v2656 = vmul.f32 %v2651, %v2655
        %v2657 = vmul.f32 %v2635, 0.5
        %v2658 = vtanh.pop %v2657
        %v2659 = vadd.f32 %v2658, 1.0
        %v2660 = vmul.f32 %v2659, 0.5
        %v2661 = vmul.f32 %v2636, 0.5
        %v2662 = vtanh.pop %v2661
        %v2663 = vadd.f32 %v2662, 1.0
        %v2664 = vmul.f32 %v2663, 0.5
        %v2665 = vtanh.pop %v2637
        %v2666 = vmul.f32 %v2638, 0.5
        %v2667 = vtanh.pop %v2666
        %v2668 = vadd.f32 %v2667, 1.0
        %v2669 = vmul.f32 %v2668, 0.5
        %v2670 = vmul.f32 %v2664, %v2328
        %v2671 = vmul.f32 %v2660, %v2665
        %v2672 = vadd.f32 %v2670, %v2671
        %v2673 = vtanh.pop %v2672
        %v2674 = vmul.f32 %v2669, %v2673
        %2675 = vmatprep.subr.mxu0 %v1248
        %2676 = vmatpush1.msra.mxu0 %v1247
        %2677 = vmatprep.subr.mxu0 %v1244
        %2678 = vmatpush1.msra.mxu0 %v1243
        %2679 = vmatprep.subr.mxu0 %v1240
        %2680 = vmatpush1.msra.mxu0 %v1239
        %2681 = vmatprep.subr.mxu0 %v1236
        %2682 = vmatpush1.msra.mxu0 %v1235
        %2683 = vmatprep.subr.mxu0 %v1232
        %2684 = vmatpush1.msra.mxu0 %v1231
        %2685 = vmatprep.subr.mxu0 %v1228
        %2686 = vmatpush1.msra.mxu0 %v1227
        %2687 = vmatprep.subr.mxu0 %v1224
        %2688 = vmatpush1.msra.mxu0 %v1223
        %2689 = vmatprep.subr.mxu0 %v1220
        %2690 = vmatpush1.msra.mxu0 %v1219
        %2691 = vmatprep.subr.mxu0 %v1216
        %2692 = vmatpush1.msra.mxu0 %v1215
        %2693 = vmatprep.subr.mxu0 %v1212
        %2694 = vmatpush1.msra.mxu0 %v1211
        %2695 = vmatprep.subr.mxu0 %v1208
        %2696 = vmatpush1.msra.mxu0 %v1207
        %2697 = vmatprep.subr.mxu0 %v1204
        %2698 = vmatpush1.msra.mxu0 %v1203
        %2699 = vmatprep.subr.mxu0 %v1200
        %2700 = vmatpush1.msra.mxu0 %v1199
        %2701 = vmatprep.subr.mxu0 %v1196
        %2702 = vmatpush1.msra.mxu0 %v1195
        %2703 = vmatprep.subr.mxu0 %v1192
        %2704 = vmatpush1.msra.mxu0 %v1191
        %2705 = vmatprep.subr.mxu0 %v1188
        %2706 = vmatpush1.msra.mxu0 %v1187
        %2707 = vmatprep.subr.mxu0 0.0
        %2708 = vmatpush2.msra.mxu0 0.0
        %2709 = vmatprep.subr.mxu0 0.0
        %2710 = vmatpush2.msra.mxu0 0.0
        %2711 = vmatprep.subr.mxu0 0.0
        %2712 = vmatpush2.msra.mxu0 0.0
        %2713 = vmatprep.subr.mxu0 0.0
        %2714 = vmatpush2.msra.mxu0 0.0
        %2715 = vmatprep.subr.mxu0 0.0
        %2716 = vmatpush2.msra.mxu0 0.0
        %2717 = vmatprep.subr.mxu0 0.0
        %2718 = vmatpush2.msra.mxu0 0.0
        %2719 = vmatprep.subr.mxu0 0.0
        %2720 = vmatpush2.msra.mxu0 0.0
        %2721 = vmatprep.subr.mxu0 0.0
        %2722 = vmatpush2.msra.mxu0 0.0
        %2723 = vmatprep.subr.mxu0 0.0
        %2724 = vmatpush2.msra.mxu0 0.0
        %2725 = vmatprep.subr.mxu0 0.0
        %2726 = vmatpush2.msra.mxu0 0.0
        %2727 = vmatprep.subr.mxu0 0.0
        %2728 = vmatpush2.msra.mxu0 0.0
        %2729 = vmatprep.subr.mxu0 0.0
        %2730 = vmatpush2.msra.mxu0 0.0
        %2731 = vmatprep.subr.mxu0 0.0
        %2732 = vmatpush2.msra.mxu0 0.0
        %2733 = vmatprep.subr.mxu0 0.0
        %2734 = vmatpush2.msra.mxu0 0.0
        %2735 = vmatprep.subr.mxu0 0.0
        %2736 = vmatpush2.msra.mxu0 0.0
        %2737 = vmatprep.subr.mxu0 0.0
        %2738 = vmatpush2.msra.mxu0 0.0
        %2739 = vmatprep.mubr.f32.mxu0 0.0
        %2740 = vmatmul.mubr.f32.gmra.mxu0 %v2656
        %v2741 = vpop.f32.mrf.mxu0
        %v2742 = vadd.f32 0.0, %v2741
        %v2743 = vpop.f32.mrf.mxu0
        %v2744 = vadd.f32 0.0, %v2743
        %2745 = vdwg.mxu0
        %2746 = vmatprep.subr.mxu0 %v1250
        %2747 = vmatpush1.msra.mxu0 %v1249
        %2748 = vmatprep.subr.mxu0 %v1246
        %2749 = vmatpush1.msra.mxu0 %v1245
        %2750 = vmatprep.subr.mxu0 %v1242
        %2751 = vmatpush1.msra.mxu0 %v1241
        %2752 = vmatprep.subr.mxu0 %v1238
        %2753 = vmatpush1.msra.mxu0 %v1237
        %2754 = vmatprep.subr.mxu0 %v1234
        %2755 = vmatpush1.msra.mxu0 %v1233
        %2756 = vmatprep.subr.mxu0 %v1230
        %2757 = vmatpush1.msra.mxu0 %v1229
        %2758 = vmatprep.subr.mxu0 %v1226
        %2759 = vmatpush1.msra.mxu0 %v1225
        %2760 = vmatprep.subr.mxu0 %v1222
        %2761 = vmatpush1.msra.mxu0 %v1221
        %2762 = vmatprep.subr.mxu0 %v1218
        %2763 = vmatpush1.msra.mxu0 %v1217
        %2764 = vmatprep.subr.mxu0 %v1214
        %2765 = vmatpush1.msra.mxu0 %v1213
        %2766 = vmatprep.subr.mxu0 %v1210
        %2767 = vmatpush1.msra.mxu0 %v1209
        %2768 = vmatprep.subr.mxu0 %v1206
        %2769 = vmatpush1.msra.mxu0 %v1205
        %2770 = vmatprep.subr.mxu0 %v1202
        %2771 = vmatpush1.msra.mxu0 %v1201
        %2772 = vmatprep.subr.mxu0 %v1198
        %2773 = vmatpush1.msra.mxu0 %v1197
        %2774 = vmatprep.subr.mxu0 %v1194
        %2775 = vmatpush1.msra.mxu0 %v1193
        %2776 = vmatprep.subr.mxu0 %v1190
        %2777 = vmatpush1.msra.mxu0 %v1189
        %2778 = vmatprep.subr.mxu0 0.0
        %2779 = vmatpush2.msra.mxu0 0.0
        %2780 = vmatprep.subr.mxu0 0.0
        %2781 = vmatpush2.msra.mxu0 0.0
        %2782 = vmatprep.subr.mxu0 0.0
        %2783 = vmatpush2.msra.mxu0 0.0
        %2784 = vmatprep.subr.mxu0 0.0
        %2785 = vmatpush2.msra.mxu0 0.0
        %2786 = vmatprep.subr.mxu0 0.0
        %2787 = vmatpush2.msra.mxu0 0.0
        %2788 = vmatprep.subr.mxu0 0.0
        %2789 = vmatpush2.msra.mxu0 0.0
        %2790 = vmatprep.subr.mxu0 0.0
        %2791 = vmatpush2.msra.mxu0 0.0
        %2792 = vmatprep.subr.mxu0 0.0
        %2793 = vmatpush2.msra.mxu0 0.0
        %2794 = vmatprep.subr.mxu0 0.0
        %2795 = vmatpush2.msra.mxu0 0.0
        %2796 = vmatprep.subr.mxu0 0.0
        %2797 = vmatpush2.msra.mxu0 0.0
        %2798 = vmatprep.subr.mxu0 0.0
        %2799 = vmatpush2.msra.mxu0 0.0
        %2800 = vmatprep.subr.mxu0 0.0
        %2801 = vmatpush2.msra.mxu0 0.0
        %2802 = vmatprep.subr.mxu0 0.0
        %2803 = vmatpush2.msra.mxu0 0.0
        %2804 = vmatprep.subr.mxu0 0.0
        %2805 = vmatpush2.msra.mxu0 0.0
        %2806 = vmatprep.subr.mxu0 0.0
        %2807 = vmatpush2.msra.mxu0 0.0
        %2808 = vmatprep.subr.mxu0 0.0
        %2809 = vmatpush2.msra.mxu0 0.0
        %2810 = vmatprep.mubr.f32.mxu0 0.0
        %2811 = vmatmul.mubr.f32.gmra.mxu0 %v2656
        %v2812 = vpop.f32.mrf.mxu0
        %v2813 = vadd.f32 0.0, %v2812
        %v2814 = vpop.f32.mrf.mxu0
        %v2815 = vadd.f32 0.0, %v2814
        %2816 = vdwg.mxu0
        %v2817 = vadd.f32 %v2339, %v2742
        %v2818 = vadd.f32 %v2340, %v2744
        %v2819 = vadd.f32 %v2341, %v2813
        %v2820 = vadd.f32 %v2342, %v2815
        %2821 = vmatprep.subr.mxu0 %v1458
        %2822 = vmatpush1.msra.mxu0 %v1457
        %2823 = vmatprep.subr.mxu0 %v1454
        %2824 = vmatpush1.msra.mxu0 %v1453
        %2825 = vmatprep.subr.mxu0 %v1450
        %2826 = vmatpush1.msra.mxu0 %v1449
        %2827 = vmatprep.subr.mxu0 %v1446
        %2828 = vmatpush1.msra.mxu0 %v1445
        %2829 = vmatprep.subr.mxu0 %v1442
        %2830 = vmatpush1.msra.mxu0 %v1441
        %2831 = vmatprep.subr.mxu0 %v1438
        %2832 = vmatpush1.msra.mxu0 %v1437
        %2833 = vmatprep.subr.mxu0 %v1434
        %2834 = vmatpush1.msra.mxu0 %v1433
        %2835 = vmatprep.subr.mxu0 %v1430
        %2836 = vmatpush1.msra.mxu0 %v1429
        %2837 = vmatprep.subr.mxu0 %v1426
        %2838 = vmatpush1.msra.mxu0 %v1425
        %2839 = vmatprep.subr.mxu0 %v1422
        %2840 = vmatpush1.msra.mxu0 %v1421
        %2841 = vmatprep.subr.mxu0 %v1418
        %2842 = vmatpush1.msra.mxu0 %v1417
        %2843 = vmatprep.subr.mxu0 %v1414
        %2844 = vmatpush1.msra.mxu0 %v1413
        %2845 = vmatprep.subr.mxu0 %v1410
        %2846 = vmatpush1.msra.mxu0 %v1409
        %2847 = vmatprep.subr.mxu0 %v1406
        %2848 = vmatpush1.msra.mxu0 %v1405
        %2849 = vmatprep.subr.mxu0 %v1402
        %2850 = vmatpush1.msra.mxu0 %v1401
        %2851 = vmatprep.subr.mxu0 %v1398
        %2852 = vmatpush1.msra.mxu0 %v1397
        %2853 = vmatprep.subr.mxu0 0.0
        %2854 = vmatpush2.msra.mxu0 0.0
        %2855 = vmatprep.subr.mxu0 0.0
        %2856 = vmatpush2.msra.mxu0 0.0
        %2857 = vmatprep.subr.mxu0 0.0
        %2858 = vmatpush2.msra.mxu0 0.0
        %2859 = vmatprep.subr.mxu0 0.0
        %2860 = vmatpush2.msra.mxu0 0.0
        %2861 = vmatprep.subr.mxu0 0.0
        %2862 = vmatpush2.msra.mxu0 0.0
        %2863 = vmatprep.subr.mxu0 0.0
        %2864 = vmatpush2.msra.mxu0 0.0
        %2865 = vmatprep.subr.mxu0 0.0
        %2866 = vmatpush2.msra.mxu0 0.0
        %2867 = vmatprep.subr.mxu0 0.0
        %2868 = vmatpush2.msra.mxu0 0.0
        %2869 = vmatprep.subr.mxu0 0.0
        %2870 = vmatpush2.msra.mxu0 0.0
        %2871 = vmatprep.subr.mxu0 0.0
        %2872 = vmatpush2.msra.mxu0 0.0
        %2873 = vmatprep.subr.mxu0 0.0
        %2874 = vmatpush2.msra.mxu0 0.0
        %2875 = vmatprep.subr.mxu0 0.0
        %2876 = vmatpush2.msra.mxu0 0.0
        %2877 = vmatprep.subr.mxu0 0.0
        %2878 = vmatpush2.msra.mxu0 0.0
        %2879 = vmatprep.subr.mxu0 0.0
        %2880 = vmatpush2.msra.mxu0 0.0
        %2881 = vmatprep.subr.mxu0 0.0
        %2882 = vmatpush2.msra.mxu0 0.0
        %2883 = vmatprep.subr.mxu0 0.0
        %2884 = vmatpush2.msra.mxu0 0.0
        %2885 = vmatprep.mubr.f32.mxu0 0.0
        %2886 = vmatmul.mubr.f32.gmra.mxu0 %v2674
        %v2887 = vpop.f32.mrf.mxu0
        %v2888 = vadd.f32 0.0, %v2887
        %v2889 = vpop.f32.mrf.mxu0
        %v2890 = vadd.f32 0.0, %v2889
        %2891 = vdwg.mxu0
        %2892 = vmatprep.subr.mxu0 %v1460
        %2893 = vmatpush1.msra.mxu0 %v1459
        %2894 = vmatprep.subr.mxu0 %v1456
        %2895 = vmatpush1.msra.mxu0 %v1455
        %2896 = vmatprep.subr.mxu0 %v1452
        %2897 = vmatpush1.msra.mxu0 %v1451
        %2898 = vmatprep.subr.mxu0 %v1448
        %2899 = vmatpush1.msra.mxu0 %v1447
        %2900 = vmatprep.subr.mxu0 %v1444
        %2901 = vmatpush1.msra.mxu0 %v1443
        %2902 = vmatprep.subr.mxu0 %v1440
        %2903 = vmatpush1.msra.mxu0 %v1439
        %2904 = vmatprep.subr.mxu0 %v1436
        %2905 = vmatpush1.msra.mxu0 %v1435
        %2906 = vmatprep.subr.mxu0 %v1432
        %2907 = vmatpush1.msra.mxu0 %v1431
        %2908 = vmatprep.subr.mxu0 %v1428
        %2909 = vmatpush1.msra.mxu0 %v1427
        %2910 = vmatprep.subr.mxu0 %v1424
        %2911 = vmatpush1.msra.mxu0 %v1423
        %2912 = vmatprep.subr.mxu0 %v1420
        %2913 = vmatpush1.msra.mxu0 %v1419
        %2914 = vmatprep.subr.mxu0 %v1416
        %2915 = vmatpush1.msra.mxu0 %v1415
        %2916 = vmatprep.subr.mxu0 %v1412
        %2917 = vmatpush1.msra.mxu0 %v1411
        %2918 = vmatprep.subr.mxu0 %v1408
        %2919 = vmatpush1.msra.mxu0 %v1407
        %2920 = vmatprep.subr.mxu0 %v1404
        %2921 = vmatpush1.msra.mxu0 %v1403
        %2922 = vmatprep.subr.mxu0 %v1400
        %2923 = vmatpush1.msra.mxu0 %v1399
        %2924 = vmatprep.subr.mxu0 0.0
        %2925 = vmatpush2.msra.mxu0 0.0
        %2926 = vmatprep.subr.mxu0 0.0
        %2927 = vmatpush2.msra.mxu0 0.0
        %2928 = vmatprep.subr.mxu0 0.0
        %2929 = vmatpush2.msra.mxu0 0.0
        %2930 = vmatprep.subr.mxu0 0.0
        %2931 = vmatpush2.msra.mxu0 0.0
        %2932 = vmatprep.subr.mxu0 0.0
        %2933 = vmatpush2.msra.mxu0 0.0
        %2934 = vmatprep.subr.mxu0 0.0
        %2935 = vmatpush2.msra.mxu0 0.0
        %2936 = vmatprep.subr.mxu0 0.0
        %2937 = vmatpush2.msra.mxu0 0.0
        %2938 = vmatprep.subr.mxu0 0.0
        %2939 = vmatpush2.msra.mxu0 0.0
        %2940 = vmatprep.subr.mxu0 0.0
        %2941 = vmatpush2.msra.mxu0 0.0
        %2942 = vmatprep.subr.mxu0 0.0
        %2943 = vmatpush2.msra.mxu0 0.0
        %2944 = vmatprep.subr.mxu0 0.0
        %2945 = vmatpush2.msra.mxu0 0.0
        %2946 = vmatprep.subr.mxu0 0.0
        %2947 = vmatpush2.msra.mxu0 0.0
        %2948 = vmatprep.subr.mxu0 0.0
        %2949 = vmatpush2.msra.mxu0 0.0
        %2950 = vmatprep.subr.mxu0 0.0
        %2951 = vmatpush2.msra.mxu0 0.0
        %2952 = vmatprep.subr.mxu0 0.0
        %2953 = vmatpush2.msra.mxu0 0.0
        %2954 = vmatprep.subr.mxu0 0.0
        %2955 = vmatpush2.msra.mxu0 0.0
        %2956 = vmatprep.mubr.f32.mxu0 0.0
        %2957 = vmatmul.mubr.f32.gmra.mxu0 %v2674
        %v2958 = vpop.f32.mrf.mxu0
        %v2959 = vadd.f32 0.0, %v2958
        %v2960 = vpop.f32.mrf.mxu0
        %v2961 = vadd.f32 0.0, %v2960
        %2962 = vdwg.mxu0
        %v2963 = vadd.f32 %v2335, %v2888
        %v2964 = vadd.f32 %v2336, %v2890
        %v2965 = vadd.f32 %v2337, %v2959
        %v2966 = vadd.f32 %v2338, %v2961
        %v2967 = vmul.f32 %v2817, 0.5
        %v2968 = vtanh.pop %v2967
        %v2969 = vadd.f32 %v2968, 1.0
        %v2970 = vmul.f32 %v2969, 0.5
        %v2971 = vmul.f32 %v2818, 0.5
        %v2972 = vtanh.pop %v2971
        %v2973 = vadd.f32 %v2972, 1.0
        %v2974 = vmul.f32 %v2973, 0.5
        %v2975 = vtanh.pop %v2819
        %v2976 = vmul.f32 %v2820, 0.5
        %v2977 = vtanh.pop %v2976
        %v2978 = vadd.f32 %v2977, 1.0
        %v2979 = vmul.f32 %v2978, 0.5
        %v2980 = vmul.f32 %v2974, %v2654
        %v2981 = vmul.f32 %v2970, %v2975
        %v2982 = vadd.f32 %v2980, %v2981
        %v2983 = vtanh.pop %v2982
        %v2984 = vmul.f32 %v2979, %v2983
        %v2985 = vmul.f32 %v2963, 0.5
        %v2986 = vtanh.pop %v2985
        %v2987 = vadd.f32 %v2986, 1.0
        %v2988 = vmul.f32 %v2987, 0.5
        %v2989 = vmul.f32 %v2964, 0.5
        %v2990 = vtanh.pop %v2989
        %v2991 = vadd.f32 %v2990, 1.0
        %v2992 = vmul.f32 %v2991, 0.5
        %v2993 = vtanh.pop %v2965
        %v2994 = vmul.f32 %v2966, 0.5
        %v2995 = vtanh.pop %v2994
        %v2996 = vadd.f32 %v2995, 1.0
        %v2997 = vmul.f32 %v2996, 0.5
        %v2998 = vmul.f32 %v2992, %v2672
        %v2999 = vmul.f32 %v2988, %v2993
        %v3000 = vadd.f32 %v2998, %v2999
        %v3001 = vtanh.pop %v3000
        %v3002 = vmul.f32 %v2997, %v3001
        %3003 = vmatprep.subr.mxu0 %v1248
        %3004 = vmatpush1.msra.mxu0 %v1247
        %3005 = vmatprep.subr.mxu0 %v1244
        %3006 = vmatpush1.msra.mxu0 %v1243
        %3007 = vmatprep.subr.mxu0 %v1240
        %3008 = vmatpush1.msra.mxu0 %v1239
        %3009 = vmatprep.subr.mxu0 %v1236
        %3010 = vmatpush1.msra.mxu0 %v1235
        %3011 = vmatprep.subr.mxu0 %v1232
        %3012 = vmatpush1.msra.mxu0 %v1231
        %3013 = vmatprep.subr.mxu0 %v1228
        %3014 = vmatpush1.msra.mxu0 %v1227
        %3015 = vmatprep.subr.mxu0 %v1224
        %3016 = vmatpush1.msra.mxu0 %v1223
        %3017 = vmatprep.subr.mxu0 %v1220
        %3018 = vmatpush1.msra.mxu0 %v1219
        %3019 = vmatprep.subr.mxu0 %v1216
        %3020 = vmatpush1.msra.mxu0 %v1215
        %3021 = vmatprep.subr.mxu0 %v1212
        %3022 = vmatpush1.msra.mxu0 %v1211
        %3023 = vmatprep.subr.mxu0 %v1208
        %3024 = vmatpush1.msra.mxu0 %v1207
        %3025 = vmatprep.subr.mxu0 %v1204
        %3026 = vmatpush1.msra.mxu0 %v1203
        %3027 = vmatprep.subr.mxu0 %v1200
        %3028 = vmatpush1.msra.mxu0 %v1199
        %3029 = vmatprep.subr.mxu0 %v1196
        %3030 = vmatpush1.msra.mxu0 %v1195
        %3031 = vmatprep.subr.mxu0 %v1192
        %3032 = vmatpush1.msra.mxu0 %v1191
        %3033 = vmatprep.subr.mxu0 %v1188
        %3034 = vmatpush1.msra.mxu0 %v1187
        %3035 = vmatprep.subr.mxu0 0.0
        %3036 = vmatpush2.msra.mxu0 0.0
        %3037 = vmatprep.subr.mxu0 0.0
        %3038 = vmatpush2.msra.mxu0 0.0
        %3039 = vmatprep.subr.mxu0 0.0
        %3040 = vmatpush2.msra.mxu0 0.0
        %3041 = vmatprep.subr.mxu0 0.0
        %3042 = vmatpush2.msra.mxu0 0.0
        %3043 = vmatprep.subr.mxu0 0.0
        %3044 = vmatpush2.msra.mxu0 0.0
        %3045 = vmatprep.subr.mxu0 0.0
        %3046 = vmatpush2.msra.mxu0 0.0
        %3047 = vmatprep.subr.mxu0 0.0
        %3048 = vmatpush2.msra.mxu0 0.0
        %3049 = vmatprep.subr.mxu0 0.0
        %3050 = vmatpush2.msra.mxu0 0.0
        %3051 = vmatprep.subr.mxu0 0.0
        %3052 = vmatpush2.msra.mxu0 0.0
        %3053 = vmatprep.subr.mxu0 0.0
        %3054 = vmatpush2.msra.mxu0 0.0
        %3055 = vmatprep.subr.mxu0 0.0
        %3056 = vmatpush2.msra.mxu0 0.0
        %3057 = vmatprep.subr.mxu0 0.0
        %3058 = vmatpush2.msra.mxu0 0.0
        %3059 = vmatprep.subr.mxu0 0.0
        %3060 = vmatpush2.msra.mxu0 0.0
        %3061 = vmatprep.subr.mxu0 0.0
        %3062 = vmatpush2.msra.mxu0 0.0
        %3063 = vmatprep.subr.mxu0 0.0
        %3064 = vmatpush2.msra.mxu0 0.0
        %3065 = vmatprep.subr.mxu0 0.0
        %3066 = vmatpush2.msra.mxu0 0.0
        %3067 = vmatprep.mubr.f32.mxu0 0.0
        %3068 = vmatmul.mubr.f32.gmra.mxu0 %v2984
        %v3069 = vpop.f32.mrf.mxu0
        %v3070 = vadd.f32 0.0, %v3069
        %v3071 = vpop.f32.mrf.mxu0
        %v3072 = vadd.f32 0.0, %v3071
        %3073 = vdwg.mxu0
        %3074 = vmatprep.subr.mxu0 %v1250
        %3075 = vmatpush1.msra.mxu0 %v1249
        %3076 = vmatprep.subr.mxu0 %v1246
        %3077 = vmatpush1.msra.mxu0 %v1245
        %3078 = vmatprep.subr.mxu0 %v1242
        %3079 = vmatpush1.msra.mxu0 %v1241
        %3080 = vmatprep.subr.mxu0 %v1238
        %3081 = vmatpush1.msra.mxu0 %v1237
        %3082 = vmatprep.subr.mxu0 %v1234
        %3083 = vmatpush1.msra.mxu0 %v1233
        %3084 = vmatprep.subr.mxu0 %v1230
        %3085 = vmatpush1.msra.mxu0 %v1229
        %3086 = vmatprep.subr.mxu0 %v1226
        %3087 = vmatpush1.msra.mxu0 %v1225
        %3088 = vmatprep.subr.mxu0 %v1222
        %3089 = vmatpush1.msra.mxu0 %v1221
        %3090 = vmatprep.subr.mxu0 %v1218
        %3091 = vmatpush1.msra.mxu0 %v1217
        %3092 = vmatprep.subr.mxu0 %v1214
        %3093 = vmatpush1.msra.mxu0 %v1213
        %3094 = vmatprep.subr.mxu0 %v1210
        %3095 = vmatpush1.msra.mxu0 %v1209
        %3096 = vmatprep.subr.mxu0 %v1206
        %3097 = vmatpush1.msra.mxu0 %v1205
        %3098 = vmatprep.subr.mxu0 %v1202
        %3099 = vmatpush1.msra.mxu0 %v1201
        %3100 = vmatprep.subr.mxu0 %v1198
        %3101 = vmatpush1.msra.mxu0 %v1197
        %3102 = vmatprep.subr.mxu0 %v1194
        %3103 = vmatpush1.msra.mxu0 %v1193
        %3104 = vmatprep.subr.mxu0 %v1190
        %3105 = vmatpush1.msra.mxu0 %v1189
        %3106 = vmatprep.subr.mxu0 0.0
        %3107 = vmatpush2.msra.mxu0 0.0
        %3108 = vmatprep.subr.mxu0 0.0
        %3109 = vmatpush2.msra.mxu0 0.0
        %3110 = vmatprep.subr.mxu0 0.0
        %3111 = vmatpush2.msra.mxu0 0.0
        %3112 = vmatprep.subr.mxu0 0.0
        %3113 = vmatpush2.msra.mxu0 0.0
        %3114 = vmatprep.subr.mxu0 0.0
        %3115 = vmatpush2.msra.mxu0 0.0
        %3116 = vmatprep.subr.mxu0 0.0
        %3117 = vmatpush2.msra.mxu0 0.0
        %3118 = vmatprep.subr.mxu0 0.0
        %3119 = vmatpush2.msra.mxu0 0.0
        %3120 = vmatprep.subr.mxu0 0.0
        %3121 = vmatpush2.msra.mxu0 0.0
        %3122 = vmatprep.subr.mxu0 0.0
        %3123 = vmatpush2.msra.mxu0 0.0
        %3124 = vmatprep.subr.mxu0 0.0
        %3125 = vmatpush2.msra.mxu0 0.0
        %3126 = vmatprep.subr.mxu0 0.0
        %3127 = vmatpush2.msra.mxu0 0.0
        %3128 = vmatprep.subr.mxu0 0.0
        %3129 = vmatpush2.msra.mxu0 0.0
        %3130 = vmatprep.subr.mxu0 0.0
        %3131 = vmatpush2.msra.mxu0 0.0
        %3132 = vmatprep.subr.mxu0 0.0
        %3133 = vmatpush2.msra.mxu0 0.0
        %3134 = vmatprep.subr.mxu0 0.0
        %3135 = vmatpush2.msra.mxu0 0.0
        %3136 = vmatprep.subr.mxu0 0.0
        %3137 = vmatpush2.msra.mxu0 0.0
        %3138 = vmatprep.mubr.f32.mxu0 0.0
        %3139 = vmatmul.mubr.f32.gmra.mxu0 %v2984
        %v3140 = vpop.f32.mrf.mxu0
        %v3141 = vadd.f32 0.0, %v3140
        %v3142 = vpop.f32.mrf.mxu0
        %v3143 = vadd.f32 0.0, %v3142
        %3144 = vdwg.mxu0
        %v3145 = vadd.f32 %v1995, %v3070
        %v3146 = vadd.f32 %v1996, %v3072
        %v3147 = vadd.f32 %v1997, %v3141
        %v3148 = vadd.f32 %v1998, %v3143
        %3149 = vmatprep.subr.mxu0 %v1458
        %3150 = vmatpush1.msra.mxu0 %v1457
        %3151 = vmatprep.subr.mxu0 %v1454
        %3152 = vmatpush1.msra.mxu0 %v1453
        %3153 = vmatprep.subr.mxu0 %v1450
        %3154 = vmatpush1.msra.mxu0 %v1449
        %3155 = vmatprep.subr.mxu0 %v1446
        %3156 = vmatpush1.msra.mxu0 %v1445
        %3157 = vmatprep.subr.mxu0 %v1442
        %3158 = vmatpush1.msra.mxu0 %v1441
        %3159 = vmatprep.subr.mxu0 %v1438
        %3160 = vmatpush1.msra.mxu0 %v1437
        %3161 = vmatprep.subr.mxu0 %v1434
        %3162 = vmatpush1.msra.mxu0 %v1433
        %3163 = vmatprep.subr.mxu0 %v1430
        %3164 = vmatpush1.msra.mxu0 %v1429
        %3165 = vmatprep.subr.mxu0 %v1426
        %3166 = vmatpush1.msra.mxu0 %v1425
        %3167 = vmatprep.subr.mxu0 %v1422
        %3168 = vmatpush1.msra.mxu0 %v1421
        %3169 = vmatprep.subr.mxu0 %v1418
        %3170 = vmatpush1.msra.mxu0 %v1417
        %3171 = vmatprep.subr.mxu0 %v1414
        %3172 = vmatpush1.msra.mxu0 %v1413
        %3173 = vmatprep.subr.mxu0 %v1410
        %3174 = vmatpush1.msra.mxu0 %v1409
        %3175 = vmatprep.subr.mxu0 %v1406
        %3176 = vmatpush1.msra.mxu0 %v1405
        %3177 = vmatprep.subr.mxu0 %v1402
        %3178 = vmatpush1.msra.mxu0 %v1401
        %3179 = vmatprep.subr.mxu0 %v1398
        %3180 = vmatpush1.msra.mxu0 %v1397
        %3181 = vmatprep.subr.mxu0 0.0
        %3182 = vmatpush2.msra.mxu0 0.0
        %3183 = vmatprep.subr.mxu0 0.0
        %3184 = vmatpush2.msra.mxu0 0.0
        %3185 = vmatprep.subr.mxu0 0.0
        %3186 = vmatpush2.msra.mxu0 0.0
        %3187 = vmatprep.subr.mxu0 0.0
        %3188 = vmatpush2.msra.mxu0 0.0
        %3189 = vmatprep.subr.mxu0 0.0
        %3190 = vmatpush2.msra.mxu0 0.0
        %3191 = vmatprep.subr.mxu0 0.0
        %3192 = vmatpush2.msra.mxu0 0.0
        %3193 = vmatprep.subr.mxu0 0.0
        %3194 = vmatpush2.msra.mxu0 0.0
        %3195 = vmatprep.subr.mxu0 0.0
        %3196 = vmatpush2.msra.mxu0 0.0
        %3197 = vmatprep.subr.mxu0 0.0
        %3198 = vmatpush2.msra.mxu0 0.0
        %3199 = vmatprep.subr.mxu0 0.0
        %3200 = vmatpush2.msra.mxu0 0.0
        %3201 = vmatprep.subr.mxu0 0.0
        %3202 = vmatpush2.msra.mxu0 0.0
        %3203 = vmatprep.subr.mxu0 0.0
        %3204 = vmatpush2.msra.mxu0 0.0
        %3205 = vmatprep.subr.mxu0 0.0
        %3206 = vmatpush2.msra.mxu0 0.0
        %3207 = vmatprep.subr.mxu0 0.0
        %3208 = vmatpush2.msra.mxu0 0.0
        %3209 = vmatprep.subr.mxu0 0.0
        %3210 = vmatpush2.msra.mxu0 0.0
        %3211 = vmatprep.subr.mxu0 0.0
        %3212 = vmatpush2.msra.mxu0 0.0
        %3213 = vmatprep.mubr.f32.mxu0 0.0
        %3214 = vmatmul.mubr.f32.gmra.mxu0 %v3002
        %v3215 = vpop.f32.mrf.mxu0
        %v3216 = vadd.f32 0.0, %v3215
        %v3217 = vpop.f32.mrf.mxu0
        %v3218 = vadd.f32 0.0, %v3217
        %3219 = vdwg.mxu0
        %3220 = vmatprep.subr.mxu0 %v1460
        %3221 = vmatpush1.msra.mxu0 %v1459
        %3222 = vmatprep.subr.mxu0 %v1456
        %3223 = vmatpush1.msra.mxu0 %v1455
        %3224 = vmatprep.subr.mxu0 %v1452
        %3225 = vmatpush1.msra.mxu0 %v1451
        %3226 = vmatprep.subr.mxu0 %v1448
        %3227 = vmatpush1.msra.mxu0 %v1447
        %3228 = vmatprep.subr.mxu0 %v1444
        %3229 = vmatpush1.msra.mxu0 %v1443
        %3230 = vmatprep.subr.mxu0 %v1440
        %3231 = vmatpush1.msra.mxu0 %v1439
        %3232 = vmatprep.subr.mxu0 %v1436
        %3233 = vmatpush1.msra.mxu0 %v1435
        %3234 = vmatprep.subr.mxu0 %v1432
        %3235 = vmatpush1.msra.mxu0 %v1431
        %3236 = vmatprep.subr.mxu0 %v1428
        %3237 = vmatpush1.msra.mxu0 %v1427
        %3238 = vmatprep.subr.mxu0 %v1424
        %3239 = vmatpush1.msra.mxu0 %v1423
        %3240 = vmatprep.subr.mxu0 %v1420
        %3241 = vmatpush1.msra.mxu0 %v1419
        %3242 = vmatprep.subr.mxu0 %v1416
        %3243 = vmatpush1.msra.mxu0 %v1415
        %3244 = vmatprep.subr.mxu0 %v1412
        %3245 = vmatpush1.msra.mxu0 %v1411
        %3246 = vmatprep.subr.mxu0 %v1408
        %3247 = vmatpush1.msra.mxu0 %v1407
        %3248 = vmatprep.subr.mxu0 %v1404
        %3249 = vmatpush1.msra.mxu0 %v1403
        %3250 = vmatprep.subr.mxu0 %v1400
        %3251 = vmatpush1.msra.mxu0 %v1399
        %3252 = vmatprep.subr.mxu0 0.0
        %3253 = vmatpush2.msra.mxu0 0.0
        %3254 = vmatprep.subr.mxu0 0.0
        %3255 = vmatpush2.msra.mxu0 0.0
        %3256 = vmatprep.subr.mxu0 0.0
        %3257 = vmatpush2.msra.mxu0 0.0
        %3258 = vmatprep.subr.mxu0 0.0
        %3259 = vmatpush2.msra.mxu0 0.0
        %3260 = vmatprep.subr.mxu0 0.0
        %3261 = vmatpush2.msra.mxu0 0.0
        %3262 = vmatprep.subr.mxu0 0.0
        %3263 = vmatpush2.msra.mxu0 0.0
        %3264 = vmatprep.subr.mxu0 0.0
        %3265 = vmatpush2.msra.mxu0 0.0
        %3266 = vmatprep.subr.mxu0 0.0
        %3267 = vmatpush2.msra.mxu0 0.0
        %3268 = vmatprep.subr.mxu0 0.0
        %3269 = vmatpush2.msra.mxu0 0.0
        %3270 = vmatprep.subr.mxu0 0.0
        %3271 = vmatpush2.msra.mxu0 0.0
        %3272 = vmatprep.subr.mxu0 0.0
        %3273 = vmatpush2.msra.mxu0 0.0
        %3274 = vmatprep.subr.mxu0 0.0
        %3275 = vmatpush2.msra.mxu0 0.0
        %3276 = vmatprep.subr.mxu0 0.0
        %3277 = vmatpush2.msra.mxu0 0.0
        %3278 = vmatprep.subr.mxu0 0.0
        %3279 = vmatpush2.msra.mxu0 0.0
        %3280 = vmatprep.subr.mxu0 0.0
        %3281 = vmatpush2.msra.mxu0 0.0
        %3282 = vmatprep.subr.mxu0 0.0
        %3283 = vmatpush2.msra.mxu0 0.0
        %3284 = vmatprep.mubr.f32.mxu0 0.0
        %3285 = vmatmul.mubr.f32.gmra.mxu0 %v3002
        %v3286 = vpop.f32.mrf.mxu0
        %v3287 = vadd.f32 0.0, %v3286
        %v3288 = vpop.f32.mrf.mxu0
        %v3289 = vadd.f32 0.0, %v3288
        %3290 = vdwg.mxu0
        %v3291 = vadd.f32 %v1991, %v3216
        %v3292 = vadd.f32 %v1992, %v3218
        %v3293 = vadd.f32 %v1993, %v3287
        %v3294 = vadd.f32 %v1994, %v3289
        %v3295 = vmul.f32 %v3145, 0.5
        %v3296 = vtanh.pop %v3295
        %v3297 = vadd.f32 %v3296, 1.0
        %v3298 = vmul.f32 %v3297, 0.5
        %v3299 = vmul.f32 %v3146, 0.5
        %v3300 = vtanh.pop %v3299
        %v3301 = vadd.f32 %v3300, 1.0
        %v3302 = vmul.f32 %v3301, 0.5
        %v3303 = vtanh.pop %v3147
        %v3304 = vmul.f32 %v3148, 0.5
        %v3305 = vtanh.pop %v3304
        %v3306 = vadd.f32 %v3305, 1.0
        %v3307 = vmul.f32 %v3306, 0.5
        %v3308 = vmul.f32 %v3302, %v2982
        %v3309 = vmul.f32 %v3298, %v3303
        %v3310 = vadd.f32 %v3308, %v3309
        %v3311 = vtanh.pop %v3310
        %v3312 = vmul.f32 %v3307, %v3311
        %v3313 = vmul.f32 %v3291, 0.5
        %v3314 = vtanh.pop %v3313
        %v3315 = vadd.f32 %v3314, 1.0
        %v3316 = vmul.f32 %v3315, 0.5
        %v3317 = vmul.f32 %v3292, 0.5
        %v3318 = vtanh.pop %v3317
        %v3319 = vadd.f32 %v3318, 1.0
        %v3320 = vmul.f32 %v3319, 0.5
        %v3321 = vtanh.pop %v3293
        %v3322 = vmul.f32 %v3294, 0.5
        %v3323 = vtanh.pop %v3322
        %v3324 = vadd.f32 %v3323, 1.0
        %v3325 = vmul.f32 %v3324, 0.5
        %v3326 = vmul.f32 %v3320, %v3000
        %v3327 = vmul.f32 %v3316, %v3321
        %v3328 = vadd.f32 %v3326, %v3327
        %v3329 = vtanh.pop %v3328
        %v3330 = vmul.f32 %v3325, %v3329
        %3331 = vmatprep.subr.mxu0 %v1248
        %3332 = vmatpush1.msra.mxu0 %v1247
        %3333 = vmatprep.subr.mxu0 %v1244
        %3334 = vmatpush1.msra.mxu0 %v1243
        %3335 = vmatprep.subr.mxu0 %v1240
        %3336 = vmatpush1.msra.mxu0 %v1239
        %3337 = vmatprep.subr.mxu0 %v1236
        %3338 = vmatpush1.msra.mxu0 %v1235
        %3339 = vmatprep.subr.mxu0 %v1232
        %3340 = vmatpush1.msra.mxu0 %v1231
        %3341 = vmatprep.subr.mxu0 %v1228
        %3342 = vmatpush1.msra.mxu0 %v1227
        %3343 = vmatprep.subr.mxu0 %v1224
        %3344 = vmatpush1.msra.mxu0 %v1223
        %3345 = vmatprep.subr.mxu0 %v1220
        %3346 = vmatpush1.msra.mxu0 %v1219
        %3347 = vmatprep.subr.mxu0 %v1216
        %3348 = vmatpush1.msra.mxu0 %v1215
        %3349 = vmatprep.subr.mxu0 %v1212
        %3350 = vmatpush1.msra.mxu0 %v1211
        %3351 = vmatprep.subr.mxu0 %v1208
        %3352 = vmatpush1.msra.mxu0 %v1207
        %3353 = vmatprep.subr.mxu0 %v1204
        %3354 = vmatpush1.msra.mxu0 %v1203
        %3355 = vmatprep.subr.mxu0 %v1200
        %3356 = vmatpush1.msra.mxu0 %v1199
        %3357 = vmatprep.subr.mxu0 %v1196
        %3358 = vmatpush1.msra.mxu0 %v1195
        %3359 = vmatprep.subr.mxu0 %v1192
        %3360 = vmatpush1.msra.mxu0 %v1191
        %3361 = vmatprep.subr.mxu0 %v1188
        %3362 = vmatpush1.msra.mxu0 %v1187
        %3363 = vmatprep.subr.mxu0 0.0
        %3364 = vmatpush2.msra.mxu0 0.0
        %3365 = vmatprep.subr.mxu0 0.0
        %3366 = vmatpush2.msra.mxu0 0.0
        %3367 = vmatprep.subr.mxu0 0.0
        %3368 = vmatpush2.msra.mxu0 0.0
        %3369 = vmatprep.subr.mxu0 0.0
        %3370 = vmatpush2.msra.mxu0 0.0
        %3371 = vmatprep.subr.mxu0 0.0
        %3372 = vmatpush2.msra.mxu0 0.0
        %3373 = vmatprep.subr.mxu0 0.0
        %3374 = vmatpush2.msra.mxu0 0.0
        %3375 = vmatprep.subr.mxu0 0.0
        %3376 = vmatpush2.msra.mxu0 0.0
        %3377 = vmatprep.subr.mxu0 0.0
        %3378 = vmatpush2.msra.mxu0 0.0
        %3379 = vmatprep.subr.mxu0 0.0
        %3380 = vmatpush2.msra.mxu0 0.0
        %3381 = vmatprep.subr.mxu0 0.0
        %3382 = vmatpush2.msra.mxu0 0.0
        %3383 = vmatprep.subr.mxu0 0.0
        %3384 = vmatpush2.msra.mxu0 0.0
        %3385 = vmatprep.subr.mxu0 0.0
        %3386 = vmatpush2.msra.mxu0 0.0
        %3387 = vmatprep.subr.mxu0 0.0
        %3388 = vmatpush2.msra.mxu0 0.0
        %3389 = vmatprep.subr.mxu0 0.0
        %3390 = vmatpush2.msra.mxu0 0.0
        %3391 = vmatprep.subr.mxu0 0.0
        %3392 = vmatpush2.msra.mxu0 0.0
        %3393 = vmatprep.subr.mxu0 0.0
        %3394 = vmatpush2.msra.mxu0 0.0
        %3395 = vmatprep.mubr.f32.mxu0 0.0
        %3396 = vmatmul.mubr.f32.gmra.mxu0 %v3312
        %v3397 = vpop.f32.mrf.mxu0
        %v3398 = vadd.f32 0.0, %v3397
        %v3399 = vpop.f32.mrf.mxu0
        %v3400 = vadd.f32 0.0, %v3399
        %3401 = vdwg.mxu0
        %3402 = vmatprep.subr.mxu0 %v1250
        %3403 = vmatpush1.msra.mxu0 %v1249
        %3404 = vmatprep.subr.mxu0 %v1246
        %3405 = vmatpush1.msra.mxu0 %v1245
        %3406 = vmatprep.subr.mxu0 %v1242
        %3407 = vmatpush1.msra.mxu0 %v1241
        %3408 = vmatprep.subr.mxu0 %v1238
        %3409 = vmatpush1.msra.mxu0 %v1237
        %3410 = vmatprep.subr.mxu0 %v1234
        %3411 = vmatpush1.msra.mxu0 %v1233
        %3412 = vmatprep.subr.mxu0 %v1230
        %3413 = vmatpush1.msra.mxu0 %v1229
        %3414 = vmatprep.subr.mxu0 %v1226
        %3415 = vmatpush1.msra.mxu0 %v1225
        %3416 = vmatprep.subr.mxu0 %v1222
        %3417 = vmatpush1.msra.mxu0 %v1221
        %3418 = vmatprep.subr.mxu0 %v1218
        %3419 = vmatpush1.msra.mxu0 %v1217
        %3420 = vmatprep.subr.mxu0 %v1214
        %3421 = vmatpush1.msra.mxu0 %v1213
        %3422 = vmatprep.subr.mxu0 %v1210
        %3423 = vmatpush1.msra.mxu0 %v1209
        %3424 = vmatprep.subr.mxu0 %v1206
        %3425 = vmatpush1.msra.mxu0 %v1205
        %3426 = vmatprep.subr.mxu0 %v1202
        %3427 = vmatpush1.msra.mxu0 %v1201
        %3428 = vmatprep.subr.mxu0 %v1198
        %3429 = vmatpush1.msra.mxu0 %v1197
        %3430 = vmatprep.subr.mxu0 %v1194
        %3431 = vmatpush1.msra.mxu0 %v1193
        %3432 = vmatprep.subr.mxu0 %v1190
        %3433 = vmatpush1.msra.mxu0 %v1189
        %3434 = vmatprep.subr.mxu0 0.0
        %3435 = vmatpush2.msra.mxu0 0.0
        %3436 = vmatprep.subr.mxu0 0.0
        %3437 = vmatpush2.msra.mxu0 0.0
        %3438 = vmatprep.subr.mxu0 0.0
        %3439 = vmatpush2.msra.mxu0 0.0
        %3440 = vmatprep.subr.mxu0 0.0
        %3441 = vmatpush2.msra.mxu0 0.0
        %3442 = vmatprep.subr.mxu0 0.0
        %3443 = vmatpush2.msra.mxu0 0.0
        %3444 = vmatprep.subr.mxu0 0.0
        %3445 = vmatpush2.msra.mxu0 0.0
        %3446 = vmatprep.subr.mxu0 0.0
        %3447 = vmatpush2.msra.mxu0 0.0
        %3448 = vmatprep.subr.mxu0 0.0
        %3449 = vmatpush2.msra.mxu0 0.0
        %3450 = vmatprep.subr.mxu0 0.0
        %3451 = vmatpush2.msra.mxu0 0.0
        %3452 = vmatprep.subr.mxu0 0.0
        %3453 = vmatpush2.msra.mxu0 0.0
        %3454 = vmatprep.subr.mxu0 0.0
        %3455 = vmatpush2.msra.mxu0 0.0
        %3456 = vmatprep.subr.mxu0 0.0
        %3457 = vmatpush2.msra.mxu0 0.0
        %3458 = vmatprep.subr.mxu0 0.0
        %3459 = vmatpush2.msra.mxu0 0.0
        %3460 = vmatprep.subr.mxu0 0.0
        %3461 = vmatpush2.msra.mxu0 0.0
        %3462 = vmatprep.subr.mxu0 0.0
        %3463 = vmatpush2.msra.mxu0 0.0
        %3464 = vmatprep.subr.mxu0 0.0
        %3465 = vmatpush2.msra.mxu0 0.0
        %3466 = vmatprep.mubr.f32.mxu0 0.0
        %3467 = vmatmul.mubr.f32.gmra.mxu0 %v3312
        %v3468 = vpop.f32.mrf.mxu0
        %v3469 = vadd.f32 0.0, %v3468
        %v3470 = vpop.f32.mrf.mxu0
        %v3471 = vadd.f32 0.0, %v3470
        %3472 = vdwg.mxu0
        %v3473 = vadd.f32 %v1651, %v3398
        %v3474 = vadd.f32 %v1652, %v3400
        %v3475 = vadd.f32 %v1653, %v3469
        %v3476 = vadd.f32 %v1654, %v3471
        %3477 = vmatprep.subr.mxu0 %v1458
        %3478 = vmatpush1.msra.mxu0 %v1457
        %3479 = vmatprep.subr.mxu0 %v1454
        %3480 = vmatpush1.msra.mxu0 %v1453
        %3481 = vmatprep.subr.mxu0 %v1450
        %3482 = vmatpush1.msra.mxu0 %v1449
        %3483 = vmatprep.subr.mxu0 %v1446
        %3484 = vmatpush1.msra.mxu0 %v1445
        %3485 = vmatprep.subr.mxu0 %v1442
        %3486 = vmatpush1.msra.mxu0 %v1441
        %3487 = vmatprep.subr.mxu0 %v1438
        %3488 = vmatpush1.msra.mxu0 %v1437
        %3489 = vmatprep.subr.mxu0 %v1434
        %3490 = vmatpush1.msra.mxu0 %v1433
        %3491 = vmatprep.subr.mxu0 %v1430
        %3492 = vmatpush1.msra.mxu0 %v1429
        %3493 = vmatprep.subr.mxu0 %v1426
        %3494 = vmatpush1.msra.mxu0 %v1425
        %3495 = vmatprep.subr.mxu0 %v1422
        %3496 = vmatpush1.msra.mxu0 %v1421
        %3497 = vmatprep.subr.mxu0 %v1418
        %3498 = vmatpush1.msra.mxu0 %v1417
        %3499 = vmatprep.subr.mxu0 %v1414
        %3500 = vmatpush1.msra.mxu0 %v1413
        %3501 = vmatprep.subr.mxu0 %v1410
        %3502 = vmatpush1.msra.mxu0 %v1409
        %3503 = vmatprep.subr.mxu0 %v1406
        %3504 = vmatpush1.msra.mxu0 %v1405
        %3505 = vmatprep.subr.mxu0 %v1402
        %3506 = vmatpush1.msra.mxu0 %v1401
        %3507 = vmatprep.subr.mxu0 %v1398
        %3508 = vmatpush1.msra.mxu0 %v1397
        %3509 = vmatprep.subr.mxu0 0.0
        %3510 = vmatpush2.msra.mxu0 0.0
        %3511 = vmatprep.subr.mxu0 0.0
        %3512 = vmatpush2.msra.mxu0 0.0
        %3513 = vmatprep.subr.mxu0 0.0
        %3514 = vmatpush2.msra.mxu0 0.0
        %3515 = vmatprep.subr.mxu0 0.0
        %3516 = vmatpush2.msra.mxu0 0.0
        %3517 = vmatprep.subr.mxu0 0.0
        %3518 = vmatpush2.msra.mxu0 0.0
        %3519 = vmatprep.subr.mxu0 0.0
        %3520 = vmatpush2.msra.mxu0 0.0
        %3521 = vmatprep.subr.mxu0 0.0
        %3522 = vmatpush2.msra.mxu0 0.0
        %3523 = vmatprep.subr.mxu0 0.0
        %3524 = vmatpush2.msra.mxu0 0.0
        %3525 = vmatprep.subr.mxu0 0.0
        %3526 = vmatpush2.msra.mxu0 0.0
        %3527 = vmatprep.subr.mxu0 0.0
        %3528 = vmatpush2.msra.mxu0 0.0
        %3529 = vmatprep.subr.mxu0 0.0
        %3530 = vmatpush2.msra.mxu0 0.0
        %3531 = vmatprep.subr.mxu0 0.0
        %3532 = vmatpush2.msra.mxu0 0.0
        %3533 = vmatprep.subr.mxu0 0.0
        %3534 = vmatpush2.msra.mxu0 0.0
        %3535 = vmatprep.subr.mxu0 0.0
        %3536 = vmatpush2.msra.mxu0 0.0
        %3537 = vmatprep.subr.mxu0 0.0
        %3538 = vmatpush2.msra.mxu0 0.0
        %3539 = vmatprep.subr.mxu0 0.0
        %3540 = vmatpush2.msra.mxu0 0.0
        %3541 = vmatprep.mubr.f32.mxu0 0.0
        %3542 = vmatmul.mubr.f32.gmra.mxu0 %v3330
        %v3543 = vpop.f32.mrf.mxu0
        %v3544 = vadd.f32 0.0, %v3543
        %v3545 = vpop.f32.mrf.mxu0
        %v3546 = vadd.f32 0.0, %v3545
        %3547 = vdwg.mxu0
        %3548 = vmatprep.subr.mxu0 %v1460
        %3549 = vmatpush1.msra.mxu0 %v1459
        %3550 = vmatprep.subr.mxu0 %v1456
        %3551 = vmatpush1.msra.mxu0 %v1455
        %3552 = vmatprep.subr.mxu0 %v1452
        %3553 = vmatpush1.msra.mxu0 %v1451
        %3554 = vmatprep.subr.mxu0 %v1448
        %3555 = vmatpush1.msra.mxu0 %v1447
        %3556 = vmatprep.subr.mxu0 %v1444
        %3557 = vmatpush1.msra.mxu0 %v1443
        %3558 = vmatprep.subr.mxu0 %v1440
        %3559 = vmatpush1.msra.mxu0 %v1439
        %3560 = vmatprep.subr.mxu0 %v1436
        %3561 = vmatpush1.msra.mxu0 %v1435
        %3562 = vmatprep.subr.mxu0 %v1432
        %3563 = vmatpush1.msra.mxu0 %v1431
        %3564 = vmatprep.subr.mxu0 %v1428
        %3565 = vmatpush1.msra.mxu0 %v1427
        %3566 = vmatprep.subr.mxu0 %v1424
        %3567 = vmatpush1.msra.mxu0 %v1423
        %3568 = vmatprep.subr.mxu0 %v1420
        %3569 = vmatpush1.msra.mxu0 %v1419
        %3570 = vmatprep.subr.mxu0 %v1416
        %3571 = vmatpush1.msra.mxu0 %v1415
        %3572 = vmatprep.subr.mxu0 %v1412
        %3573 = vmatpush1.msra.mxu0 %v1411
        %3574 = vmatprep.subr.mxu0 %v1408
        %3575 = vmatpush1.msra.mxu0 %v1407
        %3576 = vmatprep.subr.mxu0 %v1404
        %3577 = vmatpush1.msra.mxu0 %v1403
        %3578 = vmatprep.subr.mxu0 %v1400
        %3579 = vmatpush1.msra.mxu0 %v1399
        %3580 = vmatprep.subr.mxu0 0.0
        %3581 = vmatpush2.msra.mxu0 0.0
        %3582 = vmatprep.subr.mxu0 0.0
        %3583 = vmatpush2.msra.mxu0 0.0
        %3584 = vmatprep.subr.mxu0 0.0
        %3585 = vmatpush2.msra.mxu0 0.0
        %3586 = vmatprep.subr.mxu0 0.0
        %3587 = vmatpush2.msra.mxu0 0.0
        %3588 = vmatprep.subr.mxu0 0.0
        %3589 = vmatpush2.msra.mxu0 0.0
        %3590 = vmatprep.subr.mxu0 0.0
        %3591 = vmatpush2.msra.mxu0 0.0
        %3592 = vmatprep.subr.mxu0 0.0
        %3593 = vmatpush2.msra.mxu0 0.0
        %3594 = vmatprep.subr.mxu0 0.0
        %3595 = vmatpush2.msra.mxu0 0.0
        %3596 = vmatprep.subr.mxu0 0.0
        %3597 = vmatpush2.msra.mxu0 0.0
        %3598 = vmatprep.subr.mxu0 0.0
        %3599 = vmatpush2.msra.mxu0 0.0
        %3600 = vmatprep.subr.mxu0 0.0
        %3601 = vmatpush2.msra.mxu0 0.0
        %3602 = vmatprep.subr.mxu0 0.0
        %3603 = vmatpush2.msra.mxu0 0.0
        %3604 = vmatprep.subr.mxu0 0.0
        %3605 = vmatpush2.msra.mxu0 0.0
        %3606 = vmatprep.subr.mxu0 0.0
        %3607 = vmatpush2.msra.mxu0 0.0
        %3608 = vmatprep.subr.mxu0 0.0
        %3609 = vmatpush2.msra.mxu0 0.0
        %3610 = vmatprep.subr.mxu0 0.0
        %3611 = vmatpush2.msra.mxu0 0.0
        %3612 = vmatprep.mubr.f32.mxu0 0.0
        %3613 = vmatmul.mubr.f32.gmra.mxu0 %v3330
        %v3614 = vpop.f32.mrf.mxu0
        %v3615 = vadd.f32 0.0, %v3614
        %v3616 = vpop.f32.mrf.mxu0
        %v3617 = vadd.f32 0.0, %v3616
        %3618 = vdwg.mxu0
        %v3619 = vadd.f32 %v1647, %v3544
        %v3620 = vadd.f32 %v1648, %v3546
        %v3621 = vadd.f32 %v1649, %v3615
        %v3622 = vadd.f32 %v1650, %v3617
        %v3623 = vmul.f32 %v3473, 0.5
        %v3624 = vtanh.pop %v3623
        %v3625 = vadd.f32 %v3624, 1.0
        %v3626 = vmul.f32 %v3625, 0.5
        %v3627 = vmul.f32 %v3474, 0.5
        %v3628 = vtanh.pop %v3627
        %v3629 = vadd.f32 %v3628, 1.0
        %v3630 = vmul.f32 %v3629, 0.5
        %v3631 = vtanh.pop %v3475
        %v3632 = vmul.f32 %v3476, 0.5
        %v3633 = vtanh.pop %v3632
        %v3634 = vadd.f32 %v3633, 1.0
        %v3635 = vmul.f32 %v3634, 0.5
        %v3636 = vmul.f32 %v3630, %v3310
        %v3637 = vmul.f32 %v3626, %v3631
        %v3638 = vadd.f32 %v3636, %v3637
        %v3639 = vtanh.pop %v3638
        %v3640 = vmul.f32 %v3635, %v3639
        %v3641 = vmul.f32 %v3619, 0.5
        %v3642 = vtanh.pop %v3641
        %v3643 = vadd.f32 %v3642, 1.0
        %v3644 = vmul.f32 %v3643, 0.5
        %v3645 = vmul.f32 %v3620, 0.5
        %v3646 = vtanh.pop %v3645
        %v3647 = vadd.f32 %v3646, 1.0
        %v3648 = vmul.f32 %v3647, 0.5
        %v3649 = vtanh.pop %v3621
        %v3650 = vmul.f32 %v3622, 0.5
        %v3651 = vtanh.pop %v3650
        %v3652 = vadd.f32 %v3651, 1.0
        %v3653 = vmul.f32 %v3652, 0.5
        %v3654 = vmul.f32 %v3648, %v3328
        %v3655 = vmul.f32 %v3644, %v3649
        %v3656 = vadd.f32 %v3654, %v3655
        %v3657 = vtanh.pop %v3656
        %v3658 = vmul.f32 %v3653, %v3657
        %3659 = vmatprep.subr.mxu0 %v1248
        %3660 = vmatpush1.msra.mxu0 %v1247
        %3661 = vmatprep.subr.mxu0 %v1244
        %3662 = vmatpush1.msra.mxu0 %v1243
        %3663 = vmatprep.subr.mxu0 %v1240
        %3664 = vmatpush1.msra.mxu0 %v1239
        %3665 = vmatprep.subr.mxu0 %v1236
        %3666 = vmatpush1.msra.mxu0 %v1235
        %3667 = vmatprep.subr.mxu0 %v1232
        %3668 = vmatpush1.msra.mxu0 %v1231
        %3669 = vmatprep.subr.mxu0 %v1228
        %3670 = vmatpush1.msra.mxu0 %v1227
        %3671 = vmatprep.subr.mxu0 %v1224
        %3672 = vmatpush1.msra.mxu0 %v1223
        %3673 = vmatprep.subr.mxu0 %v1220
        %3674 = vmatpush1.msra.mxu0 %v1219
        %3675 = vmatprep.subr.mxu0 %v1216
        %3676 = vmatpush1.msra.mxu0 %v1215
        %3677 = vmatprep.subr.mxu0 %v1212
        %3678 = vmatpush1.msra.mxu0 %v1211
        %3679 = vmatprep.subr.mxu0 %v1208
        %3680 = vmatpush1.msra.mxu0 %v1207
        %3681 = vmatprep.subr.mxu0 %v1204
        %3682 = vmatpush1.msra.mxu0 %v1203
        %3683 = vmatprep.subr.mxu0 %v1200
        %3684 = vmatpush1.msra.mxu0 %v1199
        %3685 = vmatprep.subr.mxu0 %v1196
        %3686 = vmatpush1.msra.mxu0 %v1195
        %3687 = vmatprep.subr.mxu0 %v1192
        %3688 = vmatpush1.msra.mxu0 %v1191
        %3689 = vmatprep.subr.mxu0 %v1188
        %3690 = vmatpush1.msra.mxu0 %v1187
        %3691 = vmatprep.subr.mxu0 0.0
        %3692 = vmatpush2.msra.mxu0 0.0
        %3693 = vmatprep.subr.mxu0 0.0
        %3694 = vmatpush2.msra.mxu0 0.0
        %3695 = vmatprep.subr.mxu0 0.0
        %3696 = vmatpush2.msra.mxu0 0.0
        %3697 = vmatprep.subr.mxu0 0.0
        %3698 = vmatpush2.msra.mxu0 0.0
        %3699 = vmatprep.subr.mxu0 0.0
        %3700 = vmatpush2.msra.mxu0 0.0
        %3701 = vmatprep.subr.mxu0 0.0
        %3702 = vmatpush2.msra.mxu0 0.0
        %3703 = vmatprep.subr.mxu0 0.0
        %3704 = vmatpush2.msra.mxu0 0.0
        %3705 = vmatprep.subr.mxu0 0.0
        %3706 = vmatpush2.msra.mxu0 0.0
        %3707 = vmatprep.subr.mxu0 0.0
        %3708 = vmatpush2.msra.mxu0 0.0
        %3709 = vmatprep.subr.mxu0 0.0
        %3710 = vmatpush2.msra.mxu0 0.0
        %3711 = vmatprep.subr.mxu0 0.0
        %3712 = vmatpush2.msra.mxu0 0.0
        %3713 = vmatprep.subr.mxu0 0.0
        %3714 = vmatpush2.msra.mxu0 0.0
        %3715 = vmatprep.subr.mxu0 0.0
        %3716 = vmatpush2.msra.mxu0 0.0
        %3717 = vmatprep.subr.mxu0 0.0
        %3718 = vmatpush2.msra.mxu0 0.0
        %3719 = vmatprep.subr.mxu0 0.0
        %3720 = vmatpush2.msra.mxu0 0.0
        %3721 = vmatprep.subr.mxu0 0.0
        %3722 = vmatpush2.msra.mxu0 0.0
        %3723 = vmatprep.mubr.f32.mxu0 0.0
        %3724 = vmatmul.mubr.f32.gmra.mxu0 %v3640
        %v3725 = vpop.f32.mrf.mxu0
        %v3726 = vadd.f32 0.0, %v3725
        %v3727 = vpop.f32.mrf.mxu0
        %v3728 = vadd.f32 0.0, %v3727
        %3729 = vdwg.mxu0
        %3730 = vmatprep.subr.mxu0 %v1250
        %3731 = vmatpush1.msra.mxu0 %v1249
        %3732 = vmatprep.subr.mxu0 %v1246
        %3733 = vmatpush1.msra.mxu0 %v1245
        %3734 = vmatprep.subr.mxu0 %v1242
        %3735 = vmatpush1.msra.mxu0 %v1241
        %3736 = vmatprep.subr.mxu0 %v1238
        %3737 = vmatpush1.msra.mxu0 %v1237
        %3738 = vmatprep.subr.mxu0 %v1234
        %3739 = vmatpush1.msra.mxu0 %v1233
        %3740 = vmatprep.subr.mxu0 %v1230
        %3741 = vmatpush1.msra.mxu0 %v1229
        %3742 = vmatprep.subr.mxu0 %v1226
        %3743 = vmatpush1.msra.mxu0 %v1225
        %3744 = vmatprep.subr.mxu0 %v1222
        %3745 = vmatpush1.msra.mxu0 %v1221
        %3746 = vmatprep.subr.mxu0 %v1218
        %3747 = vmatpush1.msra.mxu0 %v1217
        %3748 = vmatprep.subr.mxu0 %v1214
        %3749 = vmatpush1.msra.mxu0 %v1213
        %3750 = vmatprep.subr.mxu0 %v1210
        %3751 = vmatpush1.msra.mxu0 %v1209
        %3752 = vmatprep.subr.mxu0 %v1206
        %3753 = vmatpush1.msra.mxu0 %v1205
        %3754 = vmatprep.subr.mxu0 %v1202
        %3755 = vmatpush1.msra.mxu0 %v1201
        %3756 = vmatprep.subr.mxu0 %v1198
        %3757 = vmatpush1.msra.mxu0 %v1197
        %3758 = vmatprep.subr.mxu0 %v1194
        %3759 = vmatpush1.msra.mxu0 %v1193
        %3760 = vmatprep.subr.mxu0 %v1190
        %3761 = vmatpush1.msra.mxu0 %v1189
        %3762 = vmatprep.subr.mxu0 0.0
        %3763 = vmatpush2.msra.mxu0 0.0
        %3764 = vmatprep.subr.mxu0 0.0
        %3765 = vmatpush2.msra.mxu0 0.0
        %3766 = vmatprep.subr.mxu0 0.0
        %3767 = vmatpush2.msra.mxu0 0.0
        %3768 = vmatprep.subr.mxu0 0.0
        %3769 = vmatpush2.msra.mxu0 0.0
        %3770 = vmatprep.subr.mxu0 0.0
        %3771 = vmatpush2.msra.mxu0 0.0
        %3772 = vmatprep.subr.mxu0 0.0
        %3773 = vmatpush2.msra.mxu0 0.0
        %3774 = vmatprep.subr.mxu0 0.0
        %3775 = vmatpush2.msra.mxu0 0.0
        %3776 = vmatprep.subr.mxu0 0.0
        %3777 = vmatpush2.msra.mxu0 0.0
        %3778 = vmatprep.subr.mxu0 0.0
        %3779 = vmatpush2.msra.mxu0 0.0
        %3780 = vmatprep.subr.mxu0 0.0
        %3781 = vmatpush2.msra.mxu0 0.0
        %3782 = vmatprep.subr.mxu0 0.0
        %3783 = vmatpush2.msra.mxu0 0.0
        %3784 = vmatprep.subr.mxu0 0.0
        %3785 = vmatpush2.msra.mxu0 0.0
        %3786 = vmatprep.subr.mxu0 0.0
        %3787 = vmatpush2.msra.mxu0 0.0
        %3788 = vmatprep.subr.mxu0 0.0
        %3789 = vmatpush2.msra.mxu0 0.0
        %3790 = vmatprep.subr.mxu0 0.0
        %3791 = vmatpush2.msra.mxu0 0.0
        %3792 = vmatprep.subr.mxu0 0.0
        %3793 = vmatpush2.msra.mxu0 0.0
        %3794 = vmatprep.mubr.f32.mxu0 0.0
        %3795 = vmatmul.mubr.f32.gmra.mxu0 %v3640
        %v3796 = vpop.f32.mrf.mxu0
        %v3797 = vadd.f32 0.0, %v3796
        %v3798 = vpop.f32.mrf.mxu0
        %v3799 = vadd.f32 0.0, %v3798
        %3800 = vdwg.mxu0
        %v3801 = vadd.f32 %v1179, %v3726
        %v3802 = vadd.f32 %v1180, %v3728
        %v3803 = vadd.f32 %v1181, %v3797
        %v3804 = vadd.f32 %v1182, %v3799
        %3805 = vmatprep.subr.mxu0 %v1458
        %3806 = vmatpush1.msra.mxu0 %v1457
        %3807 = vmatprep.subr.mxu0 %v1454
        %3808 = vmatpush1.msra.mxu0 %v1453
        %3809 = vmatprep.subr.mxu0 %v1450
        %3810 = vmatpush1.msra.mxu0 %v1449
        %3811 = vmatprep.subr.mxu0 %v1446
        %3812 = vmatpush1.msra.mxu0 %v1445
        %3813 = vmatprep.subr.mxu0 %v1442
        %3814 = vmatpush1.msra.mxu0 %v1441
        %3815 = vmatprep.subr.mxu0 %v1438
        %3816 = vmatpush1.msra.mxu0 %v1437
        %3817 = vmatprep.subr.mxu0 %v1434
        %3818 = vmatpush1.msra.mxu0 %v1433
        %3819 = vmatprep.subr.mxu0 %v1430
        %3820 = vmatpush1.msra.mxu0 %v1429
        %3821 = vmatprep.subr.mxu0 %v1426
        %3822 = vmatpush1.msra.mxu0 %v1425
        %3823 = vmatprep.subr.mxu0 %v1422
        %3824 = vmatpush1.msra.mxu0 %v1421
        %3825 = vmatprep.subr.mxu0 %v1418
        %3826 = vmatpush1.msra.mxu0 %v1417
        %3827 = vmatprep.subr.mxu0 %v1414
        %3828 = vmatpush1.msra.mxu0 %v1413
        %3829 = vmatprep.subr.mxu0 %v1410
        %3830 = vmatpush1.msra.mxu0 %v1409
        %3831 = vmatprep.subr.mxu0 %v1406
        %3832 = vmatpush1.msra.mxu0 %v1405
        %3833 = vmatprep.subr.mxu0 %v1402
        %3834 = vmatpush1.msra.mxu0 %v1401
        %3835 = vmatprep.subr.mxu0 %v1398
        %3836 = vmatpush1.msra.mxu0 %v1397
        %3837 = vmatprep.subr.mxu0 0.0
        %3838 = vmatpush2.msra.mxu0 0.0
        %3839 = vmatprep.subr.mxu0 0.0
        %3840 = vmatpush2.msra.mxu0 0.0
        %3841 = vmatprep.subr.mxu0 0.0
        %3842 = vmatpush2.msra.mxu0 0.0
        %3843 = vmatprep.subr.mxu0 0.0
        %3844 = vmatpush2.msra.mxu0 0.0
        %3845 = vmatprep.subr.mxu0 0.0
        %3846 = vmatpush2.msra.mxu0 0.0
        %3847 = vmatprep.subr.mxu0 0.0
        %3848 = vmatpush2.msra.mxu0 0.0
        %3849 = vmatprep.subr.mxu0 0.0
        %3850 = vmatpush2.msra.mxu0 0.0
        %3851 = vmatprep.subr.mxu0 0.0
        %3852 = vmatpush2.msra.mxu0 0.0
        %3853 = vmatprep.subr.mxu0 0.0
        %3854 = vmatpush2.msra.mxu0 0.0
        %3855 = vmatprep.subr.mxu0 0.0
        %3856 = vmatpush2.msra.mxu0 0.0
        %3857 = vmatprep.subr.mxu0 0.0
        %3858 = vmatpush2.msra.mxu0 0.0
        %3859 = vmatprep.subr.mxu0 0.0
        %3860 = vmatpush2.msra.mxu0 0.0
        %3861 = vmatprep.subr.mxu0 0.0
        %3862 = vmatpush2.msra.mxu0 0.0
        %3863 = vmatprep.subr.mxu0 0.0
        %3864 = vmatpush2.msra.mxu0 0.0
        %3865 = vmatprep.subr.mxu0 0.0
        %3866 = vmatpush2.msra.mxu0 0.0
        %3867 = vmatprep.subr.mxu0 0.0
        %3868 = vmatpush2.msra.mxu0 0.0
        %3869 = vmatprep.mubr.f32.mxu0 0.0
        %3870 = vmatmul.mubr.f32.gmra.mxu0 %v3658
        %v3871 = vpop.f32.mrf.mxu0
        %v3872 = vadd.f32 0.0, %v3871
        %v3873 = vpop.f32.mrf.mxu0
        %v3874 = vadd.f32 0.0, %v3873
        %3875 = vdwg.mxu0
        %3876 = vmatprep.subr.mxu0 %v1460
        %3877 = vmatpush1.msra.mxu0 %v1459
        %3878 = vmatprep.subr.mxu0 %v1456
        %3879 = vmatpush1.msra.mxu0 %v1455
        %3880 = vmatprep.subr.mxu0 %v1452
        %3881 = vmatpush1.msra.mxu0 %v1451
        %3882 = vmatprep.subr.mxu0 %v1448
        %3883 = vmatpush1.msra.mxu0 %v1447
        %3884 = vmatprep.subr.mxu0 %v1444
        %3885 = vmatpush1.msra.mxu0 %v1443
        %3886 = vmatprep.subr.mxu0 %v1440
        %3887 = vmatpush1.msra.mxu0 %v1439
        %3888 = vmatprep.subr.mxu0 %v1436
        %3889 = vmatpush1.msra.mxu0 %v1435
        %3890 = vmatprep.subr.mxu0 %v1432
        %3891 = vmatpush1.msra.mxu0 %v1431
        %3892 = vmatprep.subr.mxu0 %v1428
        %3893 = vmatpush1.msra.mxu0 %v1427
        %3894 = vmatprep.subr.mxu0 %v1424
        %3895 = vmatpush1.msra.mxu0 %v1423
        %3896 = vmatprep.subr.mxu0 %v1420
        %3897 = vmatpush1.msra.mxu0 %v1419
        %3898 = vmatprep.subr.mxu0 %v1416
        %3899 = vmatpush1.msra.mxu0 %v1415
        %3900 = vmatprep.subr.mxu0 %v1412
        %3901 = vmatpush1.msra.mxu0 %v1411
        %3902 = vmatprep.subr.mxu0 %v1408
        %3903 = vmatpush1.msra.mxu0 %v1407
        %3904 = vmatprep.subr.mxu0 %v1404
        %3905 = vmatpush1.msra.mxu0 %v1403
        %3906 = vmatprep.subr.mxu0 %v1400
        %3907 = vmatpush1.msra.mxu0 %v1399
        %3908 = vmatprep.subr.mxu0 0.0
        %3909 = vmatpush2.msra.mxu0 0.0
        %3910 = vmatprep.subr.mxu0 0.0
        %3911 = vmatpush2.msra.mxu0 0.0
        %3912 = vmatprep.subr.mxu0 0.0
        %3913 = vmatpush2.msra.mxu0 0.0
        %3914 = vmatprep.subr.mxu0 0.0
        %3915 = vmatpush2.msra.mxu0 0.0
        %3916 = vmatprep.subr.mxu0 0.0
        %3917 = vmatpush2.msra.mxu0 0.0
        %3918 = vmatprep.subr.mxu0 0.0
        %3919 = vmatpush2.msra.mxu0 0.0
        %3920 = vmatprep.subr.mxu0 0.0
        %3921 = vmatpush2.msra.mxu0 0.0
        %3922 = vmatprep.subr.mxu0 0.0
        %3923 = vmatpush2.msra.mxu0 0.0
        %3924 = vmatprep.subr.mxu0 0.0
        %3925 = vmatpush2.msra.mxu0 0.0
        %3926 = vmatprep.subr.mxu0 0.0
        %3927 = vmatpush2.msra.mxu0 0.0
        %3928 = vmatprep.subr.mxu0 0.0
        %3929 = vmatpush2.msra.mxu0 0.0
        %3930 = vmatprep.subr.mxu0 0.0
        %3931 = vmatpush2.msra.mxu0 0.0
        %3932 = vmatprep.subr.mxu0 0.0
        %3933 = vmatpush2.msra.mxu0 0.0
        %3934 = vmatprep.subr.mxu0 0.0
        %3935 = vmatpush2.msra.mxu0 0.0
        %3936 = vmatprep.subr.mxu0 0.0
        %3937 = vmatpush2.msra.mxu0 0.0
        %3938 = vmatprep.subr.mxu0 0.0
        %3939 = vmatpush2.msra.mxu0 0.0
        %3940 = vmatprep.mubr.f32.mxu0 0.0
        %3941 = vmatmul.mubr.f32.gmra.mxu0 %v3658
        %v3942 = vpop.f32.mrf.mxu0
        %v3943 = vadd.f32 0.0, %v3942
        %v3944 = vpop.f32.mrf.mxu0
        %v3945 = vadd.f32 0.0, %v3944
        %3946 = vdwg.mxu0
        %v3947 = vadd.f32 %v1175, %v3872
        %v3948 = vadd.f32 %v1176, %v3874
        %v3949 = vadd.f32 %v1177, %v3943
        %v3950 = vadd.f32 %v1178, %v3945
        %v3951 = vmul.f32 %v3801, 0.5
        %v3952 = vtanh.pop %v3951
        %v3953 = vadd.f32 %v3952, 1.0
        %v3954 = vmul.f32 %v3953, 0.5
        %v3955 = vmul.f32 %v3802, 0.5
        %v3956 = vtanh.pop %v3955
        %v3957 = vadd.f32 %v3956, 1.0
        %v3958 = vmul.f32 %v3957, 0.5
        %v3959 = vtanh.pop %v3803
        %v3960 = vmul.f32 %v3804, 0.5
        %v3961 = vtanh.pop %v3960
        %v3962 = vadd.f32 %v3961, 1.0
        %v3963 = vmul.f32 %v3962, 0.5
        %v3964 = vmul.f32 %v3958, %v3638
        %v3965 = vmul.f32 %v3954, %v3959
        %v3966 = vadd.f32 %v3964, %v3965
        %v3967 = vtanh.pop %v3966
        %v3968 = vmul.f32 %v3963, %v3967
        %v3969 = vmul.f32 %v3947, 0.5
        %v3970 = vtanh.pop %v3969
        %v3971 = vadd.f32 %v3970, 1.0
        %v3972 = vmul.f32 %v3971, 0.5
        %v3973 = vmul.f32 %v3948, 0.5
        %v3974 = vtanh.pop %v3973
        %v3975 = vadd.f32 %v3974, 1.0
        %v3976 = vmul.f32 %v3975, 0.5
        %v3977 = vtanh.pop %v3949
        %v3978 = vmul.f32 %v3950, 0.5
        %v3979 = vtanh.pop %v3978
        %v3980 = vadd.f32 %v3979, 1.0
        %v3981 = vmul.f32 %v3980, 0.5
        %v3982 = vmul.f32 %v3976, %v3656
        %v3983 = vmul.f32 %v3972, %v3977
        %v3984 = vadd.f32 %v3982, %v3983
        %v3985 = vtanh.pop %v3984
        %v3986 = vmul.f32 %v3981, %v3985
        %v3987 = vld [vmem:[#allocation12] sm:$0xff]
        %v3988 = vld [vmem:[#allocation12 + $0x8] sm:$0xff]
        %v3989 = vld [vmem:[#allocation12 + $0x10] sm:$0xff]
        %v3990 = vld [vmem:[#allocation12 + $0x18] sm:$0xff]
        %v3991 = vld [vmem:[#allocation12 + $0x20] sm:$0xff]
        %v3992 = vld [vmem:[#allocation12 + $0x28] sm:$0xff]
        %v3993 = vld [vmem:[#allocation12 + $0x30] sm:$0xff]
        %v3994 = vld [vmem:[#allocation12 + $0x38] sm:$0xff]
        %v3995 = vld [vmem:[#allocation12 + $0x40] sm:$0xff]
        %v3996 = vld [vmem:[#allocation12 + $0x48] sm:$0xff]
        %v3997 = vld [vmem:[#allocation12 + $0x50] sm:$0xff]
        %v3998 = vld [vmem:[#allocation12 + $0x58] sm:$0xff]
        %v3999 = vld [vmem:[#allocation12 + $0x60] sm:$0xff]
        %v4000 = vld [vmem:[#allocation12 + $0x68] sm:$0xff]
        %v4001 = vld [vmem:[#allocation12 + $0x70] sm:$0xff]
        %v4002 = vld [vmem:[#allocation12 + $0x78] sm:$0xff]
        %v4003 = vld [vmem:[#allocation14] sm:$0xff]
        %v4004 = vld [vmem:[#allocation14 + $0x8] sm:$0xff]
        %v4005 = vld [vmem:[#allocation14 + $0x10] sm:$0xff]
        %v4006 = vld [vmem:[#allocation14 + $0x18] sm:$0xff]
        %v4007 = vld [vmem:[#allocation14 + $0x20] sm:$0xff]
        %v4008 = vld [vmem:[#allocation14 + $0x28] sm:$0xff]
        %v4009 = vld [vmem:[#allocation14 + $0x30] sm:$0xff]
        %v4010 = vld [vmem:[#allocation14 + $0x38] sm:$0xff]
        %v4011 = vld [vmem:[#allocation14 + $0x40] sm:$0xff]
        %v4012 = vld [vmem:[#allocation14 + $0x48] sm:$0xff]
        %v4013 = vld [vmem:[#allocation14 + $0x50] sm:$0xff]
        %v4014 = vld [vmem:[#allocation14 + $0x58] sm:$0xff]
        %v4015 = vld [vmem:[#allocation14 + $0x60] sm:$0xff]
        %v4016 = vld [vmem:[#allocation14 + $0x68] sm:$0xff]
        %v4017 = vld [vmem:[#allocation14 + $0x70] sm:$0xff]
        %v4018 = vld [vmem:[#allocation14 + $0x78] sm:$0xff]
        %4019 = vmatprep.subr.mxu0 0.0
        %4020 = vmatpush1.msra.mxu0 %v4018
        %4021 = vmatprep.subr.mxu0 0.0
        %4022 = vmatpush1.msra.mxu0 %v4017
        %4023 = vmatprep.subr.mxu0 0.0
        %4024 = vmatpush1.msra.mxu0 %v4016
        %4025 = vmatprep.subr.mxu0 0.0
        %4026 = vmatpush1.msra.mxu0 %v4015
        %4027 = vmatprep.subr.mxu0 0.0
        %4028 = vmatpush1.msra.mxu0 %v4014
        %4029 = vmatprep.subr.mxu0 0.0
        %4030 = vmatpush1.msra.mxu0 %v4013
        %4031 = vmatprep.subr.mxu0 0.0
        %4032 = vmatpush1.msra.mxu0 %v4012
        %4033 = vmatprep.subr.mxu0 0.0
        %4034 = vmatpush1.msra.mxu0 %v4011
        %4035 = vmatprep.subr.mxu0 0.0
        %4036 = vmatpush1.msra.mxu0 %v4010
        %4037 = vmatprep.subr.mxu0 0.0
        %4038 = vmatpush1.msra.mxu0 %v4009
        %4039 = vmatprep.subr.mxu0 0.0
        %4040 = vmatpush1.msra.mxu0 %v4008
        %4041 = vmatprep.subr.mxu0 0.0
        %4042 = vmatpush1.msra.mxu0 %v4007
        %4043 = vmatprep.subr.mxu0 0.0
        %4044 = vmatpush1.msra.mxu0 %v4006
        %4045 = vmatprep.subr.mxu0 0.0
        %4046 = vmatpush1.msra.mxu0 %v4005
        %4047 = vmatprep.subr.mxu0 0.0
        %4048 = vmatpush1.msra.mxu0 %v4004
        %4049 = vmatprep.subr.mxu0 0.0
        %4050 = vmatpush1.msra.mxu0 %v4003
        %4051 = vmatprep.subr.mxu0 0.0
        %4052 = vmatpush2.msra.mxu0 0.0
        %4053 = vmatprep.subr.mxu0 0.0
        %4054 = vmatpush2.msra.mxu0 0.0
        %4055 = vmatprep.subr.mxu0 0.0
        %4056 = vmatpush2.msra.mxu0 0.0
        %4057 = vmatprep.subr.mxu0 0.0
        %4058 = vmatpush2.msra.mxu0 0.0
        %4059 = vmatprep.subr.mxu0 0.0
        %4060 = vmatpush2.msra.mxu0 0.0
        %4061 = vmatprep.subr.mxu0 0.0
        %4062 = vmatpush2.msra.mxu0 0.0
        %4063 = vmatprep.subr.mxu0 0.0
        %4064 = vmatpush2.msra.mxu0 0.0
        %4065 = vmatprep.subr.mxu0 0.0
        %4066 = vmatpush2.msra.mxu0 0.0
        %4067 = vmatprep.subr.mxu0 0.0
        %4068 = vmatpush2.msra.mxu0 0.0
        %4069 = vmatprep.subr.mxu0 0.0
        %4070 = vmatpush2.msra.mxu0 0.0
        %4071 = vmatprep.subr.mxu0 0.0
        %4072 = vmatpush2.msra.mxu0 0.0
        %4073 = vmatprep.subr.mxu0 0.0
        %4074 = vmatpush2.msra.mxu0 0.0
        %4075 = vmatprep.subr.mxu0 0.0
        %4076 = vmatpush2.msra.mxu0 0.0
        %4077 = vmatprep.subr.mxu0 0.0
        %4078 = vmatpush2.msra.mxu0 0.0
        %4079 = vmatprep.subr.mxu0 0.0
        %4080 = vmatpush2.msra.mxu0 0.0
        %4081 = vmatprep.subr.mxu0 0.0
        %4082 = vmatpush2.msra.mxu0 0.0
        %4083 = vmatprep.mubr.f32.mxu0 0.0
        %4084 = vmatmul.mubr.f32.gmra.mxu0 %v3986
        %v4085 = vpop.f32.mrf.mxu0
        %v4086 = vadd.f32 0.0, %v4085
        %v4087 = vpop.f32.mrf.mxu0
        %4088 = vdwg.mxu0
        %4089 = vmatprep.subr.mxu0 0.0
        %4090 = vmatpush1.msra.mxu0 %v4002
        %4091 = vmatprep.subr.mxu0 0.0
        %4092 = vmatpush1.msra.mxu0 %v4001
        %4093 = vmatprep.subr.mxu0 0.0
        %4094 = vmatpush1.msra.mxu0 %v4000
        %4095 = vmatprep.subr.mxu0 0.0
        %4096 = vmatpush1.msra.mxu0 %v3999
        %4097 = vmatprep.subr.mxu0 0.0
        %4098 = vmatpush1.msra.mxu0 %v3998
        %4099 = vmatprep.subr.mxu0 0.0
        %4100 = vmatpush1.msra.mxu0 %v3997
        %4101 = vmatprep.subr.mxu0 0.0
        %4102 = vmatpush1.msra.mxu0 %v3996
        %4103 = vmatprep.subr.mxu0 0.0
        %4104 = vmatpush1.msra.mxu0 %v3995
        %4105 = vmatprep.subr.mxu0 0.0
        %4106 = vmatpush1.msra.mxu0 %v3994
        %4107 = vmatprep.subr.mxu0 0.0
        %4108 = vmatpush1.msra.mxu0 %v3993
        %4109 = vmatprep.subr.mxu0 0.0
        %4110 = vmatpush1.msra.mxu0 %v3992
        %4111 = vmatprep.subr.mxu0 0.0
        %4112 = vmatpush1.msra.mxu0 %v3991
        %4113 = vmatprep.subr.mxu0 0.0
        %4114 = vmatpush1.msra.mxu0 %v3990
        %4115 = vmatprep.subr.mxu0 0.0
        %4116 = vmatpush1.msra.mxu0 %v3989
        %4117 = vmatprep.subr.mxu0 0.0
        %4118 = vmatpush1.msra.mxu0 %v3988
        %4119 = vmatprep.subr.mxu0 0.0
        %4120 = vmatpush1.msra.mxu0 %v3987
        %4121 = vmatprep.subr.mxu0 0.0
        %4122 = vmatpush2.msra.mxu0 0.0
        %4123 = vmatprep.subr.mxu0 0.0
        %4124 = vmatpush2.msra.mxu0 0.0
        %4125 = vmatprep.subr.mxu0 0.0
        %4126 = vmatpush2.msra.mxu0 0.0
        %4127 = vmatprep.subr.mxu0 0.0
        %4128 = vmatpush2.msra.mxu0 0.0
        %4129 = vmatprep.subr.mxu0 0.0
        %4130 = vmatpush2.msra.mxu0 0.0
        %4131 = vmatprep.subr.mxu0 0.0
        %4132 = vmatpush2.msra.mxu0 0.0
        %4133 = vmatprep.subr.mxu0 0.0
        %4134 = vmatpush2.msra.mxu0 0.0
        %4135 = vmatprep.subr.mxu0 0.0
        %4136 = vmatpush2.msra.mxu0 0.0
        %4137 = vmatprep.subr.mxu0 0.0
        %4138 = vmatpush2.msra.mxu0 0.0
        %4139 = vmatprep.subr.mxu0 0.0
        %4140 = vmatpush2.msra.mxu0 0.0
        %4141 = vmatprep.subr.mxu0 0.0
        %4142 = vmatpush2.msra.mxu0 0.0
        %4143 = vmatprep.subr.mxu0 0.0
        %4144 = vmatpush2.msra.mxu0 0.0
        %4145 = vmatprep.subr.mxu0 0.0
        %4146 = vmatpush2.msra.mxu0 0.0
        %4147 = vmatprep.subr.mxu0 0.0
        %4148 = vmatpush2.msra.mxu0 0.0
        %4149 = vmatprep.subr.mxu0 0.0
        %4150 = vmatpush2.msra.mxu0 0.0
        %4151 = vmatprep.subr.mxu0 0.0
        %4152 = vmatpush2.msra.mxu0 0.0
        %4153 = vmatprep.mubr.f32.mxu0 0.0
        %4154 = vmatmul.mubr.f32.gmra.mxu0 %v3968
        %v4155 = vpop.f32.mrf.mxu0
        %v4156 = vadd.f32 %v4086, %v4155
        %v4157 = vpop.f32.mrf.mxu0
        %4158 = vdwg.mxu0
        %v4159 = vld [vmem:[%s7] sm:$0x1]
        %v4161 = vlaneseq
        %v4162 = vshrl.u32 %v4161, 7
        %v4163 = vsub.s32 0, %v4162
        %v4164 = vrot.slane %v4159, %v4163
        %v4166 = vadd.f32 %v4156, %v4164
        %v4167 = vmax.f32 %v4166, 0.0
        %v4168 = vld [vmem:[#allocation15] sm:$0xff]
        %v4169 = vld [vmem:[#allocation15 + $0x8] sm:$0xff]
        %v4170 = vld [vmem:[#allocation15 + $0x10] sm:$0xff]
        %v4171 = vld [vmem:[#allocation15 + $0x18] sm:$0xff]
        %v4172 = vld [vmem:[#allocation15 + $0x20] sm:$0xff]
        %v4173 = vld [vmem:[#allocation15 + $0x28] sm:$0xff]
        %v4174 = vld [vmem:[#allocation15 + $0x30] sm:$0xff]
        %v4175 = vld [vmem:[#allocation15 + $0x38] sm:$0xff]
        %v4176 = vld [vmem:[#allocation15 + $0x40] sm:$0xff]
        %v4177 = vld [vmem:[#allocation15 + $0x48] sm:$0xff]
        %v4178 = vld [vmem:[#allocation15 + $0x50] sm:$0xff]
        %v4179 = vld [vmem:[#allocation15 + $0x58] sm:$0xff]
        %v4180 = vld [vmem:[#allocation15 + $0x60] sm:$0xff]
        %v4181 = vld [vmem:[#allocation15 + $0x68] sm:$0xff]
        %v4182 = vld [vmem:[#allocation15 + $0x70] sm:$0xff]
        %v4183 = vld [vmem:[#allocation15 + $0x78] sm:$0xff]
        %v4184 = vld [vmem:[%s9] sm:$0x1]
        %v4186 = vlaneseq
        %v4187 = vshrl.u32 %v4186, 7
        %v4188 = vsub.s32 0, %v4187
        %v4189 = vrot.slane %v4184, %v4188
        %4191 = vmatprep.subr.mxu0 0.0
        %4192 = vmatpush1.msra.mxu0 %v4183
        %4193 = vmatprep.subr.mxu0 0.0
        %4194 = vmatpush1.msra.mxu0 %v4182
        %4195 = vmatprep.subr.mxu0 0.0
        %4196 = vmatpush1.msra.mxu0 %v4181
        %4197 = vmatprep.subr.mxu0 0.0
        %4198 = vmatpush1.msra.mxu0 %v4180
        %4199 = vmatprep.subr.mxu0 0.0
        %4200 = vmatpush1.msra.mxu0 %v4179
        %4201 = vmatprep.subr.mxu0 0.0
        %4202 = vmatpush1.msra.mxu0 %v4178
        %4203 = vmatprep.subr.mxu0 0.0
        %4204 = vmatpush1.msra.mxu0 %v4177
        %4205 = vmatprep.subr.mxu0 0.0
        %4206 = vmatpush1.msra.mxu0 %v4176
        %4207 = vmatprep.subr.mxu0 0.0
        %4208 = vmatpush1.msra.mxu0 %v4175
        %4209 = vmatprep.subr.mxu0 0.0
        %4210 = vmatpush1.msra.mxu0 %v4174
        %4211 = vmatprep.subr.mxu0 0.0
        %4212 = vmatpush1.msra.mxu0 %v4173
        %4213 = vmatprep.subr.mxu0 0.0
        %4214 = vmatpush1.msra.mxu0 %v4172
        %4215 = vmatprep.subr.mxu0 0.0
        %4216 = vmatpush1.msra.mxu0 %v4171
        %4217 = vmatprep.subr.mxu0 0.0
        %4218 = vmatpush1.msra.mxu0 %v4170
        %4219 = vmatprep.subr.mxu0 0.0
        %4220 = vmatpush1.msra.mxu0 %v4169
        %4221 = vmatprep.subr.mxu0 0.0
        %4222 = vmatpush1.msra.mxu0 %v4168
        %4223 = vmatprep.subr.mxu0 0.0
        %4224 = vmatpush2.msra.mxu0 0.0
        %4225 = vmatprep.subr.mxu0 0.0
        %4226 = vmatpush2.msra.mxu0 0.0
        %4227 = vmatprep.subr.mxu0 0.0
        %4228 = vmatpush2.msra.mxu0 0.0
        %4229 = vmatprep.subr.mxu0 0.0
        %4230 = vmatpush2.msra.mxu0 0.0
        %4231 = vmatprep.subr.mxu0 0.0
        %4232 = vmatpush2.msra.mxu0 0.0
        %4233 = vmatprep.subr.mxu0 0.0
        %4234 = vmatpush2.msra.mxu0 0.0
        %4235 = vmatprep.subr.mxu0 0.0
        %4236 = vmatpush2.msra.mxu0 0.0
        %4237 = vmatprep.subr.mxu0 0.0
        %4238 = vmatpush2.msra.mxu0 0.0
        %4239 = vmatprep.subr.mxu0 0.0
        %4240 = vmatpush2.msra.mxu0 0.0
        %4241 = vmatprep.subr.mxu0 0.0
        %4242 = vmatpush2.msra.mxu0 0.0
        %4243 = vmatprep.subr.mxu0 0.0
        %4244 = vmatpush2.msra.mxu0 0.0
        %4245 = vmatprep.subr.mxu0 0.0
        %4246 = vmatpush2.msra.mxu0 0.0
        %4247 = vmatprep.subr.mxu0 0.0
        %4248 = vmatpush2.msra.mxu0 0.0
        %4249 = vmatprep.subr.mxu0 0.0
        %4250 = vmatpush2.msra.mxu0 0.0
        %4251 = vmatprep.subr.mxu0 0.0
        %4252 = vmatpush2.msra.mxu0 0.0
        %4253 = vmatprep.subr.mxu0 0.0
        %4254 = vmatpush2.msra.mxu0 0.0
        %4255 = vmatprep.mubr.f32.mxu0 0.0
        %4256 = vmatmul.mubr.f32.gmra.mxu0 %v4167
        %v4257 = vpop.f32.mrf.mxu0
        %v4258 = vadd.f32 %v4189, %v4257
        %v4259 = vpop.f32.mrf.mxu0
        %4260 = vdwg.mxu0
        %4261 = vst [vmem:[%s476] sm:$0xff] %v4258
        %s4262 = sand.u32 %s254, 1
        %s4263 = scalar_lea.sflag [#allocation5], %s4262
        %s4264 = sand.u32 %s254, 1
        %s4265 = smul.addr %s4264, 8
        %s4266 = scalar_lea.vmem [#allocation17], %s4265
        // Predicated region
        $region93: #{tpu_custom_call.1} parent=59 // pred_check
          %p4267 = pneg %p264
        $region94: #{tpu_custom_call.1} parent=59 // pred_check_branch
          %4269 = sbr.rel (%p4267) target = $region96
        $region95: #{tpu_custom_call.1} parent=59 // pred_region
          %s4271 = ssub.s32 128, 128
          %4272 = vsyncadd %s4263, %s4271
          %s4273 = smul.addr %s31, 128
          %s4274 = scalar_lea.hbm %s10, %s4273
          %s4276 = sshll.u32 %s4266, 4
          %s4277 = int_to_ptr.vmem [resolvable:$true] %s4276
          %4279 = dma.vmem_to_hbm [thread:$0]  %s4277, 128, %s4274, %s4263
        $region96: #{tpu_custom_call.1} parent=59 // pred_fallthru
          _
      $region60: #{tpu_custom_call.1} parent=5 // pred_fallthru
        _
      %p4280 = scmp.le.s32.totalorder 2, %s26
      // Predicated region
      $region97: #{tpu_custom_call.1} parent=5 // pred_check
        %p4281 = pneg %p4280
      $region98: #{tpu_custom_call.1} parent=5 // pred_check_branch
        %4283 = sbr.rel (%p4281) target = $region100
      $region99: #{tpu_custom_call.1} parent=5 // pred_region
        %s4284 = ssub.s32 %s26, 2
        // Predicated region
        $region101: #{tpu_custom_call.1} parent=99 // pred_check
          %p4285 = pneg %p270
        $region102: #{tpu_custom_call.1} parent=99 // pred_check_branch
          %4287 = sbr.rel (%p4285) target = $region104
        $region103: #{tpu_custom_call.1} parent=99 // pred_region
          %s4288 = sand.u32 %s255, 1
          %s4289 = scalar_lea.sflag [#allocation5], %s4288
          %s4290 = sand.u32 %s255, 1
          %s4291 = smul.addr %s4290, 8
          %s4292 = scalar_lea.vmem [#allocation17], %s4291
          %4293 = dma.done %s4289, 128
        $region104: #{tpu_custom_call.1} parent=99 // pred_fallthru
          _
      $region100: #{tpu_custom_call.1} parent=5 // pred_fallthru
        _
    $region6: #{tpu_custom_call.1} parent=1 // loop_footer
      %s30 = sadd.s32 1, %s26
    $region7: #{tpu_custom_call.1} parent=1 // loop_footer_branch
      %25 = sbr.rel target = $region3
    $region8: #{tpu_custom_call.1} parent=1 // loop_exit
      _
    %4294 = vsyncpa [#allocation4], 1
    %s4295 = scalar_lea.sflag [#allocation4], 1
    %4296 = vsyncpa %s4295, 1
    %4297 = vsyncpa [#allocation7], 1
    %4298 = vsyncpa [#allocation10], 1
    %4299 = vsyncpa [#allocation13], 1
    %4300 = vsyncpa [#allocation16], 1
    %4301 = vsyncpa [#allocation5], 1
    %s4302 = scalar_lea.sflag [#allocation5], 1
    %4303 = vsyncpa %s4302, 1

</llo_original>
